<compile_context>
chip_gen: v5e
topology: v5e:2x2
jax: 0.10.0
libtpu: 0.0.40
codegen_flags: <defaults>
</compile_context>

<pallas_src>
import functools
import math

import jax
import jax.numpy as jnp
from jax import lax
from jax.experimental import pallas as pl
from jax.experimental.pallas import tpu as pltpu


_SQRT_HALF = 1.0 / math.sqrt(2.0)


def _default_vmem_limit():
    # Scoped-VMEM budget per TensorCore: v5e/v6e have 128 MiB, v7x only 64 MiB.
    cap = 64 * 1024 * 1024  # conservative fallback (valid on every generation)
    try:
        info = pltpu.get_tpu_info()
        c = getattr(info, "vmem_capacity_bytes", None)
        if c:
            cap = int(c)
    except Exception:
        pass
    return max(24 * 1024 * 1024, min(cap * 3 // 4, 96 * 1024 * 1024))


_VMEM_LIMIT = _default_vmem_limit()


def _gelu_exact(x):
    # exact (erf) GELU, matching torch.nn.functional.gelu default
    return 0.5 * x * (1.0 + lax.erf(x * _SQRT_HALF))


# ----------------------------------------------------------------------------
# Pallas kernels
# ----------------------------------------------------------------------------

def _matmul_bias_kernel(x_ref, w_ref, b_ref, o_ref, acc_ref, *, apply_gelu):
    # grid = (M/tm, N/tn, K/tk); K axis ("arbitrary") is last.
    k = pl.program_id(2)

    @pl.when(k == 0)
    def _():
        acc_ref[...] = jnp.zeros_like(acc_ref)

    acc_ref[...] += jnp.dot(x_ref[...].astype(jnp.bfloat16),
                            w_ref[...].astype(jnp.bfloat16),
                            preferred_element_type=jnp.float32)

    @pl.when(k == pl.num_programs(2) - 1)
    def _():
        acc_ref[...] += b_ref[...]
        y = acc_ref[...]
        if apply_gelu:
            y = _gelu_exact(y)
        o_ref[...] = y.astype(o_ref.dtype)


def _matmul_geglu_kernel(x_ref, wa_ref, wg_ref, ba_ref, bg_ref, o_ref,
                         acc_a_ref, acc_g_ref):
    # Fused GEGLU projection: out = (x@wa + ba) * gelu(x@wg + bg)
    k = pl.program_id(2)

    @pl.when(k == 0)
    def _():
        acc_a_ref[...] = jnp.zeros_like(acc_a_ref)
        acc_g_ref[...] = jnp.zeros_like(acc_g_ref)

    x = x_ref[...].astype(jnp.bfloat16)
    acc_a_ref[...] += jnp.dot(x, wa_ref[...].astype(jnp.bfloat16),
                              preferred_element_type=jnp.float32)
    acc_g_ref[...] += jnp.dot(x, wg_ref[...].astype(jnp.bfloat16),
                              preferred_element_type=jnp.float32)

    @pl.when(k == pl.num_programs(2) - 1)
    def _():
        # In-place epilogue: no fresh full-tile f32 temporaries.
        acc_a_ref[...] += ba_ref[...]
        acc_g_ref[...] = _gelu_exact(acc_g_ref[...] + bg_ref[...])
        o_ref[...] = (acc_a_ref[...] * acc_g_ref[...]).astype(o_ref.dtype)


def _ffn_fused_geglu_kernel(x_ref, wa_ref, wg_ref, ba_ref, bg_ref,
                            w2_ref, b2_ref, o_ref):
    # Whole FFN for one M row panel; h never touches HBM.
    x = x_ref[...].astype(jnp.bfloat16)
    a = jnp.dot(x, wa_ref[...].astype(jnp.bfloat16),
                preferred_element_type=jnp.float32) + ba_ref[...]
    g = jnp.dot(x, wg_ref[...].astype(jnp.bfloat16),
                preferred_element_type=jnp.float32) + bg_ref[...]
    h = (a * _gelu_exact(g)).astype(jnp.bfloat16)
    y = jnp.dot(h, w2_ref[...].astype(jnp.bfloat16),
                preferred_element_type=jnp.float32) + b2_ref[...]
    o_ref[...] = y.astype(o_ref.dtype)


def _ffn_fused_gelu_kernel(x_ref, w1_ref, b1_ref, w2_ref, b2_ref, o_ref):
    x = x_ref[...].astype(jnp.bfloat16)
    h = jnp.dot(x, w1_ref[...].astype(jnp.bfloat16),
                preferred_element_type=jnp.float32) + b1_ref[...]
    h = _gelu_exact(h).astype(jnp.bfloat16)
    y = jnp.dot(h, w2_ref[...].astype(jnp.bfloat16),
                preferred_element_type=jnp.float32) + b2_ref[...]
    o_ref[...] = y.astype(o_ref.dtype)


# ----------------------------------------------------------------------------
# Tiling helpers
# ----------------------------------------------------------------------------

def _pick_tile(dim, candidates, align, cap):
    for c in candidates:
        if c <= dim and dim % c == 0:
            return c
    # bounded fallback: largest aligned divisor of dim that is <= cap
    t = (min(cap, dim) // align) * align
    while t >= align:
        if dim % t == 0:
            return t
        t -= align
    # TODO(synk): pad/mask ragged dims instead of falling back to full extent.
    return dim


def _tiles(M, N, K, *, x_bytes, w_bytes, out_bytes, n_streams):
    budget = int(0.45 * _VMEM_LIMIT)
    tm = _pick_tile(M, (512, 256, 128, 64, 32, 16), align=8, cap=512)
    tn = _pick_tile(N, (256, 128), align=128, cap=256)
    tk = _pick_tile(K, (2048, 1536, 1280, 1024, 640, 512, 320, 256, 128),
                    align=128, cap=2048)

    def footprint(tm_, tn_, tk_):
        return (2 * tm_ * tk_ * x_bytes                # x tiles (double-buffered)
                + 2 * n_streams * tk_ * tn_ * w_bytes  # weight tiles
                + 2 * n_streams * tn_ * 4              # bias tiles
                + 2 * tm_ * tn_ * out_bytes            # output tiles
                + n_streams * tm_ * tn_ * 4)           # f32 accumulators

    while (footprint(tm, tn, tk) > budget and tk > 256
           and (tk // 2) % 128 == 0 and K % (tk // 2) == 0):
        tk //= 2
    while (footprint(tm, tn, tk) > budget and tm > 16
           and (tm // 2) % 8 == 0 and M % (tm // 2) == 0):
        tm //= 2

    # v7x megacore: expose >=2 blocks along the "parallel" axes when possible.
    while ((M // tm) * (N // tn) < 2 and tm >= 32
           and (tm // 2) % 8 == 0 and M % (tm // 2) == 0):
        tm //= 2
    return tm, tn, tk


def _fused_tm(M):
    tm = _pick_tile(M, (256, 128, 64, 32, 16), align=8, cap=256)
    while (M // tm < 2 and tm >= 32
           and (tm // 2) % 8 == 0 and M % (tm // 2) == 0):
        tm //= 2
    return tm


def _fused_fits(M, D, inner, d_out, glu):
    budget = int(0.5 * _VMEM_LIMIT)
    if glu and inner % 128 != 0:
        return False  # gate-half block needs a lane-aligned width
    tm = _fused_tm(M)
    w1_cols = 2 * inner if glu else inner
    weights = 2 * 2 * (D * w1_cols + inner * d_out)   # bf16, x2 buffering
    biases = 2 * 4 * (w1_cols + d_out)
    xblk = 2 * tm * D * 4
    oblk = 2 * tm * d_out * 4
    inter = tm * inner * 4 * (3 if glu else 2)        # f32 temporaries for h
    return weights + biases + xblk + oblk + inter < budget


# ----------------------------------------------------------------------------
# Pallas wrappers
# ----------------------------------------------------------------------------

def matmul_bias(x, w, b, *, apply_gelu=False, out_dtype=jnp.float32):
    # x: (M, K) -> (M, N) = x @ w + b, optionally followed by exact GELU.
    M, K = x.shape
    N = w.shape[1]
    out_b = jnp.dtype(out_dtype).itemsize
    tm, tn, tk = _tiles(M, N, K, x_bytes=x.dtype.itemsize,
                        w_bytes=w.dtype.itemsize, out_bytes=out_b, n_streams=1)

    b2d = b.reshape(1, N).astype(jnp.float32)

    cost = pl.CostEstimate(
        flops=int(2 * M * N * K),
        transcendentals=int(M * N if apply_gelu else 0),
        bytes_accessed=int(M * K * x.dtype.itemsize + K * N * w.dtype.itemsize
                           + N * 4 + M * N * out_b),
    )

    return pl.pallas_call(
        functools.partial(_matmul_bias_kernel, apply_gelu=apply_gelu),
        out_shape=jax.ShapeDtypeStruct((M, N), out_dtype),
        grid_spec=pltpu.PrefetchScalarGridSpec(
            num_scalar_prefetch=0,
            grid=(M // tm, N // tn, K // tk),
            in_specs=[
                pl.BlockSpec((tm, tk), lambda i, j, k: (i, k)),
                pl.BlockSpec((tk, tn), lambda i, j, k: (k, j)),
                pl.BlockSpec((1, tn), lambda i, j, k: (0, j)),
            ],
            out_specs=pl.BlockSpec((tm, tn), lambda i, j, k: (i, j)),
            scratch_shapes=[pltpu.VMEM((tm, tn), jnp.float32)],
        ),
        compiler_params=pltpu.CompilerParams(
            dimension_semantics=("parallel", "parallel", "arbitrary"),
            vmem_limit_bytes=_VMEM_LIMIT,
        ),
        cost_estimate=cost,
    )(x, w, b2d)


def matmul_geglu(x, w1, b1, *, out_dtype=jnp.bfloat16):
    # Fused first GEGLU projection on the whole w1 = [w_value | w_gate]:
    #   out = (x@w_value + b_value) * gelu(x@w_gate + b_gate), shape (M, inner).
    M, K = x.shape
    two_inner = w1.shape[1]
    N = two_inner // 2
    out_b = jnp.dtype(out_dtype).itemsize
    tm, tn, tk = _tiles(M, N, K, x_bytes=x.dtype.itemsize,
                        w_bytes=w1.dtype.itemsize, out_bytes=out_b, n_streams=2)
    nb = N // tn  # block offset of the gate half inside w1 / b1

    b2d = b1.reshape(1, two_inner).astype(jnp.float32)

    cost = pl.CostEstimate(
        flops=int(2 * M * two_inner * K + 2 * M * N),
        transcendentals=int(M * N),
        bytes_accessed=int(M * K * x.dtype.itemsize
                           + K * two_inner * w1.dtype.itemsize
                           + two_inner * 4 + M * N * out_b),
    )

    return pl.pallas_call(
        _matmul_geglu_kernel,
        out_shape=jax.ShapeDtypeStruct((M, N), out_dtype),
        grid_spec=pltpu.PrefetchScalarGridSpec(
            num_scalar_prefetch=0,
            grid=(M // tm, N // tn, K // tk),
            in_specs=[
                pl.BlockSpec((tm, tk), lambda i, j, k: (i, k)),
                # value half of w1 / b1
                pl.BlockSpec((tk, tn), lambda i, j, k: (k, j)),
                # gate half: same array, index map offset by nb blocks
                pl.BlockSpec((tk, tn), lambda i, j, k, nb=nb: (k, j + nb)),
                pl.BlockSpec((1, tn), lambda i, j, k: (0, j)),
                pl.BlockSpec((1, tn), lambda i, j, k, nb=nb: (0, j + nb)),
            ],
            out_specs=pl.BlockSpec((tm, tn), lambda i, j, k: (i, j)),
            scratch_shapes=[pltpu.VMEM((tm, tn), jnp.float32),
                            pltpu.VMEM((tm, tn), jnp.float32)],
        ),
        compiler_params=pltpu.CompilerParams(
            dimension_semantics=("parallel", "parallel", "arbitrary"),
            vmem_limit_bytes=_VMEM_LIMIT,
        ),
        cost_estimate=cost,
    )(x, w1, w1, b2d, b2d)


def ffn_fused(x, w1, b1, w2, b2, *, glu, out_dtype=jnp.float32):
    # Whole FFN in one kernel per M row panel (weights resident in VMEM).
    M, D = x.shape
    inner, d_out = w2.shape
    w1_cols = w1.shape[1]
    tm = _fused_tm(M)
    out_b = jnp.dtype(out_dtype).itemsize

    b1_2d = b1.reshape(1, w1_cols).astype(jnp.float32)
    b2_2d = b2.reshape(1, d_out).astype(jnp.float32)

    cost = pl.CostEstimate(
        flops=int(2 * M * D * w1_cols + 2 * M * inner * d_out + 2 * M * inner),
        transcendentals=int(M * inner),
        bytes_accessed=int(M * D * x.dtype.itemsize
                           + D * w1_cols * w1.dtype.itemsize
                           + inner * d_out * w2.dtype.itemsize
                           + (w1_cols + d_out) * 4 + M * d_out * out_b),
    )

    if glu:
        kernel = _ffn_fused_geglu_kernel
        in_specs = [
            pl.BlockSpec((tm, D), lambda i: (i, 0)),
            pl.BlockSpec((D, inner), lambda i: (0, 0)),   # value half of w1
            pl.BlockSpec((D, inner), lambda i: (0, 1)),   # gate half of w1
            pl.BlockSpec((1, inner), lambda i: (0, 0)),
            pl.BlockSpec((1, inner), lambda i: (0, 1)),
            pl.BlockSpec((inner, d_out), lambda i: (0, 0)),
            pl.BlockSpec((1, d_out), lambda i: (0, 0)),
        ]
        args = (x, w1, w1, b1_2d, b1_2d, w2, b2_2d)
    else:
        kernel = _ffn_fused_gelu_kernel
        in_specs = [
            pl.BlockSpec((tm, D), lambda i: (i, 0)),
            pl.BlockSpec((D, inner), lambda i: (0, 0)),
            pl.BlockSpec((1, inner), lambda i: (0, 0)),
            pl.BlockSpec((inner, d_out), lambda i: (0, 0)),
            pl.BlockSpec((1, d_out), lambda i: (0, 0)),
        ]
        args = (x, w1, b1_2d, w2, b2_2d)

    return pl.pallas_call(
        kernel,
        out_shape=jax.ShapeDtypeStruct((M, d_out), out_dtype),
        grid_spec=pltpu.PrefetchScalarGridSpec(
            num_scalar_prefetch=0,
            grid=(M // tm,),
            in_specs=in_specs,
            out_specs=pl.BlockSpec((tm, d_out), lambda i: (i, 0)),
        ),
        compiler_params=pltpu.CompilerParams(
            dimension_semantics=("parallel",),
            vmem_limit_bytes=_VMEM_LIMIT,
        ),
        cost_estimate=cost,
    )(*args)


# ----------------------------------------------------------------------------
# FeedForward forward pass
# ----------------------------------------------------------------------------

def feed_forward_fwd(params, x, *, glu, fuse=None, out_dtype=jnp.float32):
    # x: (B, S, D).  net = project_in -> Dropout(identity) -> Linear.
    # out_dtype can be set to bf16 if the residual-add consumer tolerates it.
    B, S, D = x.shape
    M = B * S
    x2 = x.reshape(M, D)

    w1, b1 = params["w1"], params["b1"]          # (D, inner[*2]) bf16, (1, ...)
    w2, b2 = params["w2"], params["b2"]          # (inner, D_out) bf16, (1, D_out)
    inner, d_out = w2.shape

    if fuse is None:
        fuse = _fused_fits(M, D, inner, d_out, glu)

    if fuse:
        out = ffn_fused(x2, w1, b1, w2, b2, glu=glu, out_dtype=out_dtype)
    else:
        if glu:
            h = matmul_geglu(x2, w1, b1, out_dtype=jnp.bfloat16)
        else:
            h = matmul_bias(x2, w1, b1, apply_gelu=True, out_dtype=jnp.bfloat16)
        # Dropout is identity at inference.
        out = matmul_bias(h, w2, b2, apply_gelu=False, out_dtype=out_dtype)
    return out.reshape(B, S, d_out)


# Pure-JAX reference (same bf16-in / f32-accumulate numerics) for sanity check.
def feed_forward_ref(params, x, *, glu):
    B, S, D = x.shape
    x2 = x.reshape(B * S, D).astype(jnp.bfloat16)
    w1 = params["w1"].astype(jnp.bfloat16)
    h = jnp.dot(x2, w1, preferred_element_type=jnp.float32) + params["b1"]
    if glu:
        inner = params["w2"].shape[0]
        h = h[:, :inner] * _gelu_exact(h[:, inner:])
    else:
        h = _gelu_exact(h)
    h = h.astype(jnp.bfloat16)
    w2 = params["w2"].astype(jnp.bfloat16)
    out = jnp.dot(h, w2, preferred_element_type=jnp.float32) + params["b2"]
    return out.reshape(B, S, -1)


# ----------------------------------------------------------------------------
# Deterministic parameter init (shapes follow the PyTorch module)
# ----------------------------------------------------------------------------

def init_params(key, dim, dim_out=None, mult=4, glu=False):
    inner = int(dim * mult)
    dim_out = dim_out or dim
    k1, k2, k3, k4 = jax.random.split(key, 4)

    w1_cols = 2 * inner if glu else inner
    return {
        # Linear weights stored as (in, out) matmul layout, at rest in bf16.
        "w1": (jax.random.normal(k1, (dim, w1_cols), jnp.float32) * 0.02
               ).astype(jnp.bfloat16),
        "b1": jax.random.normal(k3, (1, w1_cols), jnp.float32) * 0.1,
        "w2": (jax.random.normal(k2, (inner, dim_out), jnp.float32) * 0.02
               ).astype(jnp.bfloat16),
        "b2": jax.random.normal(k4, (1, dim_out), jnp.float32) * 0.1,
    }


# ----------------------------------------------------------------------------
# Main
# ----------------------------------------------------------------------------

if __name__ == "__main__":
    B, S, D = 2, 128, 128         # tokens M = B*S = 256, hidden dim = 128
    mult = 4                      # inner_dim = 512

    key = jax.random.PRNGKey(0)
    kx, kp1, kp2 = jax.random.split(key, 3)
    x = jax.random.normal(kx, (B, S, D), jnp.float32)

    for glu, pkey in ((True, kp1), (False, kp2)):
        params = init_params(pkey, D, mult=mult, glu=glu)
        ref = feed_forward_ref(params, x, glu=glu)
        # exercise both the fused whole-FFN kernel and the tiled 2-kernel path
        for fuse in (True, False):
            fwd = jax.jit(functools.partial(feed_forward_fwd, glu=glu, fuse=fuse))
            out = fwd(params, x)
            jax.block_until_ready(out)
            assert out.shape == (B, S, D) and out.dtype == jnp.float32, (glu, fuse)
            assert jnp.allclose(out, ref, rtol=5e-2, atol=5e-2), (glu, fuse)

    print("KERNEL_OK")
</pallas_src>

<mosaic_0001>
module attributes {stable_mosaic.version = 11 : i64} {
  func.func @_ffn_fused_geglu_kernel(%arg0: i32, %arg1: memref<128x128xf32, #tpu.memory_space<vmem>>, %arg2: memref<128x512xbf16, #tpu.memory_space<vmem>>, %arg3: memref<128x512xbf16, #tpu.memory_space<vmem>>, %arg4: memref<1x512xf32, #tpu.memory_space<vmem>>, %arg5: memref<1x512xf32, #tpu.memory_space<vmem>>, %arg6: memref<512x128xbf16, #tpu.memory_space<vmem>>, %arg7: memref<1x128xf32, #tpu.memory_space<vmem>>, %arg8: memref<128x128xf32, #tpu.memory_space<vmem>>) attributes {dimension_semantics = [#tpu.dimension_semantics<parallel>], iteration_bounds = array<i64: 2>, scalar_prefetch = 0 : i64, scratch_operands = 0 : i64, tpu.core_type = #tpu.core_type<tc>, window_params = [{transform_indices = @transform_0, window_bounds = array<i64: 128, 128>}, {transform_indices = @transform_1, window_bounds = array<i64: 128, 512>}, {transform_indices = @transform_2, window_bounds = array<i64: 128, 512>}, {transform_indices = @transform_3, window_bounds = array<i64: 1, 512>}, {transform_indices = @transform_4, window_bounds = array<i64: 1, 512>}, {pipeline_mode = #tpu.pipeline_mode<synchronous>, transform_indices = @transform_5, window_bounds = array<i64: 512, 128>}, {pipeline_mode = #tpu.pipeline_mode<synchronous>, transform_indices = @transform_6, window_bounds = array<i64: 1, 128>}, {transform_indices = @transform_7, window_bounds = array<i64: 128, 128>}]} {
    %c0 = arith.constant 0 : index
    %c0_0 = arith.constant 0 : index
    %0 = vector.load %arg1[%c0, %c0_0] : memref<128x128xf32, #tpu.memory_space<vmem>>, vector<128x128xf32>
    %1 = arith.truncf %0 : vector<128x128xf32> to vector<128x128xbf16>
    %c0_1 = arith.constant 0 : index
    %c0_2 = arith.constant 0 : index
    %2 = vector.load %arg2[%c0_1, %c0_2] : memref<128x512xbf16, #tpu.memory_space<vmem>>, vector<128x512xbf16>
    %cst = arith.constant dense<0.000000e+00> : vector<128x512xf32>
    %3 = tpu.matmul %1, %2, %cst {dimension_numbers = #tpu.dot_dimension_numbers<[1], [0], [0], [1], [0, 0, 1, 1], [], []>} : vector<128x128xbf16>, vector<128x512xbf16>, vector<128x512xf32> -> vector<128x512xf32>
    %c0_3 = arith.constant 0 : index
    %c0_4 = arith.constant 0 : index
    %4 = vector.load %arg4[%c0_3, %c0_4] : memref<1x512xf32, #tpu.memory_space<vmem>>, vector<1x512xf32>
    %5 = vector.broadcast %4 : vector<1x512xf32> to vector<128x512xf32>
    %6 = arith.addf %3, %5 : vector<128x512xf32>
    %c0_5 = arith.constant 0 : index
    %c0_6 = arith.constant 0 : index
    %7 = vector.load %arg3[%c0_5, %c0_6] : memref<128x512xbf16, #tpu.memory_space<vmem>>, vector<128x512xbf16>
    %cst_7 = arith.constant dense<0.000000e+00> : vector<128x512xf32>
    %8 = tpu.matmul %1, %7, %cst_7 {dimension_numbers = #tpu.dot_dimension_numbers<[1], [0], [0], [1], [0, 0, 1, 1], [], []>} : vector<128x128xbf16>, vector<128x512xbf16>, vector<128x512xf32> -> vector<128x512xf32>
    %c0_8 = arith.constant 0 : index
    %c0_9 = arith.constant 0 : index
    %9 = vector.load %arg5[%c0_8, %c0_9] : memref<1x512xf32, #tpu.memory_space<vmem>>, vector<1x512xf32>
    %10 = vector.broadcast %9 : vector<1x512xf32> to vector<128x512xf32>
    %11 = arith.addf %8, %10 : vector<128x512xf32>
    %cst_10 = arith.constant 5.000000e-01 : f32
    %12 = vector.broadcast %cst_10 : f32 to vector<128x512xf32>
    %13 = arith.mulf %12, %11 : vector<128x512xf32>
    %cst_11 = arith.constant 0.707106769 : f32
    %14 = vector.broadcast %cst_11 : f32 to vector<128x512xf32>
    %15 = arith.mulf %11, %14 : vector<128x512xf32>
    %16 = math.erf %15 : vector<128x512xf32>
    %cst_12 = arith.constant 1.000000e+00 : f32
    %17 = vector.broadcast %cst_12 : f32 to vector<128x512xf32>
    %18 = arith.addf %17, %16 : vector<128x512xf32>
    %19 = arith.mulf %13, %18 : vector<128x512xf32>
    %20 = arith.mulf %6, %19 : vector<128x512xf32>
    %21 = arith.truncf %20 : vector<128x512xf32> to vector<128x512xbf16>
    %c0_13 = arith.constant 0 : index
    %c0_14 = arith.constant 0 : index
    %22 = vector.load %arg6[%c0_13, %c0_14] : memref<512x128xbf16, #tpu.memory_space<vmem>>, vector<512x128xbf16>
    %cst_15 = arith.constant dense<0.000000e+00> : vector<128x128xf32>
    %23 = tpu.matmul %21, %22, %cst_15 {dimension_numbers = #tpu.dot_dimension_numbers<[1], [0], [0], [1], [0, 0, 1, 1], [], []>} : vector<128x512xbf16>, vector<512x128xbf16>, vector<128x128xf32> -> vector<128x128xf32>
    %c0_16 = arith.constant 0 : index
    %c0_17 = arith.constant 0 : index
    %24 = vector.load %arg7[%c0_16, %c0_17] : memref<1x128xf32, #tpu.memory_space<vmem>>, vector<1x128xf32>
    %25 = vector.broadcast %24 : vector<1x128xf32> to vector<128x128xf32>
    %26 = arith.addf %23, %25 : vector<128x128xf32>
    %c0_18 = arith.constant 0 : index
    %c0_19 = arith.constant 0 : index
    %27 = vector.load %arg8[%c0_18, %c0_19] : memref<128x128xf32, #tpu.memory_space<vmem>>, vector<128x128xf32>
    tpu.vector_store %arg8[%c0_18, %c0_19], %26 {strides = array<i32>} : memref<128x128xf32, #tpu.memory_space<vmem>>, vector<128x128xf32>,
    return
  }
  func.func @transform_0(%arg0: i32) -> (i32, i32) {
    %c0_i32 = arith.constant 0 : i32
    %c0_i32_0 = arith.constant 0 : i32
    return %arg0, %c0_i32 : i32, i32
  }
  func.func @transform_1(%arg0: i32) -> (i32, i32) {
    %c0_i32 = arith.constant 0 : i32
    %c0_i32_0 = arith.constant 0 : i32
    %c0_i32_1 = arith.constant 0 : i32
    return %c0_i32, %c0_i32_0 : i32, i32
  }
  func.func @transform_2(%arg0: i32) -> (i32, i32) {
    %c0_i32 = arith.constant 0 : i32
    %c1_i32 = arith.constant 1 : i32
    %c0_i32_0 = arith.constant 0 : i32
    return %c0_i32, %c1_i32 : i32, i32
  }
  func.func @transform_3(%arg0: i32) -> (i32, i32) {
    %c0_i32 = arith.constant 0 : i32
    %c0_i32_0 = arith.constant 0 : i32
    %c0_i32_1 = arith.constant 0 : i32
    return %c0_i32, %c0_i32_0 : i32, i32
  }
  func.func @transform_4(%arg0: i32) -> (i32, i32) {
    %c0_i32 = arith.constant 0 : i32
    %c1_i32 = arith.constant 1 : i32
    %c0_i32_0 = arith.constant 0 : i32
    return %c0_i32, %c1_i32 : i32, i32
  }
  func.func @transform_5(%arg0: i32) -> (i32, i32) {
    %c0_i32 = arith.constant 0 : i32
    %c0_i32_0 = arith.constant 0 : i32
    %c0_i32_1 = arith.constant 0 : i32
    return %c0_i32, %c0_i32_0 : i32, i32
  }
  func.func @transform_6(%arg0: i32) -> (i32, i32) {
    %c0_i32 = arith.constant 0 : i32
    %c0_i32_0 = arith.constant 0 : i32
    %c0_i32_1 = arith.constant 0 : i32
    return %c0_i32, %c0_i32_0 : i32, i32
  }
  func.func @transform_7(%arg0: i32) -> (i32, i32) {
    %c0_i32 = arith.constant 0 : i32
    %c0_i32_0 = arith.constant 0 : i32
    return %arg0, %c0_i32 : i32, i32
  }
}

</mosaic_0001>

<llo_original>
// kernel: feed_forward_fwd.1
$region0: #{feed_forward_fwd.1}
  #allocation0 [shape = 'u32[]', space=smem, size = 0x4, offset = 0x4, fixed_abs, tag = 'smem constant byte address 0x4 - core index']
  #allocation1 [shape = 'u32[72,128]{1,0:T(1,128)}', space=vmem, size = 0x9000, scoped, tag = 'internal scratch']
  %s0 = inlined_call_operand.hbm [shape: f32[256,128], index: 0, kind: input, shape index: {}]
  %s1 = inlined_call_operand.hbm [shape: bf16[128,1024], index: 1, kind: input, shape index: {}, may-alias: {1,2}]
  %s2 = inlined_call_operand.hbm [shape: bf16[128,1024], index: 2, kind: input, shape index: {}, may-alias: {1,2}]
  %s3 = inlined_call_operand.hbm [shape: f32[1,1024], index: 3, kind: input, shape index: {}, may-alias: {3,4}]
  %s4 = inlined_call_operand.hbm [shape: f32[1,1024], index: 4, kind: input, shape index: {}, may-alias: {3,4}]
  %s5 = inlined_call_operand.hbm [shape: bf16[512,128], index: 5, kind: input, shape index: {}]
  %s6 = inlined_call_operand.vmem [shape: f32[1,128], index: 6, kind: input, shape index: {}]
  %s7 = inlined_call_operand.hbm [shape: f32[256,128], index: 7, kind: output, shape index: {}]
  %s8 = sld [smem:[#allocation0]]
  $region85: #{feed_forward_fwd.1} parent=0
    _
  %s10 = ssub.s32 1, %s8
  %s11 = scalar_select 0, %s10, %s8
  $region1: #{feed_forward_fwd.1} parent=0
    #allocation2 [shape = 'u8[131072]{0}', space=vmem, size = 0x20000, scoped, tag = 'input window, operand 0']
    #allocation3 [shape = 's32[2]{0}', space=sflag, size = 0x8, scoped, tag = 'scoped memory for feed_forward_fwd.1']
    #allocation4 [shape = 's32[2]{0}', space=sflag, size = 0x8, scoped, tag = 'scoped memory for feed_forward_fwd.1']
    #allocation5 [shape = 'u8[131072]{0}', space=vmem, size = 0x20000, scoped, tag = 'input window, operand 1, single buffered']
    #allocation6 [shape = 's32[1]{0}', space=sflag, size = 0x4, scoped, tag = 'scoped memory for feed_forward_fwd.1']
    #allocation7 [shape = 'u8[131072]{0}', space=vmem, size = 0x20000, scoped, tag = 'input window, operand 2, single buffered']
    #allocation8 [shape = 'u8[2048]{0}', space=vmem, size = 0x800, scoped, tag = 'input window, operand 3, single buffered']
    #allocation9 [shape = 's32[1]{0}', space=sflag, size = 0x4, scoped, tag = 'scoped memory for feed_forward_fwd.1']
    #allocation10 [shape = 'u8[2048]{0}', space=vmem, size = 0x800, scoped, tag = 'input window, operand 4, single buffered']
    #allocation11 [shape = 'u8[131072]{0}', space=vmem, size = 0x20000, scoped, tag = 'input window, operand 5, single buffered']
    #allocation12 [shape = 's32[1]{0}', space=sflag, size = 0x4, scoped, tag = 'scoped memory for feed_forward_fwd.1']
    #allocation13 [shape = 'u8[131072]{0}', space=vmem, size = 0x20000, scoped, tag = 'output window, operand 0']
    %12 = vsyncpa [#allocation3], 0
    %s13 = scalar_lea.sflag [#allocation3], 1
    %14 = vsyncpa %s13, 0
    %15 = vsyncpa [#allocation6], 0
    %16 = vsyncpa [#allocation9], 0
    %17 = vsyncpa [#allocation12], 0
    %18 = vsyncpa [#allocation4], 0
    %s19 = scalar_lea.sflag [#allocation4], 1
    %20 = vsyncpa %s19, 0
    loop: start=0, step=1, limit=4
    $region2: #{feed_forward_fwd.1} parent=1 // loop_pre_header
      _
    $region3: #{feed_forward_fwd.1} parent=1 // loop_header
      %s22 = sphi 0, %s26
      %p23 = scmp.ge.s32.totalorder %s22, 4
      %s32 = sphi 0, %s34
      %s35 = sphi 0, %s32
      %s36 = sphi 0, %s35
      %s52 = sphi 0, %s36
      %s56 = sphi 0, %s56
      %s58 = sphi 0, %s56
      %s59 = sphi 0, %s58
      %s73 = sphi 0, %s59
      %s77 = sphi 0, %s77
      %s79 = sphi 0, %s77
      %s80 = sphi 0, %s79
      %s94 = sphi 0, %s80
      %s98 = sphi 0, %s98
      %s100 = sphi 0, %s98
      %s101 = sphi 0, %s100
      %s115 = sphi 0, %s101
      %s119 = sphi 0, %s119
      %s121 = sphi 0, %s119
      %s122 = sphi 0, %s121
      %s136 = sphi 0, %s122
      %s140 = sphi 0, %s140
      %s142 = sphi 0, %s140
      %s143 = sphi 0, %s142
      %s157 = sphi 0, %s143
      %s161 = sphi 0, %s161
      %s163 = sphi 0, %s161
      %s164 = sphi 0, %s163
      %s178 = sphi 0, %s164
      %s184 = sphi 0, %s186
      %s187 = sphi 0, %s184
      %s188 = sphi 0, %s187
      %s204 = sphi 0, %s188
    $region4: #{feed_forward_fwd.1} parent=1 // loop_header_branch
      %25 = sbr.rel (%p23) target = $region8
    $region5: #{feed_forward_fwd.1} parent=1 // loop_body
      %s27 = ssub.s32 %s22, 1
      %s28 = ssub.s32 %s22, 2
      %s29 = sadd.s32 %s22, 1
      %s30 = ssub.s32 %s22, %s29
      %p31 = scmp.eq.s32.totalorder %s30, 0
      %s33 = sadd.s32 %s32, 1
      %s34 = scalar_select %p31, %s32, %s33
      %p37 = pneg %p31
      %p38 = scmp.eq.s32.totalorder %s22, 1
      %p39 = por %p37, %p38
      %p40 = scmp.ne.s32.totalorder %s32, %s35
      %p41 = scmp.eq.s32.totalorder %s22, 0
      %p42 = por %p40, %p41
      %p43 = scmp.ne.s32.totalorder %s32, %s35
      %p44 = scmp.eq.s32.totalorder %s27, 1
      %p45 = por %p43, %p44
      %p46 = scmp.ne.s32.totalorder %s35, %s36
      %p47 = scmp.eq.s32.totalorder %s27, 0
      %p48 = por %p46, %p47
      %p49 = scmp.ne.s32.totalorder %s35, %s36
      %p50 = scmp.eq.s32.totalorder %s28, 1
      %p51 = por %p49, %p50
      %p53 = scmp.ne.s32.totalorder %s36, %s52
      %p54 = scmp.eq.s32.totalorder %s28, 0
      %p55 = por %p53, %p54
      %s57 = sadd.s32 %s56, 1
      %p60 = scmp.eq.s32.totalorder %s22, 1
      %p61 = scmp.ne.s32.totalorder %s56, %s58
      %p62 = scmp.eq.s32.totalorder %s22, 0
      %p63 = por %p61, %p62
      %p64 = scmp.ne.s32.totalorder %s56, %s58
      %p65 = scmp.eq.s32.totalorder %s27, 1
      %p66 = por %p64, %p65
      %p67 = scmp.ne.s32.totalorder %s58, %s59
      %p68 = scmp.eq.s32.totalorder %s27, 0
      %p69 = por %p67, %p68
      %p70 = scmp.ne.s32.totalorder %s58, %s59
      %p71 = scmp.eq.s32.totalorder %s28, 1
      %p72 = por %p70, %p71
      %p74 = scmp.ne.s32.totalorder %s59, %s73
      %p75 = scmp.eq.s32.totalorder %s28, 0
      %p76 = por %p74, %p75
      %s78 = sadd.s32 %s77, 1
      %p81 = scmp.eq.s32.totalorder %s22, 1
      %p82 = scmp.ne.s32.totalorder %s77, %s79
      %p83 = scmp.eq.s32.totalorder %s22, 0
      %p84 = por %p82, %p83
      %p85 = scmp.ne.s32.totalorder %s77, %s79
      %p86 = scmp.eq.s32.totalorder %s27, 1
      %p87 = por %p85, %p86
      %p88 = scmp.ne.s32.totalorder %s79, %s80
      %p89 = scmp.eq.s32.totalorder %s27, 0
      %p90 = por %p88, %p89
      %p91 = scmp.ne.s32.totalorder %s79, %s80
      %p92 = scmp.eq.s32.totalorder %s28, 1
      %p93 = por %p91, %p92
      %p95 = scmp.ne.s32.totalorder %s80, %s94
      %p96 = scmp.eq.s32.totalorder %s28, 0
      %p97 = por %p95, %p96
      %s99 = sadd.s32 %s98, 1
      %p102 = scmp.eq.s32.totalorder %s22, 1
      %p103 = scmp.ne.s32.totalorder %s98, %s100
      %p104 = scmp.eq.s32.totalorder %s22, 0
      %p105 = por %p103, %p104
      %p106 = scmp.ne.s32.totalorder %s98, %s100
      %p107 = scmp.eq.s32.totalorder %s27, 1
      %p108 = por %p106, %p107
      %p109 = scmp.ne.s32.totalorder %s100, %s101
      %p110 = scmp.eq.s32.totalorder %s27, 0
      %p111 = por %p109, %p110
      %p112 = scmp.ne.s32.totalorder %s100, %s101
      %p113 = scmp.eq.s32.totalorder %s28, 1
      %p114 = por %p112, %p113
      %p116 = scmp.ne.s32.totalorder %s101, %s115
      %p117 = scmp.eq.s32.totalorder %s28, 0
      %p118 = por %p116, %p117
      %s120 = sadd.s32 %s119, 1
      %p123 = scmp.eq.s32.totalorder %s22, 1
      %p124 = scmp.ne.s32.totalorder %s119, %s121
      %p125 = scmp.eq.s32.totalorder %s22, 0
      %p126 = por %p124, %p125
      %p127 = scmp.ne.s32.totalorder %s119, %s121
      %p128 = scmp.eq.s32.totalorder %s27, 1
      %p129 = por %p127, %p128
      %p130 = scmp.ne.s32.totalorder %s121, %s122
      %p131 = scmp.eq.s32.totalorder %s27, 0
      %p132 = por %p130, %p131
      %p133 = scmp.ne.s32.totalorder %s121, %s122
      %p134 = scmp.eq.s32.totalorder %s28, 1
      %p135 = por %p133, %p134
      %p137 = scmp.ne.s32.totalorder %s122, %s136
      %p138 = scmp.eq.s32.totalorder %s28, 0
      %p139 = por %p137, %p138
      %s141 = sadd.s32 %s140, 1
      %p144 = scmp.eq.s32.totalorder %s22, 1
      %p145 = scmp.ne.s32.totalorder %s140, %s142
      %p146 = scmp.eq.s32.totalorder %s22, 0
      %p147 = por %p145, %p146
      %p148 = scmp.ne.s32.totalorder %s140, %s142
      %p149 = scmp.eq.s32.totalorder %s27, 1
      %p150 = por %p148, %p149
      %p151 = scmp.ne.s32.totalorder %s142, %s143
      %p152 = scmp.eq.s32.totalorder %s27, 0
      %p153 = por %p151, %p152
      %p154 = scmp.ne.s32.totalorder %s142, %s143
      %p155 = scmp.eq.s32.totalorder %s28, 1
      %p156 = por %p154, %p155
      %p158 = scmp.ne.s32.totalorder %s143, %s157
      %p159 = scmp.eq.s32.totalorder %s28, 0
      %p160 = por %p158, %p159
      %s162 = sadd.s32 %s161, 1
      %p165 = scmp.eq.s32.totalorder %s22, 1
      %p166 = scmp.ne.s32.totalorder %s161, %s163
      %p167 = scmp.eq.s32.totalorder %s22, 0
      %p168 = por %p166, %p167
      %p169 = scmp.ne.s32.totalorder %s161, %s163
      %p170 = scmp.eq.s32.totalorder %s27, 1
      %p171 = por %p169, %p170
      %p172 = scmp.ne.s32.totalorder %s163, %s164
      %p173 = scmp.eq.s32.totalorder %s27, 0
      %p174 = por %p172, %p173
      %p175 = scmp.ne.s32.totalorder %s163, %s164
      %p176 = scmp.eq.s32.totalorder %s28, 1
      %p177 = por %p175, %p176
      %p179 = scmp.ne.s32.totalorder %s164, %s178
      %p180 = scmp.eq.s32.totalorder %s28, 0
      %p181 = por %p179, %p180
      %s182 = ssub.s32 %s22, %s29
      %p183 = scmp.eq.s32.totalorder %s182, 0
      %s185 = sadd.s32 %s184, 1
      %s186 = scalar_select %p183, %s184, %s185
      %p189 = pneg %p183
      %p190 = scmp.eq.s32.totalorder %s22, 1
      %p191 = por %p189, %p190
      %p192 = scmp.ne.s32.totalorder %s184, %s187
      %p193 = scmp.eq.s32.totalorder %s22, 0
      %p194 = por %p192, %p193
      %p195 = scmp.ne.s32.totalorder %s184, %s187
      %p196 = scmp.eq.s32.totalorder %s27, 1
      %p197 = por %p195, %p196
      %p198 = scmp.ne.s32.totalorder %s187, %s188
      %p199 = scmp.eq.s32.totalorder %s27, 0
      %p200 = por %p198, %p199
      %p201 = scmp.ne.s32.totalorder %s187, %s188
      %p202 = scmp.eq.s32.totalorder %s28, 1
      %p203 = por %p201, %p202
      %p205 = scmp.ne.s32.totalorder %s188, %s204
      %p206 = scmp.eq.s32.totalorder %s28, 0
      %p207 = por %p205, %p206
      %p208 = scmp.le.s32.totalorder 1, %s22
      %p209 = scmp.lt.s32.totalorder %s22, 3
      %p210 = pnand %p208, %p209
      %p211 = pneg %p210
      // Predicated region
      $region9: #{feed_forward_fwd.1} parent=5 // pred_check
        _
      $region10: #{feed_forward_fwd.1} parent=5 // pred_check_branch
        %213 = sbr.rel (%p210) target = $region12
      $region11: #{feed_forward_fwd.1} parent=5 // pred_region
        %s214 = ssub.s32 %s22, 1
        // Predicated region
        $region13: #{feed_forward_fwd.1} parent=11 // pred_check
          %p215 = pneg %p69
        $region14: #{feed_forward_fwd.1} parent=11 // pred_check_branch
          %217 = sbr.rel (%p215) target = $region16
        $region15: #{feed_forward_fwd.1} parent=11 // pred_region
          %219 = vsyncadd [#allocation6], 0
          %s220 = sshll.u32 %s1, 4
          %s221 = int_to_ptr.hbm [resolvable:$true] %s220
          %s222 = sshll.u32 [#allocation5], 4
          %s223 = int_to_ptr.vmem [resolvable:$true] %s222
          %228 = dma.hbm_to_vmem [thread:$0]  %s221, 4096, %s223, [#allocation6], 512, 256, 16
        $region16: #{feed_forward_fwd.1} parent=11 // pred_fallthru
          _
        // Predicated region
        $region17: #{feed_forward_fwd.1} parent=11 // pred_check
          %p229 = pneg %p90
        $region18: #{feed_forward_fwd.1} parent=11 // pred_check_branch
          %231 = sbr.rel (%p229) target = $region20
        $region19: #{feed_forward_fwd.1} parent=11 // pred_region
          %233 = vsyncadd [#allocation6], 0
          %s234 = scalar_lea.hbm %s2, 16
          %s235 = sshll.u32 %s234, 4
          %s236 = int_to_ptr.hbm [resolvable:$true] %s235
          %s237 = sshll.u32 [#allocation7], 4
          %s238 = int_to_ptr.vmem [resolvable:$true] %s237
          %243 = dma.hbm_to_vmem [thread:$0]  %s236, 4096, %s238, [#allocation6], 512, 256, 16
        $region20: #{feed_forward_fwd.1} parent=11 // pred_fallthru
          _
        // Predicated region
        $region21: #{feed_forward_fwd.1} parent=11 // pred_check
          %p244 = pneg %p111
        $region22: #{feed_forward_fwd.1} parent=11 // pred_check_branch
          %246 = sbr.rel (%p244) target = $region24
        $region23: #{feed_forward_fwd.1} parent=11 // pred_region
          %248 = vsyncadd [#allocation9], 0
          %s250 = sshll.u32 %s3, 4
          %s251 = int_to_ptr.hbm [resolvable:$true] %s250
          %s252 = sshll.u32 [#allocation8], 4
          %s253 = int_to_ptr.vmem [resolvable:$true] %s252
          %255 = dma.hbm_to_vmem [thread:$0]  %s251, 64, %s253, [#allocation9]
        $region24: #{feed_forward_fwd.1} parent=11 // pred_fallthru
          _
        // Predicated region
        $region25: #{feed_forward_fwd.1} parent=11 // pred_check
          %p256 = pneg %p132
        $region26: #{feed_forward_fwd.1} parent=11 // pred_check_branch
          %258 = sbr.rel (%p256) target = $region28
        $region27: #{feed_forward_fwd.1} parent=11 // pred_region
          %260 = vsyncadd [#allocation9], 0
          %s261 = scalar_lea.hbm %s4, 4
          %s263 = sshll.u32 %s261, 4
          %s264 = int_to_ptr.hbm [resolvable:$true] %s263
          %s265 = sshll.u32 [#allocation10], 4
          %s266 = int_to_ptr.vmem [resolvable:$true] %s265
          %268 = dma.hbm_to_vmem [thread:$0]  %s264, 64, %s266, [#allocation9]
        $region28: #{feed_forward_fwd.1} parent=11 // pred_fallthru
          _
        // Predicated region
        $region29: #{feed_forward_fwd.1} parent=11 // pred_check
          %p269 = pneg %p153
        $region30: #{feed_forward_fwd.1} parent=11 // pred_check_branch
          %271 = sbr.rel (%p269) target = $region32
        $region31: #{feed_forward_fwd.1} parent=11 // pred_region
          %273 = vsyncadd [#allocation12], 0
          %s274 = sshll.u32 %s5, 4
          %s275 = int_to_ptr.hbm [resolvable:$true] %s274
          %s276 = sshll.u32 [#allocation11], 4
          %s277 = int_to_ptr.vmem [resolvable:$true] %s276
          %282 = dma.hbm_to_vmem [thread:$0]  %s275, 4096, %s277, [#allocation12], 64, 64, 4
        $region32: #{feed_forward_fwd.1} parent=11 // pred_fallthru
          _
        // Predicated region
        $region33: #{feed_forward_fwd.1} parent=11 // pred_check
          %p283 = pneg %p174
        $region34: #{feed_forward_fwd.1} parent=11 // pred_check_branch
          %285 = sbr.rel (%p283) target = $region36
        $region35: #{feed_forward_fwd.1} parent=11 // pred_region
          _
        $region36: #{feed_forward_fwd.1} parent=11 // pred_fallthru
          _
      $region12: #{feed_forward_fwd.1} parent=5 // pred_fallthru
        _
      %p286 = scmp.lt.s32.totalorder %s22, 2
      // Predicated region
      $region37: #{feed_forward_fwd.1} parent=5 // pred_check
        %p287 = pneg %p286
      $region38: #{feed_forward_fwd.1} parent=5 // pred_check_branch
        %289 = sbr.rel (%p287) target = $region40
      $region39: #{feed_forward_fwd.1} parent=5 // pred_region
        // Predicated region
        $region41: #{feed_forward_fwd.1} parent=39 // pred_check
          %p290 = pneg %p42
        $region42: #{feed_forward_fwd.1} parent=39 // pred_check_branch
          %292 = sbr.rel (%p290) target = $region44
        $region43: #{feed_forward_fwd.1} parent=39 // pred_region
          %s293 = sand.u32 %s32, 1
          %s294 = scalar_lea.sflag [#allocation3], %s293
          %s295 = sand.u32 %s32, 1
          %s296 = smul.addr %s295, 128
          %s297 = scalar_lea.vmem [#allocation2], %s296
          %s298 = smul.u32 16, %s22
          %300 = vsyncadd %s294, 0
          %s301 = smul.addr %s298, 8
          %s302 = scalar_lea.hbm %s0, %s301
          %s303 = sshll.u32 %s302, 4
          %s304 = int_to_ptr.hbm [resolvable:$true] %s303
          %s305 = sshll.u32 %s297, 4
          %s306 = int_to_ptr.vmem [resolvable:$true] %s305
          %311 = dma.hbm_to_vmem [thread:$0]  %s304, 2048, %s306, %s294, 128, 128, 8
        $region44: #{feed_forward_fwd.1} parent=39 // pred_fallthru
          _
      $region40: #{feed_forward_fwd.1} parent=5 // pred_fallthru
        _
      %p312 = scmp.le.s32.totalorder 1, %s22
      %p313 = scmp.lt.s32.totalorder %s22, 3
      %p314 = pnand %p312, %p313
      %p315 = pneg %p314
      // Predicated region
      $region45: #{feed_forward_fwd.1} parent=5 // pred_check
        _
      $region46: #{feed_forward_fwd.1} parent=5 // pred_check_branch
        %317 = sbr.rel (%p314) target = $region48
      $region47: #{feed_forward_fwd.1} parent=5 // pred_region
        %s318 = ssub.s32 %s22, 1
        %s319 = sand.u32 %s35, 1
        %s320 = scalar_lea.sflag [#allocation3], %s319
        %s321 = sand.u32 %s35, 1
        %s322 = smul.addr %s321, 128
        %s323 = scalar_lea.vmem [#allocation2], %s322
        // Predicated region
        $region49: #{feed_forward_fwd.1} parent=47 // pred_check
          %p324 = pneg %p48
        $region50: #{feed_forward_fwd.1} parent=47 // pred_check_branch
          %326 = sbr.rel (%p324) target = $region52
        $region51: #{feed_forward_fwd.1} parent=47 // pred_region
          %328 = dma.done %s320, 2048
        $region52: #{feed_forward_fwd.1} parent=47 // pred_fallthru
          _
        // Predicated region
        $region53: #{feed_forward_fwd.1} parent=47 // pred_check
          %p329 = pneg %p69
        $region54: #{feed_forward_fwd.1} parent=47 // pred_check_branch
          %331 = sbr.rel (%p329) target = $region56
        $region55: #{feed_forward_fwd.1} parent=47 // pred_region
          %333 = dma.done [#allocation6], 4096
        $region56: #{feed_forward_fwd.1} parent=47 // pred_fallthru
          _
        // Predicated region
        $region57: #{feed_forward_fwd.1} parent=47 // pred_check
          %p334 = pneg %p90
        $region58: #{feed_forward_fwd.1} parent=47 // pred_check_branch
          %336 = sbr.rel (%p334) target = $region60
        $region59: #{feed_forward_fwd.1} parent=47 // pred_region
          %338 = dma.done [#allocation6], 4096
        $region60: #{feed_forward_fwd.1} parent=47 // pred_fallthru
          _
        // Predicated region
        $region61: #{feed_forward_fwd.1} parent=47 // pred_check
          %p339 = pneg %p111
        $region62: #{feed_forward_fwd.1} parent=47 // pred_check_branch
          %341 = sbr.rel (%p339) target = $region64
        $region63: #{feed_forward_fwd.1} parent=47 // pred_region
          %343 = dma.done [#allocation9], 64
        $region64: #{feed_forward_fwd.1} parent=47 // pred_fallthru
          _
        // Predicated region
        $region65: #{feed_forward_fwd.1} parent=47 // pred_check
          %p344 = pneg %p132
        $region66: #{feed_forward_fwd.1} parent=47 // pred_check_branch
          %346 = sbr.rel (%p344) target = $region68
        $region67: #{feed_forward_fwd.1} parent=47 // pred_region
          %348 = dma.done [#allocation9], 64
        $region68: #{feed_forward_fwd.1} parent=47 // pred_fallthru
          _
        // Predicated region
        $region69: #{feed_forward_fwd.1} parent=47 // pred_check
          %p349 = pneg %p153
        $region70: #{feed_forward_fwd.1} parent=47 // pred_check_branch
          %351 = sbr.rel (%p349) target = $region72
        $region71: #{feed_forward_fwd.1} parent=47 // pred_region
          %353 = dma.done [#allocation12], 4096
        $region72: #{feed_forward_fwd.1} parent=47 // pred_fallthru
          _
        %s354 = sand.u32 %s35, 1
        %s355 = scalar_lea.sflag [#allocation3], %s354
        %s356 = sand.u32 %s35, 1
        %s357 = smul.addr %s356, 128
        %s358 = scalar_lea.vmem [#allocation2], %s357
        %p359 = pneg %p48
        %p360 = pneg %p45
        %p361 = pneg %p69
        %p362 = pneg %p66
        %p363 = pneg %p90
        %p364 = pneg %p87
        %p365 = pneg %p111
        %p366 = pneg %p108
        %p367 = pneg %p132
        %p368 = pneg %p129
        %p369 = pneg %p153
        %p370 = pneg %p150
        %p371 = pneg %p174
        %p372 = pneg %p171
        %p373 = pneg %p200
        %p374 = pneg %p197
        %s375 = sand.u32 %s187, 1
        %s376 = scalar_lea.sflag [#allocation4], %s375
        %s377 = sand.u32 %s187, 1
        %s378 = smul.addr %s377, 128
        %s379 = scalar_lea.vmem [#allocation13], %s378
        %s380 = smul.u32 16, %s27
        %s381 = smul.u32 16, %s27
        %v382 = vld [vmem:[%s323] sm:$0xff]
        %v383 = vld [vmem:[%s323 + $0x8] sm:$0xff]
        %v384 = vld [vmem:[%s323 + $0x10] sm:$0xff]
        %v385 = vld [vmem:[%s323 + $0x18] sm:$0xff]
        %v386 = vld [vmem:[%s323 + $0x20] sm:$0xff]
        %v387 = vld [vmem:[%s323 + $0x28] sm:$0xff]
        %v388 = vld [vmem:[%s323 + $0x30] sm:$0xff]
        %v389 = vld [vmem:[%s323 + $0x38] sm:$0xff]
        %v390 = vld [vmem:[%s323 + $0x40] sm:$0xff]
        %v391 = vld [vmem:[%s323 + $0x48] sm:$0xff]
        %v392 = vld [vmem:[%s323 + $0x50] sm:$0xff]
        %v393 = vld [vmem:[%s323 + $0x58] sm:$0xff]
        %v394 = vld [vmem:[%s323 + $0x60] sm:$0xff]
        %v395 = vld [vmem:[%s323 + $0x68] sm:$0xff]
        %v396 = vld [vmem:[%s323 + $0x70] sm:$0xff]
        %v397 = vld [vmem:[%s323 + $0x78] sm:$0xff]
        %v398 = vpack.c.bf16 %v383, %v382
        %v399 = vpack.c.bf16 %v385, %v384
        %v400 = vpack.c.bf16 %v387, %v386
        %v401 = vpack.c.bf16 %v389, %v388
        %v402 = vpack.c.bf16 %v391, %v390
        %v403 = vpack.c.bf16 %v393, %v392
        %v404 = vpack.c.bf16 %v395, %v394
        %v405 = vpack.c.bf16 %v397, %v396
        %v406 = vld [vmem:[#allocation5] sm:$0xff]
        %v407 = vld [vmem:[#allocation5 + $0x8] sm:$0xff]
        %v408 = vld [vmem:[#allocation5 + $0x10] sm:$0xff]
        %v409 = vld [vmem:[#allocation5 + $0x18] sm:$0xff]
        %v410 = vld [vmem:[#allocation5 + $0x20] sm:$0xff]
        %v411 = vld [vmem:[#allocation5 + $0x28] sm:$0xff]
        %v412 = vld [vmem:[#allocation5 + $0x30] sm:$0xff]
        %v413 = vld [vmem:[#allocation5 + $0x38] sm:$0xff]
        %v414 = vld [vmem:[#allocation5 + $0x40] sm:$0xff]
        %v415 = vld [vmem:[#allocation5 + $0x48] sm:$0xff]
        %v416 = vld [vmem:[#allocation5 + $0x50] sm:$0xff]
        %v417 = vld [vmem:[#allocation5 + $0x58] sm:$0xff]
        %v418 = vld [vmem:[#allocation5 + $0x60] sm:$0xff]
        %v419 = vld [vmem:[#allocation5 + $0x68] sm:$0xff]
        %v420 = vld [vmem:[#allocation5 + $0x70] sm:$0xff]
        %v421 = vld [vmem:[#allocation5 + $0x78] sm:$0xff]
        %v422 = vld [vmem:[#allocation5 + $0x80] sm:$0xff]
        %v423 = vld [vmem:[#allocation5 + $0x88] sm:$0xff]
        %v424 = vld [vmem:[#allocation5 + $0x90] sm:$0xff]
        %v425 = vld [vmem:[#allocation5 + $0x98] sm:$0xff]
        %v426 = vld [vmem:[#allocation5 + $0xa0] sm:$0xff]
        %v427 = vld [vmem:[#allocation5 + $0xa8] sm:$0xff]
        %v428 = vld [vmem:[#allocation5 + $0xb0] sm:$0xff]
        %v429 = vld [vmem:[#allocation5 + $0xb8] sm:$0xff]
        %v430 = vld [vmem:[#allocation5 + $0xc0] sm:$0xff]
        %v431 = vld [vmem:[#allocation5 + $0xc8] sm:$0xff]
        %v432 = vld [vmem:[#allocation5 + $0xd0] sm:$0xff]
        %v433 = vld [vmem:[#allocation5 + $0xd8] sm:$0xff]
        %v434 = vld [vmem:[#allocation5 + $0xe0] sm:$0xff]
        %v435 = vld [vmem:[#allocation5 + $0xe8] sm:$0xff]
        %v436 = vld [vmem:[#allocation5 + $0xf0] sm:$0xff]
        %v437 = vld [vmem:[#allocation5 + $0xf8] sm:$0xff]
        %v438 = vld [vmem:[#allocation8] sm:$0xf]
        %v440 = vperm.slane %v438, 0
        %v441 = vperm.slane %v438, 1
        %v442 = vperm.slane %v438, 2
        %v443 = vperm.slane %v438, 3
        %v480 = vunpack.c.l.b16 %v406
        %v481 = vunpack.c.h.b16 %v406
        %v482 = vunpack.c.l.b16 %v407
        %v483 = vunpack.c.h.b16 %v407
        %v484 = vunpack.c.l.b16 %v408
        %v485 = vunpack.c.h.b16 %v408
        %v486 = vunpack.c.l.b16 %v409
        %v487 = vunpack.c.h.b16 %v409
        %v488 = vunpack.c.l.b16 %v410
        %v489 = vunpack.c.h.b16 %v410
        %v490 = vunpack.c.l.b16 %v411
        %v491 = vunpack.c.h.b16 %v411
        %v492 = vunpack.c.l.b16 %v412
        %v493 = vunpack.c.h.b16 %v412
        %v494 = vunpack.c.l.b16 %v413
        %v495 = vunpack.c.h.b16 %v413
        %v496 = vunpack.c.l.b16 %v414
        %v497 = vunpack.c.h.b16 %v414
        %v498 = vunpack.c.l.b16 %v415
        %v499 = vunpack.c.h.b16 %v415
        %v500 = vunpack.c.l.b16 %v416
        %v501 = vunpack.c.h.b16 %v416
        %v502 = vunpack.c.l.b16 %v417
        %v503 = vunpack.c.h.b16 %v417
        %v504 = vunpack.c.l.b16 %v418
        %v505 = vunpack.c.h.b16 %v418
        %v506 = vunpack.c.l.b16 %v419
        %v507 = vunpack.c.h.b16 %v419
        %v508 = vunpack.c.l.b16 %v420
        %v509 = vunpack.c.h.b16 %v420
        %v510 = vunpack.c.l.b16 %v421
        %v511 = vunpack.c.h.b16 %v421
        %v512 = vunpack.c.l.b16 %v422
        %v513 = vunpack.c.h.b16 %v422
        %v514 = vunpack.c.l.b16 %v423
        %v515 = vunpack.c.h.b16 %v423
        %v516 = vunpack.c.l.b16 %v424
        %v517 = vunpack.c.h.b16 %v424
        %v518 = vunpack.c.l.b16 %v425
        %v519 = vunpack.c.h.b16 %v425
        %v520 = vunpack.c.l.b16 %v426
        %v521 = vunpack.c.h.b16 %v426
        %v522 = vunpack.c.l.b16 %v427
        %v523 = vunpack.c.h.b16 %v427
        %v524 = vunpack.c.l.b16 %v428
        %v525 = vunpack.c.h.b16 %v428
        %v526 = vunpack.c.l.b16 %v429
        %v527 = vunpack.c.h.b16 %v429
        %v528 = vunpack.c.l.b16 %v430
        %v529 = vunpack.c.h.b16 %v430
        %v530 = vunpack.c.l.b16 %v431
        %v531 = vunpack.c.h.b16 %v431
        %v532 = vunpack.c.l.b16 %v432
        %v533 = vunpack.c.h.b16 %v432
        %v534 = vunpack.c.l.b16 %v433
        %v535 = vunpack.c.h.b16 %v433
        %v536 = vunpack.c.l.b16 %v434
        %v537 = vunpack.c.h.b16 %v434
        %v538 = vunpack.c.l.b16 %v435
        %v539 = vunpack.c.h.b16 %v435
        %v540 = vunpack.c.l.b16 %v436
        %v541 = vunpack.c.h.b16 %v436
        %v542 = vunpack.c.l.b16 %v437
        %v543 = vunpack.c.h.b16 %v437
        %v544 = vpack.c.b16 %v484, %v480
        %v545 = vpack.c.b16 %v485, %v481
        %v546 = vpack.c.b16 %v486, %v482
        %v547 = vpack.c.b16 %v487, %v483
        %v548 = vpack.c.b16 %v492, %v488
        %v549 = vpack.c.b16 %v493, %v489
        %v550 = vpack.c.b16 %v494, %v490
        %v551 = vpack.c.b16 %v495, %v491
        %v552 = vpack.c.b16 %v500, %v496
        %v553 = vpack.c.b16 %v501, %v497
        %v554 = vpack.c.b16 %v502, %v498
        %v555 = vpack.c.b16 %v503, %v499
        %v556 = vpack.c.b16 %v508, %v504
        %v557 = vpack.c.b16 %v509, %v505
        %v558 = vpack.c.b16 %v510, %v506
        %v559 = vpack.c.b16 %v511, %v507
        %v560 = vpack.c.b16 %v516, %v512
        %v561 = vpack.c.b16 %v517, %v513
        %v562 = vpack.c.b16 %v518, %v514
        %v563 = vpack.c.b16 %v519, %v515
        %v564 = vpack.c.b16 %v524, %v520
        %v565 = vpack.c.b16 %v525, %v521
        %v566 = vpack.c.b16 %v526, %v522
        %v567 = vpack.c.b16 %v527, %v523
        %v568 = vpack.c.b16 %v532, %v528
        %v569 = vpack.c.b16 %v533, %v529
        %v570 = vpack.c.b16 %v534, %v530
        %v571 = vpack.c.b16 %v535, %v531
        %v572 = vpack.c.b16 %v540, %v536
        %v573 = vpack.c.b16 %v541, %v537
        %v574 = vpack.c.b16 %v542, %v538
        %v575 = vpack.c.b16 %v543, %v539
        %608 = vmatpush.bf16.msra.mxu0 %v572
        %609 = vmatpush.bf16.msra.mxu0 %v568
        %610 = vmatpush.bf16.msra.mxu0 %v564
        %611 = vmatpush.bf16.msra.mxu0 %v560
        %612 = vmatpush.bf16.msra.mxu0 %v556
        %613 = vmatpush.bf16.msra.mxu0 %v552
        %614 = vmatpush.bf16.msra.mxu0 %v548
        %615 = vmatpush.bf16.msra.mxu0 %v544
        %616 = vmatmul.bf16.gmra.mxu0 %v398
        %v617 = vpop.f32.mrf.mxu0
        %v618 = vadd.f32 %v440, %v617
        %v619 = vpop.f32.mrf.mxu0
        %v620 = vadd.f32 %v440, %v619
        %621 = vmatmul.bf16.gmra.mxu0 %v399
        %v622 = vpop.f32.mrf.mxu0
        %v623 = vadd.f32 %v440, %v622
        %v624 = vpop.f32.mrf.mxu0
        %v625 = vadd.f32 %v440, %v624
        %626 = vmatmul.bf16.gmra.mxu0 %v400
        %v627 = vpop.f32.mrf.mxu0
        %v628 = vadd.f32 %v440, %v627
        %v629 = vpop.f32.mrf.mxu0
        %v630 = vadd.f32 %v440, %v629
        %631 = vmatmul.bf16.gmra.mxu0 %v401
        %v632 = vpop.f32.mrf.mxu0
        %v633 = vadd.f32 %v440, %v632
        %v634 = vpop.f32.mrf.mxu0
        %v635 = vadd.f32 %v440, %v634
        %636 = vmatmul.bf16.gmra.mxu0 %v402
        %v637 = vpop.f32.mrf.mxu0
        %v638 = vadd.f32 %v440, %v637
        %v639 = vpop.f32.mrf.mxu0
        %v640 = vadd.f32 %v440, %v639
        %641 = vmatmul.bf16.gmra.mxu0 %v403
        %v642 = vpop.f32.mrf.mxu0
        %v643 = vadd.f32 %v440, %v642
        %v644 = vpop.f32.mrf.mxu0
        %v645 = vadd.f32 %v440, %v644
        %646 = vmatmul.bf16.gmra.mxu0 %v404
        %v647 = vpop.f32.mrf.mxu0
        %v648 = vadd.f32 %v440, %v647
        %v649 = vpop.f32.mrf.mxu0
        %v650 = vadd.f32 %v440, %v649
        %651 = vmatmul.bf16.gmra.mxu0 %v405
        %v652 = vpop.f32.mrf.mxu0
        %v653 = vadd.f32 %v440, %v652
        %v654 = vpop.f32.mrf.mxu0
        %v655 = vadd.f32 %v440, %v654
        %656 = vdwg.mxu0
        %657 = vmatpush.bf16.msra.mxu0 %v573
        %658 = vmatpush.bf16.msra.mxu0 %v569
        %659 = vmatpush.bf16.msra.mxu0 %v565
        %660 = vmatpush.bf16.msra.mxu0 %v561
        %661 = vmatpush.bf16.msra.mxu0 %v557
        %662 = vmatpush.bf16.msra.mxu0 %v553
        %663 = vmatpush.bf16.msra.mxu0 %v549
        %664 = vmatpush.bf16.msra.mxu0 %v545
        %665 = vmatmul.bf16.gmra.mxu0 %v398
        %v666 = vpop.f32.mrf.mxu0
        %v667 = vadd.f32 %v441, %v666
        %v668 = vpop.f32.mrf.mxu0
        %v669 = vadd.f32 %v441, %v668
        %670 = vmatmul.bf16.gmra.mxu0 %v399
        %v671 = vpop.f32.mrf.mxu0
        %v672 = vadd.f32 %v441, %v671
        %v673 = vpop.f32.mrf.mxu0
        %v674 = vadd.f32 %v441, %v673
        %675 = vmatmul.bf16.gmra.mxu0 %v400
        %v676 = vpop.f32.mrf.mxu0
        %v677 = vadd.f32 %v441, %v676
        %v678 = vpop.f32.mrf.mxu0
        %v679 = vadd.f32 %v441, %v678
        %680 = vmatmul.bf16.gmra.mxu0 %v401
        %v681 = vpop.f32.mrf.mxu0
        %v682 = vadd.f32 %v441, %v681
        %v683 = vpop.f32.mrf.mxu0
        %v684 = vadd.f32 %v441, %v683
        %685 = vmatmul.bf16.gmra.mxu0 %v402
        %v686 = vpop.f32.mrf.mxu0
        %v687 = vadd.f32 %v441, %v686
        %v688 = vpop.f32.mrf.mxu0
        %v689 = vadd.f32 %v441, %v688
        %690 = vmatmul.bf16.gmra.mxu0 %v403
        %v691 = vpop.f32.mrf.mxu0
        %v692 = vadd.f32 %v441, %v691
        %v693 = vpop.f32.mrf.mxu0
        %v694 = vadd.f32 %v441, %v693
        %695 = vmatmul.bf16.gmra.mxu0 %v404
        %v696 = vpop.f32.mrf.mxu0
        %v697 = vadd.f32 %v441, %v696
        %v698 = vpop.f32.mrf.mxu0
        %v699 = vadd.f32 %v441, %v698
        %700 = vmatmul.bf16.gmra.mxu0 %v405
        %v701 = vpop.f32.mrf.mxu0
        %v702 = vadd.f32 %v441, %v701
        %v703 = vpop.f32.mrf.mxu0
        %v704 = vadd.f32 %v441, %v703
        %705 = vdwg.mxu0
        %706 = vmatpush.bf16.msra.mxu0 %v574
        %707 = vmatpush.bf16.msra.mxu0 %v570
        %708 = vmatpush.bf16.msra.mxu0 %v566
        %709 = vmatpush.bf16.msra.mxu0 %v562
        %710 = vmatpush.bf16.msra.mxu0 %v558
        %711 = vmatpush.bf16.msra.mxu0 %v554
        %712 = vmatpush.bf16.msra.mxu0 %v550
        %713 = vmatpush.bf16.msra.mxu0 %v546
        %714 = vmatmul.bf16.gmra.mxu0 %v398
        %v715 = vpop.f32.mrf.mxu0
        %v716 = vadd.f32 %v442, %v715
        %v717 = vpop.f32.mrf.mxu0
        %v718 = vadd.f32 %v442, %v717
        %719 = vmatmul.bf16.gmra.mxu0 %v399
        %v720 = vpop.f32.mrf.mxu0
        %v721 = vadd.f32 %v442, %v720
        %v722 = vpop.f32.mrf.mxu0
        %v723 = vadd.f32 %v442, %v722
        %724 = vmatmul.bf16.gmra.mxu0 %v400
        %v725 = vpop.f32.mrf.mxu0
        %v726 = vadd.f32 %v442, %v725
        %v727 = vpop.f32.mrf.mxu0
        %v728 = vadd.f32 %v442, %v727
        %729 = vmatmul.bf16.gmra.mxu0 %v401
        %v730 = vpop.f32.mrf.mxu0
        %v731 = vadd.f32 %v442, %v730
        %v732 = vpop.f32.mrf.mxu0
        %v733 = vadd.f32 %v442, %v732
        %734 = vmatmul.bf16.gmra.mxu0 %v402
        %v735 = vpop.f32.mrf.mxu0
        %v736 = vadd.f32 %v442, %v735
        %v737 = vpop.f32.mrf.mxu0
        %v738 = vadd.f32 %v442, %v737
        %739 = vmatmul.bf16.gmra.mxu0 %v403
        %v740 = vpop.f32.mrf.mxu0
        %v741 = vadd.f32 %v442, %v740
        %v742 = vpop.f32.mrf.mxu0
        %v743 = vadd.f32 %v442, %v742
        %744 = vmatmul.bf16.gmra.mxu0 %v404
        %v745 = vpop.f32.mrf.mxu0
        %v746 = vadd.f32 %v442, %v745
        %v747 = vpop.f32.mrf.mxu0
        %v748 = vadd.f32 %v442, %v747
        %749 = vmatmul.bf16.gmra.mxu0 %v405
        %v750 = vpop.f32.mrf.mxu0
        %v751 = vadd.f32 %v442, %v750
        %v752 = vpop.f32.mrf.mxu0
        %v753 = vadd.f32 %v442, %v752
        %754 = vdwg.mxu0
        %755 = vmatpush.bf16.msra.mxu0 %v575
        %756 = vmatpush.bf16.msra.mxu0 %v571
        %757 = vmatpush.bf16.msra.mxu0 %v567
        %758 = vmatpush.bf16.msra.mxu0 %v563
        %759 = vmatpush.bf16.msra.mxu0 %v559
        %760 = vmatpush.bf16.msra.mxu0 %v555
        %761 = vmatpush.bf16.msra.mxu0 %v551
        %762 = vmatpush.bf16.msra.mxu0 %v547
        %763 = vmatmul.bf16.gmra.mxu0 %v398
        %v764 = vpop.f32.mrf.mxu0
        %v765 = vadd.f32 %v443, %v764
        %v766 = vpop.f32.mrf.mxu0
        %v767 = vadd.f32 %v443, %v766
        %768 = vmatmul.bf16.gmra.mxu0 %v399
        %v769 = vpop.f32.mrf.mxu0
        %v770 = vadd.f32 %v443, %v769
        %v771 = vpop.f32.mrf.mxu0
        %v772 = vadd.f32 %v443, %v771
        %773 = vmatmul.bf16.gmra.mxu0 %v400
        %v774 = vpop.f32.mrf.mxu0
        %v775 = vadd.f32 %v443, %v774
        %v776 = vpop.f32.mrf.mxu0
        %v777 = vadd.f32 %v443, %v776
        %778 = vmatmul.bf16.gmra.mxu0 %v401
        %v779 = vpop.f32.mrf.mxu0
        %v780 = vadd.f32 %v443, %v779
        %v781 = vpop.f32.mrf.mxu0
        %v782 = vadd.f32 %v443, %v781
        %783 = vmatmul.bf16.gmra.mxu0 %v402
        %v784 = vpop.f32.mrf.mxu0
        %v785 = vadd.f32 %v443, %v784
        %v786 = vpop.f32.mrf.mxu0
        %v787 = vadd.f32 %v443, %v786
        %788 = vmatmul.bf16.gmra.mxu0 %v403
        %v789 = vpop.f32.mrf.mxu0
        %v790 = vadd.f32 %v443, %v789
        %v791 = vpop.f32.mrf.mxu0
        %v792 = vadd.f32 %v443, %v791
        %793 = vmatmul.bf16.gmra.mxu0 %v404
        %v794 = vpop.f32.mrf.mxu0
        %v795 = vadd.f32 %v443, %v794
        %v796 = vpop.f32.mrf.mxu0
        %v797 = vadd.f32 %v443, %v796
        %798 = vmatmul.bf16.gmra.mxu0 %v405
        %v799 = vpop.f32.mrf.mxu0
        %v800 = vadd.f32 %v443, %v799
        %v801 = vpop.f32.mrf.mxu0
        %v802 = vadd.f32 %v443, %v801
        %803 = vdwg.mxu0
        %v804 = vld [vmem:[#allocation7] sm:$0xff]
        %v805 = vld [vmem:[#allocation7 + $0x8] sm:$0xff]
        %v806 = vld [vmem:[#allocation7 + $0x10] sm:$0xff]
        %v807 = vld [vmem:[#allocation7 + $0x18] sm:$0xff]
        %v808 = vld [vmem:[#allocation7 + $0x20] sm:$0xff]
        %v809 = vld [vmem:[#allocation7 + $0x28] sm:$0xff]
        %v810 = vld [vmem:[#allocation7 + $0x30] sm:$0xff]
        %v811 = vld [vmem:[#allocation7 + $0x38] sm:$0xff]
        %v812 = vld [vmem:[#allocation7 + $0x40] sm:$0xff]
        %v813 = vld [vmem:[#allocation7 + $0x48] sm:$0xff]
        %v814 = vld [vmem:[#allocation7 + $0x50] sm:$0xff]
        %v815 = vld [vmem:[#allocation7 + $0x58] sm:$0xff]
        %v816 = vld [vmem:[#allocation7 + $0x60] sm:$0xff]
        %v817 = vld [vmem:[#allocation7 + $0x68] sm:$0xff]
        %v818 = vld [vmem:[#allocation7 + $0x70] sm:$0xff]
        %v819 = vld [vmem:[#allocation7 + $0x78] sm:$0xff]
        %v820 = vld [vmem:[#allocation7 + $0x80] sm:$0xff]
        %v821 = vld [vmem:[#allocation7 + $0x88] sm:$0xff]
        %v822 = vld [vmem:[#allocation7 + $0x90] sm:$0xff]
        %v823 = vld [vmem:[#allocation7 + $0x98] sm:$0xff]
        %v824 = vld [vmem:[#allocation7 + $0xa0] sm:$0xff]
        %v825 = vld [vmem:[#allocation7 + $0xa8] sm:$0xff]
        %v826 = vld [vmem:[#allocation7 + $0xb0] sm:$0xff]
        %v827 = vld [vmem:[#allocation7 + $0xb8] sm:$0xff]
        %v828 = vld [vmem:[#allocation7 + $0xc0] sm:$0xff]
        %v829 = vld [vmem:[#allocation7 + $0xc8] sm:$0xff]
        %v830 = vld [vmem:[#allocation7 + $0xd0] sm:$0xff]
        %v831 = vld [vmem:[#allocation7 + $0xd8] sm:$0xff]
        %v832 = vld [vmem:[#allocation7 + $0xe0] sm:$0xff]
        %v833 = vld [vmem:[#allocation7 + $0xe8] sm:$0xff]
        %v834 = vld [vmem:[#allocation7 + $0xf0] sm:$0xff]
        %v835 = vld [vmem:[#allocation7 + $0xf8] sm:$0xff]
        %v836 = vld [vmem:[#allocation10] sm:$0xf]
        %v838 = vperm.slane %v836, 0
        %v839 = vperm.slane %v836, 1
        %v840 = vperm.slane %v836, 2
        %v841 = vperm.slane %v836, 3
        %v878 = vunpack.c.l.b16 %v804
        %v879 = vunpack.c.h.b16 %v804
        %v880 = vunpack.c.l.b16 %v805
        %v881 = vunpack.c.h.b16 %v805
        %v882 = vunpack.c.l.b16 %v806
        %v883 = vunpack.c.h.b16 %v806
        %v884 = vunpack.c.l.b16 %v807
        %v885 = vunpack.c.h.b16 %v807
        %v886 = vunpack.c.l.b16 %v808
        %v887 = vunpack.c.h.b16 %v808
        %v888 = vunpack.c.l.b16 %v809
        %v889 = vunpack.c.h.b16 %v809
        %v890 = vunpack.c.l.b16 %v810
        %v891 = vunpack.c.h.b16 %v810
        %v892 = vunpack.c.l.b16 %v811
        %v893 = vunpack.c.h.b16 %v811
        %v894 = vunpack.c.l.b16 %v812
        %v895 = vunpack.c.h.b16 %v812
        %v896 = vunpack.c.l.b16 %v813
        %v897 = vunpack.c.h.b16 %v813
        %v898 = vunpack.c.l.b16 %v814
        %v899 = vunpack.c.h.b16 %v814
        %v900 = vunpack.c.l.b16 %v815
        %v901 = vunpack.c.h.b16 %v815
        %v902 = vunpack.c.l.b16 %v816
        %v903 = vunpack.c.h.b16 %v816
        %v904 = vunpack.c.l.b16 %v817
        %v905 = vunpack.c.h.b16 %v817
        %v906 = vunpack.c.l.b16 %v818
        %v907 = vunpack.c.h.b16 %v818
        %v908 = vunpack.c.l.b16 %v819
        %v909 = vunpack.c.h.b16 %v819
        %v910 = vunpack.c.l.b16 %v820
        %v911 = vunpack.c.h.b16 %v820
        %v912 = vunpack.c.l.b16 %v821
        %v913 = vunpack.c.h.b16 %v821
        %v914 = vunpack.c.l.b16 %v822
        %v915 = vunpack.c.h.b16 %v822
        %v916 = vunpack.c.l.b16 %v823
        %v917 = vunpack.c.h.b16 %v823
        %v918 = vunpack.c.l.b16 %v824
        %v919 = vunpack.c.h.b16 %v824
        %v920 = vunpack.c.l.b16 %v825
        %v921 = vunpack.c.h.b16 %v825
        %v922 = vunpack.c.l.b16 %v826
        %v923 = vunpack.c.h.b16 %v826
        %v924 = vunpack.c.l.b16 %v827
        %v925 = vunpack.c.h.b16 %v827
        %v926 = vunpack.c.l.b16 %v828
        %v927 = vunpack.c.h.b16 %v828
        %v928 = vunpack.c.l.b16 %v829
        %v929 = vunpack.c.h.b16 %v829
        %v930 = vunpack.c.l.b16 %v830
        %v931 = vunpack.c.h.b16 %v830
        %v932 = vunpack.c.l.b16 %v831
        %v933 = vunpack.c.h.b16 %v831
        %v934 = vunpack.c.l.b16 %v832
        %v935 = vunpack.c.h.b16 %v832
        %v936 = vunpack.c.l.b16 %v833
        %v937 = vunpack.c.h.b16 %v833
        %v938 = vunpack.c.l.b16 %v834
        %v939 = vunpack.c.h.b16 %v834
        %v940 = vunpack.c.l.b16 %v835
        %v941 = vunpack.c.h.b16 %v835
        %v942 = vpack.c.b16 %v882, %v878
        %v943 = vpack.c.b16 %v883, %v879
        %v944 = vpack.c.b16 %v884, %v880
        %v945 = vpack.c.b16 %v885, %v881
        %v946 = vpack.c.b16 %v890, %v886
        %v947 = vpack.c.b16 %v891, %v887
        %v948 = vpack.c.b16 %v892, %v888
        %v949 = vpack.c.b16 %v893, %v889
        %v950 = vpack.c.b16 %v898, %v894
        %v951 = vpack.c.b16 %v899, %v895
        %v952 = vpack.c.b16 %v900, %v896
        %v953 = vpack.c.b16 %v901, %v897
        %v954 = vpack.c.b16 %v906, %v902
        %v955 = vpack.c.b16 %v907, %v903
        %v956 = vpack.c.b16 %v908, %v904
        %v957 = vpack.c.b16 %v909, %v905
        %v958 = vpack.c.b16 %v914, %v910
        %v959 = vpack.c.b16 %v915, %v911
        %v960 = vpack.c.b16 %v916, %v912
        %v961 = vpack.c.b16 %v917, %v913
        %v962 = vpack.c.b16 %v922, %v918
        %v963 = vpack.c.b16 %v923, %v919
        %v964 = vpack.c.b16 %v924, %v920
        %v965 = vpack.c.b16 %v925, %v921
        %v966 = vpack.c.b16 %v930, %v926
        %v967 = vpack.c.b16 %v931, %v927
        %v968 = vpack.c.b16 %v932, %v928
        %v969 = vpack.c.b16 %v933, %v929
        %v970 = vpack.c.b16 %v938, %v934
        %v971 = vpack.c.b16 %v939, %v935
        %v972 = vpack.c.b16 %v940, %v936
        %v973 = vpack.c.b16 %v941, %v937
        %1006 = vmatpush.bf16.msra.mxu0 %v970
        %1007 = vmatpush.bf16.msra.mxu0 %v966
        %1008 = vmatpush.bf16.msra.mxu0 %v962
        %1009 = vmatpush.bf16.msra.mxu0 %v958
        %1010 = vmatpush.bf16.msra.mxu0 %v954
        %1011 = vmatpush.bf16.msra.mxu0 %v950
        %1012 = vmatpush.bf16.msra.mxu0 %v946
        %1013 = vmatpush.bf16.msra.mxu0 %v942
        %1014 = vmatmul.bf16.gmra.mxu0 %v398
        %v1015 = vpop.f32.mrf.mxu0
        %v1016 = vadd.f32 %v838, %v1015
        %v1017 = vpop.f32.mrf.mxu0
        %v1018 = vadd.f32 %v838, %v1017
        %1019 = vmatmul.bf16.gmra.mxu0 %v399
        %v1020 = vpop.f32.mrf.mxu0
        %v1021 = vadd.f32 %v838, %v1020
        %v1022 = vpop.f32.mrf.mxu0
        %v1023 = vadd.f32 %v838, %v1022
        %1024 = vmatmul.bf16.gmra.mxu0 %v400
        %v1025 = vpop.f32.mrf.mxu0
        %v1026 = vadd.f32 %v838, %v1025
        %v1027 = vpop.f32.mrf.mxu0
        %v1028 = vadd.f32 %v838, %v1027
        %1029 = vmatmul.bf16.gmra.mxu0 %v401
        %v1030 = vpop.f32.mrf.mxu0
        %v1031 = vadd.f32 %v838, %v1030
        %v1032 = vpop.f32.mrf.mxu0
        %v1033 = vadd.f32 %v838, %v1032
        %1034 = vmatmul.bf16.gmra.mxu0 %v402
        %v1035 = vpop.f32.mrf.mxu0
        %v1036 = vadd.f32 %v838, %v1035
        %v1037 = vpop.f32.mrf.mxu0
        %v1038 = vadd.f32 %v838, %v1037
        %1039 = vmatmul.bf16.gmra.mxu0 %v403
        %v1040 = vpop.f32.mrf.mxu0
        %v1041 = vadd.f32 %v838, %v1040
        %v1042 = vpop.f32.mrf.mxu0
        %v1043 = vadd.f32 %v838, %v1042
        %1044 = vmatmul.bf16.gmra.mxu0 %v404
        %v1045 = vpop.f32.mrf.mxu0
        %v1046 = vadd.f32 %v838, %v1045
        %v1047 = vpop.f32.mrf.mxu0
        %v1048 = vadd.f32 %v838, %v1047
        %1049 = vmatmul.bf16.gmra.mxu0 %v405
        %v1050 = vpop.f32.mrf.mxu0
        %v1051 = vadd.f32 %v838, %v1050
        %v1052 = vpop.f32.mrf.mxu0
        %v1053 = vadd.f32 %v838, %v1052
        %1054 = vdwg.mxu0
        %1055 = vmatpush.bf16.msra.mxu0 %v971
        %1056 = vmatpush.bf16.msra.mxu0 %v967
        %1057 = vmatpush.bf16.msra.mxu0 %v963
        %1058 = vmatpush.bf16.msra.mxu0 %v959
        %1059 = vmatpush.bf16.msra.mxu0 %v955
        %1060 = vmatpush.bf16.msra.mxu0 %v951
        %1061 = vmatpush.bf16.msra.mxu0 %v947
        %1062 = vmatpush.bf16.msra.mxu0 %v943
        %1063 = vmatmul.bf16.gmra.mxu0 %v398
        %v1064 = vpop.f32.mrf.mxu0
        %v1065 = vadd.f32 %v839, %v1064
        %v1066 = vpop.f32.mrf.mxu0
        %v1067 = vadd.f32 %v839, %v1066
        %1068 = vmatmul.bf16.gmra.mxu0 %v399
        %v1069 = vpop.f32.mrf.mxu0
        %v1070 = vadd.f32 %v839, %v1069
        %v1071 = vpop.f32.mrf.mxu0
        %v1072 = vadd.f32 %v839, %v1071
        %1073 = vmatmul.bf16.gmra.mxu0 %v400
        %v1074 = vpop.f32.mrf.mxu0
        %v1075 = vadd.f32 %v839, %v1074
        %v1076 = vpop.f32.mrf.mxu0
        %v1077 = vadd.f32 %v839, %v1076
        %1078 = vmatmul.bf16.gmra.mxu0 %v401
        %v1079 = vpop.f32.mrf.mxu0
        %v1080 = vadd.f32 %v839, %v1079
        %v1081 = vpop.f32.mrf.mxu0
        %v1082 = vadd.f32 %v839, %v1081
        %1083 = vmatmul.bf16.gmra.mxu0 %v402
        %v1084 = vpop.f32.mrf.mxu0
        %v1085 = vadd.f32 %v839, %v1084
        %v1086 = vpop.f32.mrf.mxu0
        %v1087 = vadd.f32 %v839, %v1086
        %1088 = vmatmul.bf16.gmra.mxu0 %v403
        %v1089 = vpop.f32.mrf.mxu0
        %v1090 = vadd.f32 %v839, %v1089
        %v1091 = vpop.f32.mrf.mxu0
        %v1092 = vadd.f32 %v839, %v1091
        %1093 = vmatmul.bf16.gmra.mxu0 %v404
        %v1094 = vpop.f32.mrf.mxu0
        %v1095 = vadd.f32 %v839, %v1094
        %v1096 = vpop.f32.mrf.mxu0
        %v1097 = vadd.f32 %v839, %v1096
        %1098 = vmatmul.bf16.gmra.mxu0 %v405
        %v1099 = vpop.f32.mrf.mxu0
        %v1100 = vadd.f32 %v839, %v1099
        %v1101 = vpop.f32.mrf.mxu0
        %v1102 = vadd.f32 %v839, %v1101
        %1103 = vdwg.mxu0
        %1104 = vmatpush.bf16.msra.mxu0 %v972
        %1105 = vmatpush.bf16.msra.mxu0 %v968
        %1106 = vmatpush.bf16.msra.mxu0 %v964
        %1107 = vmatpush.bf16.msra.mxu0 %v960
        %1108 = vmatpush.bf16.msra.mxu0 %v956
        %1109 = vmatpush.bf16.msra.mxu0 %v952
        %1110 = vmatpush.bf16.msra.mxu0 %v948
        %1111 = vmatpush.bf16.msra.mxu0 %v944
        %1112 = vmatmul.bf16.gmra.mxu0 %v398
        %v1113 = vpop.f32.mrf.mxu0
        %v1114 = vadd.f32 %v840, %v1113
        %v1115 = vpop.f32.mrf.mxu0
        %v1116 = vadd.f32 %v840, %v1115
        %1117 = vmatmul.bf16.gmra.mxu0 %v399
        %v1118 = vpop.f32.mrf.mxu0
        %v1119 = vadd.f32 %v840, %v1118
        %v1120 = vpop.f32.mrf.mxu0
        %v1121 = vadd.f32 %v840, %v1120
        %1122 = vmatmul.bf16.gmra.mxu0 %v400
        %v1123 = vpop.f32.mrf.mxu0
        %v1124 = vadd.f32 %v840, %v1123
        %v1125 = vpop.f32.mrf.mxu0
        %v1126 = vadd.f32 %v840, %v1125
        %1127 = vmatmul.bf16.gmra.mxu0 %v401
        %v1128 = vpop.f32.mrf.mxu0
        %v1129 = vadd.f32 %v840, %v1128
        %v1130 = vpop.f32.mrf.mxu0
        %v1131 = vadd.f32 %v840, %v1130
        %1132 = vmatmul.bf16.gmra.mxu0 %v402
        %v1133 = vpop.f32.mrf.mxu0
        %v1134 = vadd.f32 %v840, %v1133
        %v1135 = vpop.f32.mrf.mxu0
        %v1136 = vadd.f32 %v840, %v1135
        %1137 = vmatmul.bf16.gmra.mxu0 %v403
        %v1138 = vpop.f32.mrf.mxu0
        %v1139 = vadd.f32 %v840, %v1138
        %v1140 = vpop.f32.mrf.mxu0
        %v1141 = vadd.f32 %v840, %v1140
        %1142 = vmatmul.bf16.gmra.mxu0 %v404
        %v1143 = vpop.f32.mrf.mxu0
        %v1144 = vadd.f32 %v840, %v1143
        %v1145 = vpop.f32.mrf.mxu0
        %v1146 = vadd.f32 %v840, %v1145
        %1147 = vmatmul.bf16.gmra.mxu0 %v405
        %v1148 = vpop.f32.mrf.mxu0
        %v1149 = vadd.f32 %v840, %v1148
        %v1150 = vpop.f32.mrf.mxu0
        %v1151 = vadd.f32 %v840, %v1150
        %1152 = vdwg.mxu0
        %1153 = vmatpush.bf16.msra.mxu0 %v973
        %1154 = vmatpush.bf16.msra.mxu0 %v969
        %1155 = vmatpush.bf16.msra.mxu0 %v965
        %1156 = vmatpush.bf16.msra.mxu0 %v961
        %1157 = vmatpush.bf16.msra.mxu0 %v957
        %1158 = vmatpush.bf16.msra.mxu0 %v953
        %1159 = vmatpush.bf16.msra.mxu0 %v949
        %1160 = vmatpush.bf16.msra.mxu0 %v945
        %1161 = vmatmul.bf16.gmra.mxu0 %v398
        %v1162 = vpop.f32.mrf.mxu0
        %v1163 = vadd.f32 %v841, %v1162
        %v1164 = vpop.f32.mrf.mxu0
        %v1165 = vadd.f32 %v841, %v1164
        %1166 = vmatmul.bf16.gmra.mxu0 %v399
        %v1167 = vpop.f32.mrf.mxu0
        %v1168 = vadd.f32 %v841, %v1167
        %v1169 = vpop.f32.mrf.mxu0
        %v1170 = vadd.f32 %v841, %v1169
        %1171 = vmatmul.bf16.gmra.mxu0 %v400
        %v1172 = vpop.f32.mrf.mxu0
        %v1173 = vadd.f32 %v841, %v1172
        %v1174 = vpop.f32.mrf.mxu0
        %v1175 = vadd.f32 %v841, %v1174
        %1176 = vmatmul.bf16.gmra.mxu0 %v401
        %v1177 = vpop.f32.mrf.mxu0
        %v1178 = vadd.f32 %v841, %v1177
        %v1179 = vpop.f32.mrf.mxu0
        %v1180 = vadd.f32 %v841, %v1179
        %1181 = vmatmul.bf16.gmra.mxu0 %v402
        %v1182 = vpop.f32.mrf.mxu0
        %v1183 = vadd.f32 %v841, %v1182
        %v1184 = vpop.f32.mrf.mxu0
        %v1185 = vadd.f32 %v841, %v1184
        %1186 = vmatmul.bf16.gmra.mxu0 %v403
        %v1187 = vpop.f32.mrf.mxu0
        %v1188 = vadd.f32 %v841, %v1187
        %v1189 = vpop.f32.mrf.mxu0
        %v1190 = vadd.f32 %v841, %v1189
        %1191 = vmatmul.bf16.gmra.mxu0 %v404
        %v1192 = vpop.f32.mrf.mxu0
        %v1193 = vadd.f32 %v841, %v1192
        %v1194 = vpop.f32.mrf.mxu0
        %v1195 = vadd.f32 %v841, %v1194
        %1196 = vmatmul.bf16.gmra.mxu0 %v405
        %v1197 = vpop.f32.mrf.mxu0
        %v1198 = vadd.f32 %v841, %v1197
        %v1199 = vpop.f32.mrf.mxu0
        %v1200 = vadd.f32 %v841, %v1199
        %1201 = vdwg.mxu0
        %v1202 = vmul.f32 %v1016, 0.5
        %v1203 = vmul.f32 %v1065, 0.5
        %v1204 = vmul.f32 %v1114, 0.5
        %v1205 = vmul.f32 %v1163, 0.5
        %v1206 = vmul.f32 %v1018, 0.5
        %v1207 = vmul.f32 %v1067, 0.5
        %v1208 = vmul.f32 %v1116, 0.5
        %v1209 = vmul.f32 %v1165, 0.5
        %v1210 = vmul.f32 %v1021, 0.5
        %v1211 = vmul.f32 %v1070, 0.5
        %v1212 = vmul.f32 %v1119, 0.5
        %v1213 = vmul.f32 %v1168, 0.5
        %v1214 = vmul.f32 %v1023, 0.5
        %v1215 = vmul.f32 %v1072, 0.5
        %v1216 = vmul.f32 %v1121, 0.5
        %v1217 = vmul.f32 %v1170, 0.5
        %v1218 = vmul.f32 %v1026, 0.5
        %v1219 = vmul.f32 %v1075, 0.5
        %v1220 = vmul.f32 %v1124, 0.5
        %v1221 = vmul.f32 %v1173, 0.5
        %v1222 = vmul.f32 %v1028, 0.5
        %v1223 = vmul.f32 %v1077, 0.5
        %v1224 = vmul.f32 %v1126, 0.5
        %v1225 = vmul.f32 %v1175, 0.5
        %v1226 = vmul.f32 %v1031, 0.5
        %v1227 = vmul.f32 %v1080, 0.5
        %v1228 = vmul.f32 %v1129, 0.5
        %v1229 = vmul.f32 %v1178, 0.5
        %v1230 = vmul.f32 %v1033, 0.5
        %v1231 = vmul.f32 %v1082, 0.5
        %v1232 = vmul.f32 %v1131, 0.5
        %v1233 = vmul.f32 %v1180, 0.5
        %v1234 = vmul.f32 %v1036, 0.5
        %v1235 = vmul.f32 %v1085, 0.5
        %v1236 = vmul.f32 %v1134, 0.5
        %v1237 = vmul.f32 %v1183, 0.5
        %v1238 = vmul.f32 %v1038, 0.5
        %v1239 = vmul.f32 %v1087, 0.5
        %v1240 = vmul.f32 %v1136, 0.5
        %v1241 = vmul.f32 %v1185, 0.5
        %v1242 = vmul.f32 %v1041, 0.5
        %v1243 = vmul.f32 %v1090, 0.5
        %v1244 = vmul.f32 %v1139, 0.5
        %v1245 = vmul.f32 %v1188, 0.5
        %v1246 = vmul.f32 %v1043, 0.5
        %v1247 = vmul.f32 %v1092, 0.5
        %v1248 = vmul.f32 %v1141, 0.5
        %v1249 = vmul.f32 %v1190, 0.5
        %v1250 = vmul.f32 %v1046, 0.5
        %v1251 = vmul.f32 %v1095, 0.5
        %v1252 = vmul.f32 %v1144, 0.5
        %v1253 = vmul.f32 %v1193, 0.5
        %v1254 = vmul.f32 %v1048, 0.5
        %v1255 = vmul.f32 %v1097, 0.5
        %v1256 = vmul.f32 %v1146, 0.5
        %v1257 = vmul.f32 %v1195, 0.5
        %v1258 = vmul.f32 %v1051, 0.5
        %v1259 = vmul.f32 %v1100, 0.5
        %v1260 = vmul.f32 %v1149, 0.5
        %v1261 = vmul.f32 %v1198, 0.5
        %v1262 = vmul.f32 %v1053, 0.5
        %v1263 = vmul.f32 %v1102, 0.5
        %v1264 = vmul.f32 %v1151, 0.5
        %v1265 = vmul.f32 %v1200, 0.5
        %v1266 = vmul.f32 %v1016, 0.70710677
        %v1267 = vmul.f32 %v1065, 0.70710677
        %v1268 = vmul.f32 %v1114, 0.70710677
        %v1269 = vmul.f32 %v1163, 0.70710677
        %v1270 = vmul.f32 %v1018, 0.70710677
        %v1271 = vmul.f32 %v1067, 0.70710677
        %v1272 = vmul.f32 %v1116, 0.70710677
        %v1273 = vmul.f32 %v1165, 0.70710677
        %v1274 = vmul.f32 %v1021, 0.70710677
        %v1275 = vmul.f32 %v1070, 0.70710677
        %v1276 = vmul.f32 %v1119, 0.70710677
        %v1277 = vmul.f32 %v1168, 0.70710677
        %v1278 = vmul.f32 %v1023, 0.70710677
        %v1279 = vmul.f32 %v1072, 0.70710677
        %v1280 = vmul.f32 %v1121, 0.70710677
        %v1281 = vmul.f32 %v1170, 0.70710677
        %v1282 = vmul.f32 %v1026, 0.70710677
        %v1283 = vmul.f32 %v1075, 0.70710677
        %v1284 = vmul.f32 %v1124, 0.70710677
        %v1285 = vmul.f32 %v1173, 0.70710677
        %v1286 = vmul.f32 %v1028, 0.70710677
        %v1287 = vmul.f32 %v1077, 0.70710677
        %v1288 = vmul.f32 %v1126, 0.70710677
        %v1289 = vmul.f32 %v1175, 0.70710677
        %v1290 = vmul.f32 %v1031, 0.70710677
        %v1291 = vmul.f32 %v1080, 0.70710677
        %v1292 = vmul.f32 %v1129, 0.70710677
        %v1293 = vmul.f32 %v1178, 0.70710677
        %v1294 = vmul.f32 %v1033, 0.70710677
        %v1295 = vmul.f32 %v1082, 0.70710677
        %v1296 = vmul.f32 %v1131, 0.70710677
        %v1297 = vmul.f32 %v1180, 0.70710677
        %v1298 = vmul.f32 %v1036, 0.70710677
        %v1299 = vmul.f32 %v1085, 0.70710677
        %v1300 = vmul.f32 %v1134, 0.70710677
        %v1301 = vmul.f32 %v1183, 0.70710677
        %v1302 = vmul.f32 %v1038, 0.70710677
        %v1303 = vmul.f32 %v1087, 0.70710677
        %v1304 = vmul.f32 %v1136, 0.70710677
        %v1305 = vmul.f32 %v1185, 0.70710677
        %v1306 = vmul.f32 %v1041, 0.70710677
        %v1307 = vmul.f32 %v1090, 0.70710677
        %v1308 = vmul.f32 %v1139, 0.70710677
        %v1309 = vmul.f32 %v1188, 0.70710677
        %v1310 = vmul.f32 %v1043, 0.70710677
        %v1311 = vmul.f32 %v1092, 0.70710677
        %v1312 = vmul.f32 %v1141, 0.70710677
        %v1313 = vmul.f32 %v1190, 0.70710677
        %v1314 = vmul.f32 %v1046, 0.70710677
        %v1315 = vmul.f32 %v1095, 0.70710677
        %v1316 = vmul.f32 %v1144, 0.70710677
        %v1317 = vmul.f32 %v1193, 0.70710677
        %v1318 = vmul.f32 %v1048, 0.70710677
        %v1319 = vmul.f32 %v1097, 0.70710677
        %v1320 = vmul.f32 %v1146, 0.70710677
        %v1321 = vmul.f32 %v1195, 0.70710677
        %v1322 = vmul.f32 %v1051, 0.70710677
        %v1323 = vmul.f32 %v1100, 0.70710677
        %v1324 = vmul.f32 %v1149, 0.70710677
        %v1325 = vmul.f32 %v1198, 0.70710677
        %v1326 = vmul.f32 %v1053, 0.70710677
        %v1327 = vmul.f32 %v1102, 0.70710677
        %v1328 = vmul.f32 %v1151, 0.70710677
        %v1329 = vmul.f32 %v1200, 0.70710677
        %v1330 = vmul.f32 %v1266, %v1266
        %v1331 = vmin.f32 16.0, %v1330
        %v1332 = vmul.f32 %v1331, 2.1237322e-06
        %v1333 = vadd.f32 %v1332, 0.00028619796
        %v1334 = vmul.f32 %v1331, %v1333
        %v1335 = vadd.f32 %v1334, 0.0036580483
        %v1336 = vmul.f32 %v1331, %v1335
        %v1337 = vadd.f32 %v1336, 0.05243302
        %v1338 = vmul.f32 %v1331, %v1337
        %v1339 = vadd.f32 %v1338, 0.18741608
        %v1340 = vmul.f32 %v1331, %v1339
        %v1341 = vadd.f32 %v1340, 1.1283791
        %v1342 = vmul.f32 %v1266, %v1341
        %v1343 = vmul.f32 %v1331, 3.8918573e-05
        %v1344 = vadd.f32 %v1343, 0.001143296
        %v1345 = vmul.f32 %v1331, %v1344
        %v1346 = vadd.f32 %v1345, 0.014752088
        %v1347 = vmul.f32 %v1331, %v1346
        %v1348 = vadd.f32 %v1347, 0.112945676
        %v1349 = vmul.f32 %v1331, %v1348
        %v1350 = vadd.f32 %v1349, 0.4994258
        %v1351 = vmul.f32 %v1331, %v1350
        %v1352 = vadd.f32 %v1351, 1.0
        %v1353 = vrcp.pop %v1352
        %v1354 = vmul.f32 %v1352, %v1353
        %v1355 = vsub.f32 1.0, %v1354
        %v1356 = vmul.f32 %v1353, %v1355
        %v1357 = vadd.f32 %v1353, %v1356
        %vm1358 = vweird.f32 %v1352
        %vm1359 = vweird.f32 %v1353
        %vm1360 = vmor %vm1358, %vm1359
        %v1361 = vsel %vm1360, %v1353, %v1357
        %v1362 = vand.u32 2147483647, %v1352
        %vm1363 = vcmp.eq.f32.partialorder %v1362, 8.507059e+37
        %v1364 = vand.u32 %v1352, 2147483648
        %v1365 = vor.u32 1.1754944e-38, %v1364
        %v1366 = vsel %vm1363, %v1365, %v1361
        %v1367 = vmul.f32 %v1342, %v1366
        %v1368 = vmin.f32 %v1367, 1.0
        %v1369 = vmax.f32 %v1368, -1.0
        %v1370 = vmul.f32 %v1267, %v1267
        %v1371 = vmin.f32 16.0, %v1370
        %v1372 = vmul.f32 %v1371, 2.1237322e-06
        %v1373 = vadd.f32 %v1372, 0.00028619796
        %v1374 = vmul.f32 %v1371, %v1373
        %v1375 = vadd.f32 %v1374, 0.0036580483
        %v1376 = vmul.f32 %v1371, %v1375
        %v1377 = vadd.f32 %v1376, 0.05243302
        %v1378 = vmul.f32 %v1371, %v1377
        %v1379 = vadd.f32 %v1378, 0.18741608
        %v1380 = vmul.f32 %v1371, %v1379
        %v1381 = vadd.f32 %v1380, 1.1283791
        %v1382 = vmul.f32 %v1267, %v1381
        %v1383 = vmul.f32 %v1371, 3.8918573e-05
        %v1384 = vadd.f32 %v1383, 0.001143296
        %v1385 = vmul.f32 %v1371, %v1384
        %v1386 = vadd.f32 %v1385, 0.014752088
        %v1387 = vmul.f32 %v1371, %v1386
        %v1388 = vadd.f32 %v1387, 0.112945676
        %v1389 = vmul.f32 %v1371, %v1388
        %v1390 = vadd.f32 %v1389, 0.4994258
        %v1391 = vmul.f32 %v1371, %v1390
        %v1392 = vadd.f32 %v1391, 1.0
        %v1393 = vrcp.pop %v1392
        %v1394 = vmul.f32 %v1392, %v1393
        %v1395 = vsub.f32 1.0, %v1394
        %v1396 = vmul.f32 %v1393, %v1395
        %v1397 = vadd.f32 %v1393, %v1396
        %vm1398 = vweird.f32 %v1392
        %vm1399 = vweird.f32 %v1393
        %vm1400 = vmor %vm1398, %vm1399
        %v1401 = vsel %vm1400, %v1393, %v1397
        %v1402 = vand.u32 2147483647, %v1392
        %vm1403 = vcmp.eq.f32.partialorder %v1402, 8.507059e+37
        %v1404 = vand.u32 %v1392, 2147483648
        %v1405 = vor.u32 1.1754944e-38, %v1404
        %v1406 = vsel %vm1403, %v1405, %v1401
        %v1407 = vmul.f32 %v1382, %v1406
        %v1408 = vmin.f32 %v1407, 1.0
        %v1409 = vmax.f32 %v1408, -1.0
        %v1410 = vmul.f32 %v1268, %v1268
        %v1411 = vmin.f32 16.0, %v1410
        %v1412 = vmul.f32 %v1411, 2.1237322e-06
        %v1413 = vadd.f32 %v1412, 0.00028619796
        %v1414 = vmul.f32 %v1411, %v1413
        %v1415 = vadd.f32 %v1414, 0.0036580483
        %v1416 = vmul.f32 %v1411, %v1415
        %v1417 = vadd.f32 %v1416, 0.05243302
        %v1418 = vmul.f32 %v1411, %v1417
        %v1419 = vadd.f32 %v1418, 0.18741608
        %v1420 = vmul.f32 %v1411, %v1419
        %v1421 = vadd.f32 %v1420, 1.1283791
        %v1422 = vmul.f32 %v1268, %v1421
        %v1423 = vmul.f32 %v1411, 3.8918573e-05
        %v1424 = vadd.f32 %v1423, 0.001143296
        %v1425 = vmul.f32 %v1411, %v1424
        %v1426 = vadd.f32 %v1425, 0.014752088
        %v1427 = vmul.f32 %v1411, %v1426
        %v1428 = vadd.f32 %v1427, 0.112945676
        %v1429 = vmul.f32 %v1411, %v1428
        %v1430 = vadd.f32 %v1429, 0.4994258
        %v1431 = vmul.f32 %v1411, %v1430
        %v1432 = vadd.f32 %v1431, 1.0
        %v1433 = vrcp.pop %v1432
        %v1434 = vmul.f32 %v1432, %v1433
        %v1435 = vsub.f32 1.0, %v1434
        %v1436 = vmul.f32 %v1433, %v1435
        %v1437 = vadd.f32 %v1433, %v1436
        %vm1438 = vweird.f32 %v1432
        %vm1439 = vweird.f32 %v1433
        %vm1440 = vmor %vm1438, %vm1439
        %v1441 = vsel %vm1440, %v1433, %v1437
        %v1442 = vand.u32 2147483647, %v1432
        %vm1443 = vcmp.eq.f32.partialorder %v1442, 8.507059e+37
        %v1444 = vand.u32 %v1432, 2147483648
        %v1445 = vor.u32 1.1754944e-38, %v1444
        %v1446 = vsel %vm1443, %v1445, %v1441
        %v1447 = vmul.f32 %v1422, %v1446
        %v1448 = vmin.f32 %v1447, 1.0
        %v1449 = vmax.f32 %v1448, -1.0
        %v1450 = vmul.f32 %v1269, %v1269
        %v1451 = vmin.f32 16.0, %v1450
        %v1452 = vmul.f32 %v1451, 2.1237322e-06
        %v1453 = vadd.f32 %v1452, 0.00028619796
        %v1454 = vmul.f32 %v1451, %v1453
        %v1455 = vadd.f32 %v1454, 0.0036580483
        %v1456 = vmul.f32 %v1451, %v1455
        %v1457 = vadd.f32 %v1456, 0.05243302
        %v1458 = vmul.f32 %v1451, %v1457
        %v1459 = vadd.f32 %v1458, 0.18741608
        %v1460 = vmul.f32 %v1451, %v1459
        %v1461 = vadd.f32 %v1460, 1.1283791
        %v1462 = vmul.f32 %v1269, %v1461
        %v1463 = vmul.f32 %v1451, 3.8918573e-05
        %v1464 = vadd.f32 %v1463, 0.001143296
        %v1465 = vmul.f32 %v1451, %v1464
        %v1466 = vadd.f32 %v1465, 0.014752088
        %v1467 = vmul.f32 %v1451, %v1466
        %v1468 = vadd.f32 %v1467, 0.112945676
        %v1469 = vmul.f32 %v1451, %v1468
        %v1470 = vadd.f32 %v1469, 0.4994258
        %v1471 = vmul.f32 %v1451, %v1470
        %v1472 = vadd.f32 %v1471, 1.0
        %v1473 = vrcp.pop %v1472
        %v1474 = vmul.f32 %v1472, %v1473
        %v1475 = vsub.f32 1.0, %v1474
        %v1476 = vmul.f32 %v1473, %v1475
        %v1477 = vadd.f32 %v1473, %v1476
        %vm1478 = vweird.f32 %v1472
        %vm1479 = vweird.f32 %v1473
        %vm1480 = vmor %vm1478, %vm1479
        %v1481 = vsel %vm1480, %v1473, %v1477
        %v1482 = vand.u32 2147483647, %v1472
        %vm1483 = vcmp.eq.f32.partialorder %v1482, 8.507059e+37
        %v1484 = vand.u32 %v1472, 2147483648
        %v1485 = vor.u32 1.1754944e-38, %v1484
        %v1486 = vsel %vm1483, %v1485, %v1481
        %v1487 = vmul.f32 %v1462, %v1486
        %v1488 = vmin.f32 %v1487, 1.0
        %v1489 = vmax.f32 %v1488, -1.0
        %v1490 = vmul.f32 %v1270, %v1270
        %v1491 = vmin.f32 16.0, %v1490
        %v1492 = vmul.f32 %v1491, 2.1237322e-06
        %v1493 = vadd.f32 %v1492, 0.00028619796
        %v1494 = vmul.f32 %v1491, %v1493
        %v1495 = vadd.f32 %v1494, 0.0036580483
        %v1496 = vmul.f32 %v1491, %v1495
        %v1497 = vadd.f32 %v1496, 0.05243302
        %v1498 = vmul.f32 %v1491, %v1497
        %v1499 = vadd.f32 %v1498, 0.18741608
        %v1500 = vmul.f32 %v1491, %v1499
        %v1501 = vadd.f32 %v1500, 1.1283791
        %v1502 = vmul.f32 %v1270, %v1501
        %v1503 = vmul.f32 %v1491, 3.8918573e-05
        %v1504 = vadd.f32 %v1503, 0.001143296
        %v1505 = vmul.f32 %v1491, %v1504
        %v1506 = vadd.f32 %v1505, 0.014752088
        %v1507 = vmul.f32 %v1491, %v1506
        %v1508 = vadd.f32 %v1507, 0.112945676
        %v1509 = vmul.f32 %v1491, %v1508
        %v1510 = vadd.f32 %v1509, 0.4994258
        %v1511 = vmul.f32 %v1491, %v1510
        %v1512 = vadd.f32 %v1511, 1.0
        %v1513 = vrcp.pop %v1512
        %v1514 = vmul.f32 %v1512, %v1513
        %v1515 = vsub.f32 1.0, %v1514
        %v1516 = vmul.f32 %v1513, %v1515
        %v1517 = vadd.f32 %v1513, %v1516
        %vm1518 = vweird.f32 %v1512
        %vm1519 = vweird.f32 %v1513
        %vm1520 = vmor %vm1518, %vm1519
        %v1521 = vsel %vm1520, %v1513, %v1517
        %v1522 = vand.u32 2147483647, %v1512
        %vm1523 = vcmp.eq.f32.partialorder %v1522, 8.507059e+37
        %v1524 = vand.u32 %v1512, 2147483648
        %v1525 = vor.u32 1.1754944e-38, %v1524
        %v1526 = vsel %vm1523, %v1525, %v1521
        %v1527 = vmul.f32 %v1502, %v1526
        %v1528 = vmin.f32 %v1527, 1.0
        %v1529 = vmax.f32 %v1528, -1.0
        %v1530 = vmul.f32 %v1271, %v1271
        %v1531 = vmin.f32 16.0, %v1530
        %v1532 = vmul.f32 %v1531, 2.1237322e-06
        %v1533 = vadd.f32 %v1532, 0.00028619796
        %v1534 = vmul.f32 %v1531, %v1533
        %v1535 = vadd.f32 %v1534, 0.0036580483
        %v1536 = vmul.f32 %v1531, %v1535
        %v1537 = vadd.f32 %v1536, 0.05243302
        %v1538 = vmul.f32 %v1531, %v1537
        %v1539 = vadd.f32 %v1538, 0.18741608
        %v1540 = vmul.f32 %v1531, %v1539
        %v1541 = vadd.f32 %v1540, 1.1283791
        %v1542 = vmul.f32 %v1271, %v1541
        %v1543 = vmul.f32 %v1531, 3.8918573e-05
        %v1544 = vadd.f32 %v1543, 0.001143296
        %v1545 = vmul.f32 %v1531, %v1544
        %v1546 = vadd.f32 %v1545, 0.014752088
        %v1547 = vmul.f32 %v1531, %v1546
        %v1548 = vadd.f32 %v1547, 0.112945676
        %v1549 = vmul.f32 %v1531, %v1548
        %v1550 = vadd.f32 %v1549, 0.4994258
        %v1551 = vmul.f32 %v1531, %v1550
        %v1552 = vadd.f32 %v1551, 1.0
        %v1553 = vrcp.pop %v1552
        %v1554 = vmul.f32 %v1552, %v1553
        %v1555 = vsub.f32 1.0, %v1554
        %v1556 = vmul.f32 %v1553, %v1555
        %v1557 = vadd.f32 %v1553, %v1556
        %vm1558 = vweird.f32 %v1552
        %vm1559 = vweird.f32 %v1553
        %vm1560 = vmor %vm1558, %vm1559
        %v1561 = vsel %vm1560, %v1553, %v1557
        %v1562 = vand.u32 2147483647, %v1552
        %vm1563 = vcmp.eq.f32.partialorder %v1562, 8.507059e+37
        %v1564 = vand.u32 %v1552, 2147483648
        %v1565 = vor.u32 1.1754944e-38, %v1564
        %v1566 = vsel %vm1563, %v1565, %v1561
        %v1567 = vmul.f32 %v1542, %v1566
        %v1568 = vmin.f32 %v1567, 1.0
        %v1569 = vmax.f32 %v1568, -1.0
        %v1570 = vmul.f32 %v1272, %v1272
        %v1571 = vmin.f32 16.0, %v1570
        %v1572 = vmul.f32 %v1571, 2.1237322e-06
        %v1573 = vadd.f32 %v1572, 0.00028619796
        %v1574 = vmul.f32 %v1571, %v1573
        %v1575 = vadd.f32 %v1574, 0.0036580483
        %v1576 = vmul.f32 %v1571, %v1575
        %v1577 = vadd.f32 %v1576, 0.05243302
        %v1578 = vmul.f32 %v1571, %v1577
        %v1579 = vadd.f32 %v1578, 0.18741608
        %v1580 = vmul.f32 %v1571, %v1579
        %v1581 = vadd.f32 %v1580, 1.1283791
        %v1582 = vmul.f32 %v1272, %v1581
        %v1583 = vmul.f32 %v1571, 3.8918573e-05
        %v1584 = vadd.f32 %v1583, 0.001143296
        %v1585 = vmul.f32 %v1571, %v1584
        %v1586 = vadd.f32 %v1585, 0.014752088
        %v1587 = vmul.f32 %v1571, %v1586
        %v1588 = vadd.f32 %v1587, 0.112945676
        %v1589 = vmul.f32 %v1571, %v1588
        %v1590 = vadd.f32 %v1589, 0.4994258
        %v1591 = vmul.f32 %v1571, %v1590
        %v1592 = vadd.f32 %v1591, 1.0
        %v1593 = vrcp.pop %v1592
        %v1594 = vmul.f32 %v1592, %v1593
        %v1595 = vsub.f32 1.0, %v1594
        %v1596 = vmul.f32 %v1593, %v1595
        %v1597 = vadd.f32 %v1593, %v1596
        %vm1598 = vweird.f32 %v1592
        %vm1599 = vweird.f32 %v1593
        %vm1600 = vmor %vm1598, %vm1599
        %v1601 = vsel %vm1600, %v1593, %v1597
        %v1602 = vand.u32 2147483647, %v1592
        %vm1603 = vcmp.eq.f32.partialorder %v1602, 8.507059e+37
        %v1604 = vand.u32 %v1592, 2147483648
        %v1605 = vor.u32 1.1754944e-38, %v1604
        %v1606 = vsel %vm1603, %v1605, %v1601
        %v1607 = vmul.f32 %v1582, %v1606
        %v1608 = vmin.f32 %v1607, 1.0
        %v1609 = vmax.f32 %v1608, -1.0
        %v1610 = vmul.f32 %v1273, %v1273
        %v1611 = vmin.f32 16.0, %v1610
        %v1612 = vmul.f32 %v1611, 2.1237322e-06
        %v1613 = vadd.f32 %v1612, 0.00028619796
        %v1614 = vmul.f32 %v1611, %v1613
        %v1615 = vadd.f32 %v1614, 0.0036580483
        %v1616 = vmul.f32 %v1611, %v1615
        %v1617 = vadd.f32 %v1616, 0.05243302
        %v1618 = vmul.f32 %v1611, %v1617
        %v1619 = vadd.f32 %v1618, 0.18741608
        %v1620 = vmul.f32 %v1611, %v1619
        %v1621 = vadd.f32 %v1620, 1.1283791
        %v1622 = vmul.f32 %v1273, %v1621
        %v1623 = vmul.f32 %v1611, 3.8918573e-05
        %v1624 = vadd.f32 %v1623, 0.001143296
        %v1625 = vmul.f32 %v1611, %v1624
        %v1626 = vadd.f32 %v1625, 0.014752088
        %v1627 = vmul.f32 %v1611, %v1626
        %v1628 = vadd.f32 %v1627, 0.112945676
        %v1629 = vmul.f32 %v1611, %v1628
        %v1630 = vadd.f32 %v1629, 0.4994258
        %v1631 = vmul.f32 %v1611, %v1630
        %v1632 = vadd.f32 %v1631, 1.0
        %v1633 = vrcp.pop %v1632
        %v1634 = vmul.f32 %v1632, %v1633
        %v1635 = vsub.f32 1.0, %v1634
        %v1636 = vmul.f32 %v1633, %v1635
        %v1637 = vadd.f32 %v1633, %v1636
        %vm1638 = vweird.f32 %v1632
        %vm1639 = vweird.f32 %v1633
        %vm1640 = vmor %vm1638, %vm1639
        %v1641 = vsel %vm1640, %v1633, %v1637
        %v1642 = vand.u32 2147483647, %v1632
        %vm1643 = vcmp.eq.f32.partialorder %v1642, 8.507059e+37
        %v1644 = vand.u32 %v1632, 2147483648
        %v1645 = vor.u32 1.1754944e-38, %v1644
        %v1646 = vsel %vm1643, %v1645, %v1641
        %v1647 = vmul.f32 %v1622, %v1646
        %v1648 = vmin.f32 %v1647, 1.0
        %v1649 = vmax.f32 %v1648, -1.0
        %v1650 = vmul.f32 %v1274, %v1274
        %v1651 = vmin.f32 16.0, %v1650
        %v1652 = vmul.f32 %v1651, 2.1237322e-06
        %v1653 = vadd.f32 %v1652, 0.00028619796
        %v1654 = vmul.f32 %v1651, %v1653
        %v1655 = vadd.f32 %v1654, 0.0036580483
        %v1656 = vmul.f32 %v1651, %v1655
        %v1657 = vadd.f32 %v1656, 0.05243302
        %v1658 = vmul.f32 %v1651, %v1657
        %v1659 = vadd.f32 %v1658, 0.18741608
        %v1660 = vmul.f32 %v1651, %v1659
        %v1661 = vadd.f32 %v1660, 1.1283791
        %v1662 = vmul.f32 %v1274, %v1661
        %v1663 = vmul.f32 %v1651, 3.8918573e-05
        %v1664 = vadd.f32 %v1663, 0.001143296
        %v1665 = vmul.f32 %v1651, %v1664
        %v1666 = vadd.f32 %v1665, 0.014752088
        %v1667 = vmul.f32 %v1651, %v1666
        %v1668 = vadd.f32 %v1667, 0.112945676
        %v1669 = vmul.f32 %v1651, %v1668
        %v1670 = vadd.f32 %v1669, 0.4994258
        %v1671 = vmul.f32 %v1651, %v1670
        %v1672 = vadd.f32 %v1671, 1.0
        %v1673 = vrcp.pop %v1672
        %v1674 = vmul.f32 %v1672, %v1673
        %v1675 = vsub.f32 1.0, %v1674
        %v1676 = vmul.f32 %v1673, %v1675
        %v1677 = vadd.f32 %v1673, %v1676
        %vm1678 = vweird.f32 %v1672
        %vm1679 = vweird.f32 %v1673
        %vm1680 = vmor %vm1678, %vm1679
        %v1681 = vsel %vm1680, %v1673, %v1677
        %v1682 = vand.u32 2147483647, %v1672
        %vm1683 = vcmp.eq.f32.partialorder %v1682, 8.507059e+37
        %v1684 = vand.u32 %v1672, 2147483648
        %v1685 = vor.u32 1.1754944e-38, %v1684
        %v1686 = vsel %vm1683, %v1685, %v1681
        %v1687 = vmul.f32 %v1662, %v1686
        %v1688 = vmin.f32 %v1687, 1.0
        %v1689 = vmax.f32 %v1688, -1.0
        %v1690 = vmul.f32 %v1275, %v1275
        %v1691 = vmin.f32 16.0, %v1690
        %v1692 = vmul.f32 %v1691, 2.1237322e-06
        %v1693 = vadd.f32 %v1692, 0.00028619796
        %v1694 = vmul.f32 %v1691, %v1693
        %v1695 = vadd.f32 %v1694, 0.0036580483
        %v1696 = vmul.f32 %v1691, %v1695
        %v1697 = vadd.f32 %v1696, 0.05243302
        %v1698 = vmul.f32 %v1691, %v1697
        %v1699 = vadd.f32 %v1698, 0.18741608
        %v1700 = vmul.f32 %v1691, %v1699
        %v1701 = vadd.f32 %v1700, 1.1283791
        %v1702 = vmul.f32 %v1275, %v1701
        %v1703 = vmul.f32 %v1691, 3.8918573e-05
        %v1704 = vadd.f32 %v1703, 0.001143296
        %v1705 = vmul.f32 %v1691, %v1704
        %v1706 = vadd.f32 %v1705, 0.014752088
        %v1707 = vmul.f32 %v1691, %v1706
        %v1708 = vadd.f32 %v1707, 0.112945676
        %v1709 = vmul.f32 %v1691, %v1708
        %v1710 = vadd.f32 %v1709, 0.4994258
        %v1711 = vmul.f32 %v1691, %v1710
        %v1712 = vadd.f32 %v1711, 1.0
        %v1713 = vrcp.pop %v1712
        %v1714 = vmul.f32 %v1712, %v1713
        %v1715 = vsub.f32 1.0, %v1714
        %v1716 = vmul.f32 %v1713, %v1715
        %v1717 = vadd.f32 %v1713, %v1716
        %vm1718 = vweird.f32 %v1712
        %vm1719 = vweird.f32 %v1713
        %vm1720 = vmor %vm1718, %vm1719
        %v1721 = vsel %vm1720, %v1713, %v1717
        %v1722 = vand.u32 2147483647, %v1712
        %vm1723 = vcmp.eq.f32.partialorder %v1722, 8.507059e+37
        %v1724 = vand.u32 %v1712, 2147483648
        %v1725 = vor.u32 1.1754944e-38, %v1724
        %v1726 = vsel %vm1723, %v1725, %v1721
        %v1727 = vmul.f32 %v1702, %v1726
        %v1728 = vmin.f32 %v1727, 1.0
        %v1729 = vmax.f32 %v1728, -1.0
        %v1730 = vmul.f32 %v1276, %v1276
        %v1731 = vmin.f32 16.0, %v1730
        %v1732 = vmul.f32 %v1731, 2.1237322e-06
        %v1733 = vadd.f32 %v1732, 0.00028619796
        %v1734 = vmul.f32 %v1731, %v1733
        %v1735 = vadd.f32 %v1734, 0.0036580483
        %v1736 = vmul.f32 %v1731, %v1735
        %v1737 = vadd.f32 %v1736, 0.05243302
        %v1738 = vmul.f32 %v1731, %v1737
        %v1739 = vadd.f32 %v1738, 0.18741608
        %v1740 = vmul.f32 %v1731, %v1739
        %v1741 = vadd.f32 %v1740, 1.1283791
        %v1742 = vmul.f32 %v1276, %v1741
        %v1743 = vmul.f32 %v1731, 3.8918573e-05
        %v1744 = vadd.f32 %v1743, 0.001143296
        %v1745 = vmul.f32 %v1731, %v1744
        %v1746 = vadd.f32 %v1745, 0.014752088
        %v1747 = vmul.f32 %v1731, %v1746
        %v1748 = vadd.f32 %v1747, 0.112945676
        %v1749 = vmul.f32 %v1731, %v1748
        %v1750 = vadd.f32 %v1749, 0.4994258
        %v1751 = vmul.f32 %v1731, %v1750
        %v1752 = vadd.f32 %v1751, 1.0
        %v1753 = vrcp.pop %v1752
        %v1754 = vmul.f32 %v1752, %v1753
        %v1755 = vsub.f32 1.0, %v1754
        %v1756 = vmul.f32 %v1753, %v1755
        %v1757 = vadd.f32 %v1753, %v1756
        %vm1758 = vweird.f32 %v1752
        %vm1759 = vweird.f32 %v1753
        %vm1760 = vmor %vm1758, %vm1759
        %v1761 = vsel %vm1760, %v1753, %v1757
        %v1762 = vand.u32 2147483647, %v1752
        %vm1763 = vcmp.eq.f32.partialorder %v1762, 8.507059e+37
        %v1764 = vand.u32 %v1752, 2147483648
        %v1765 = vor.u32 1.1754944e-38, %v1764
        %v1766 = vsel %vm1763, %v1765, %v1761
        %v1767 = vmul.f32 %v1742, %v1766
        %v1768 = vmin.f32 %v1767, 1.0
        %v1769 = vmax.f32 %v1768, -1.0
        %v1770 = vmul.f32 %v1277, %v1277
        %v1771 = vmin.f32 16.0, %v1770
        %v1772 = vmul.f32 %v1771, 2.1237322e-06
        %v1773 = vadd.f32 %v1772, 0.00028619796
        %v1774 = vmul.f32 %v1771, %v1773
        %v1775 = vadd.f32 %v1774, 0.0036580483
        %v1776 = vmul.f32 %v1771, %v1775
        %v1777 = vadd.f32 %v1776, 0.05243302
        %v1778 = vmul.f32 %v1771, %v1777
        %v1779 = vadd.f32 %v1778, 0.18741608
        %v1780 = vmul.f32 %v1771, %v1779
        %v1781 = vadd.f32 %v1780, 1.1283791
        %v1782 = vmul.f32 %v1277, %v1781
        %v1783 = vmul.f32 %v1771, 3.8918573e-05
        %v1784 = vadd.f32 %v1783, 0.001143296
        %v1785 = vmul.f32 %v1771, %v1784
        %v1786 = vadd.f32 %v1785, 0.014752088
        %v1787 = vmul.f32 %v1771, %v1786
        %v1788 = vadd.f32 %v1787, 0.112945676
        %v1789 = vmul.f32 %v1771, %v1788
        %v1790 = vadd.f32 %v1789, 0.4994258
        %v1791 = vmul.f32 %v1771, %v1790
        %v1792 = vadd.f32 %v1791, 1.0
        %v1793 = vrcp.pop %v1792
        %v1794 = vmul.f32 %v1792, %v1793
        %v1795 = vsub.f32 1.0, %v1794
        %v1796 = vmul.f32 %v1793, %v1795
        %v1797 = vadd.f32 %v1793, %v1796
        %vm1798 = vweird.f32 %v1792
        %vm1799 = vweird.f32 %v1793
        %vm1800 = vmor %vm1798, %vm1799
        %v1801 = vsel %vm1800, %v1793, %v1797
        %v1802 = vand.u32 2147483647, %v1792
        %vm1803 = vcmp.eq.f32.partialorder %v1802, 8.507059e+37
        %v1804 = vand.u32 %v1792, 2147483648
        %v1805 = vor.u32 1.1754944e-38, %v1804
        %v1806 = vsel %vm1803, %v1805, %v1801
        %v1807 = vmul.f32 %v1782, %v1806
        %v1808 = vmin.f32 %v1807, 1.0
        %v1809 = vmax.f32 %v1808, -1.0
        %v1810 = vmul.f32 %v1278, %v1278
        %v1811 = vmin.f32 16.0, %v1810
        %v1812 = vmul.f32 %v1811, 2.1237322e-06
        %v1813 = vadd.f32 %v1812, 0.00028619796
        %v1814 = vmul.f32 %v1811, %v1813
        %v1815 = vadd.f32 %v1814, 0.0036580483
        %v1816 = vmul.f32 %v1811, %v1815
        %v1817 = vadd.f32 %v1816, 0.05243302
        %v1818 = vmul.f32 %v1811, %v1817
        %v1819 = vadd.f32 %v1818, 0.18741608
        %v1820 = vmul.f32 %v1811, %v1819
        %v1821 = vadd.f32 %v1820, 1.1283791
        %v1822 = vmul.f32 %v1278, %v1821
        %v1823 = vmul.f32 %v1811, 3.8918573e-05
        %v1824 = vadd.f32 %v1823, 0.001143296
        %v1825 = vmul.f32 %v1811, %v1824
        %v1826 = vadd.f32 %v1825, 0.014752088
        %v1827 = vmul.f32 %v1811, %v1826
        %v1828 = vadd.f32 %v1827, 0.112945676
        %v1829 = vmul.f32 %v1811, %v1828
        %v1830 = vadd.f32 %v1829, 0.4994258
        %v1831 = vmul.f32 %v1811, %v1830
        %v1832 = vadd.f32 %v1831, 1.0
        %v1833 = vrcp.pop %v1832
        %v1834 = vmul.f32 %v1832, %v1833
        %v1835 = vsub.f32 1.0, %v1834
        %v1836 = vmul.f32 %v1833, %v1835
        %v1837 = vadd.f32 %v1833, %v1836
        %vm1838 = vweird.f32 %v1832
        %vm1839 = vweird.f32 %v1833
        %vm1840 = vmor %vm1838, %vm1839
        %v1841 = vsel %vm1840, %v1833, %v1837
        %v1842 = vand.u32 2147483647, %v1832
        %vm1843 = vcmp.eq.f32.partialorder %v1842, 8.507059e+37
        %v1844 = vand.u32 %v1832, 2147483648
        %v1845 = vor.u32 1.1754944e-38, %v1844
        %v1846 = vsel %vm1843, %v1845, %v1841
        %v1847 = vmul.f32 %v1822, %v1846
        %v1848 = vmin.f32 %v1847, 1.0
        %v1849 = vmax.f32 %v1848, -1.0
        %v1850 = vmul.f32 %v1279, %v1279
        %v1851 = vmin.f32 16.0, %v1850
        %v1852 = vmul.f32 %v1851, 2.1237322e-06
        %v1853 = vadd.f32 %v1852, 0.00028619796
        %v1854 = vmul.f32 %v1851, %v1853
        %v1855 = vadd.f32 %v1854, 0.0036580483
        %v1856 = vmul.f32 %v1851, %v1855
        %v1857 = vadd.f32 %v1856, 0.05243302
        %v1858 = vmul.f32 %v1851, %v1857
        %v1859 = vadd.f32 %v1858, 0.18741608
        %v1860 = vmul.f32 %v1851, %v1859
        %v1861 = vadd.f32 %v1860, 1.1283791
        %v1862 = vmul.f32 %v1279, %v1861
        %v1863 = vmul.f32 %v1851, 3.8918573e-05
        %v1864 = vadd.f32 %v1863, 0.001143296
        %v1865 = vmul.f32 %v1851, %v1864
        %v1866 = vadd.f32 %v1865, 0.014752088
        %v1867 = vmul.f32 %v1851, %v1866
        %v1868 = vadd.f32 %v1867, 0.112945676
        %v1869 = vmul.f32 %v1851, %v1868
        %v1870 = vadd.f32 %v1869, 0.4994258
        %v1871 = vmul.f32 %v1851, %v1870
        %v1872 = vadd.f32 %v1871, 1.0
        %v1873 = vrcp.pop %v1872
        %v1874 = vmul.f32 %v1872, %v1873
        %v1875 = vsub.f32 1.0, %v1874
        %v1876 = vmul.f32 %v1873, %v1875
        %v1877 = vadd.f32 %v1873, %v1876
        %vm1878 = vweird.f32 %v1872
        %vm1879 = vweird.f32 %v1873
        %vm1880 = vmor %vm1878, %vm1879
        %v1881 = vsel %vm1880, %v1873, %v1877
        %v1882 = vand.u32 2147483647, %v1872
        %vm1883 = vcmp.eq.f32.partialorder %v1882, 8.507059e+37
        %v1884 = vand.u32 %v1872, 2147483648
        %v1885 = vor.u32 1.1754944e-38, %v1884
        %v1886 = vsel %vm1883, %v1885, %v1881
        %v1887 = vmul.f32 %v1862, %v1886
        %v1888 = vmin.f32 %v1887, 1.0
        %v1889 = vmax.f32 %v1888, -1.0
        %v1890 = vmul.f32 %v1280, %v1280
        %v1891 = vmin.f32 16.0, %v1890
        %v1892 = vmul.f32 %v1891, 2.1237322e-06
        %v1893 = vadd.f32 %v1892, 0.00028619796
        %v1894 = vmul.f32 %v1891, %v1893
        %v1895 = vadd.f32 %v1894, 0.0036580483
        %v1896 = vmul.f32 %v1891, %v1895
        %v1897 = vadd.f32 %v1896, 0.05243302
        %v1898 = vmul.f32 %v1891, %v1897
        %v1899 = vadd.f32 %v1898, 0.18741608
        %v1900 = vmul.f32 %v1891, %v1899
        %v1901 = vadd.f32 %v1900, 1.1283791
        %v1902 = vmul.f32 %v1280, %v1901
        %v1903 = vmul.f32 %v1891, 3.8918573e-05
        %v1904 = vadd.f32 %v1903, 0.001143296
        %v1905 = vmul.f32 %v1891, %v1904
        %v1906 = vadd.f32 %v1905, 0.014752088
        %v1907 = vmul.f32 %v1891, %v1906
        %v1908 = vadd.f32 %v1907, 0.112945676
        %v1909 = vmul.f32 %v1891, %v1908
        %v1910 = vadd.f32 %v1909, 0.4994258
        %v1911 = vmul.f32 %v1891, %v1910
        %v1912 = vadd.f32 %v1911, 1.0
        %v1913 = vrcp.pop %v1912
        %v1914 = vmul.f32 %v1912, %v1913
        %v1915 = vsub.f32 1.0, %v1914
        %v1916 = vmul.f32 %v1913, %v1915
        %v1917 = vadd.f32 %v1913, %v1916
        %vm1918 = vweird.f32 %v1912
        %vm1919 = vweird.f32 %v1913
        %vm1920 = vmor %vm1918, %vm1919
        %v1921 = vsel %vm1920, %v1913, %v1917
        %v1922 = vand.u32 2147483647, %v1912
        %vm1923 = vcmp.eq.f32.partialorder %v1922, 8.507059e+37
        %v1924 = vand.u32 %v1912, 2147483648
        %v1925 = vor.u32 1.1754944e-38, %v1924
        %v1926 = vsel %vm1923, %v1925, %v1921
        %v1927 = vmul.f32 %v1902, %v1926
        %v1928 = vmin.f32 %v1927, 1.0
        %v1929 = vmax.f32 %v1928, -1.0
        %v1930 = vmul.f32 %v1281, %v1281
        %v1931 = vmin.f32 16.0, %v1930
        %v1932 = vmul.f32 %v1931, 2.1237322e-06
        %v1933 = vadd.f32 %v1932, 0.00028619796
        %v1934 = vmul.f32 %v1931, %v1933
        %v1935 = vadd.f32 %v1934, 0.0036580483
        %v1936 = vmul.f32 %v1931, %v1935
        %v1937 = vadd.f32 %v1936, 0.05243302
        %v1938 = vmul.f32 %v1931, %v1937
        %v1939 = vadd.f32 %v1938, 0.18741608
        %v1940 = vmul.f32 %v1931, %v1939
        %v1941 = vadd.f32 %v1940, 1.1283791
        %v1942 = vmul.f32 %v1281, %v1941
        %v1943 = vmul.f32 %v1931, 3.8918573e-05
        %v1944 = vadd.f32 %v1943, 0.001143296
        %v1945 = vmul.f32 %v1931, %v1944
        %v1946 = vadd.f32 %v1945, 0.014752088
        %v1947 = vmul.f32 %v1931, %v1946
        %v1948 = vadd.f32 %v1947, 0.112945676
        %v1949 = vmul.f32 %v1931, %v1948
        %v1950 = vadd.f32 %v1949, 0.4994258
        %v1951 = vmul.f32 %v1931, %v1950
        %v1952 = vadd.f32 %v1951, 1.0
        %v1953 = vrcp.pop %v1952
        %v1954 = vmul.f32 %v1952, %v1953
        %v1955 = vsub.f32 1.0, %v1954
        %v1956 = vmul.f32 %v1953, %v1955
        %v1957 = vadd.f32 %v1953, %v1956
        %vm1958 = vweird.f32 %v1952
        %vm1959 = vweird.f32 %v1953
        %vm1960 = vmor %vm1958, %vm1959
        %v1961 = vsel %vm1960, %v1953, %v1957
        %v1962 = vand.u32 2147483647, %v1952
        %vm1963 = vcmp.eq.f32.partialorder %v1962, 8.507059e+37
        %v1964 = vand.u32 %v1952, 2147483648
        %v1965 = vor.u32 1.1754944e-38, %v1964
        %v1966 = vsel %vm1963, %v1965, %v1961
        %v1967 = vmul.f32 %v1942, %v1966
        %v1968 = vmin.f32 %v1967, 1.0
        %v1969 = vmax.f32 %v1968, -1.0
        %v1970 = vmul.f32 %v1282, %v1282
        %v1971 = vmin.f32 16.0, %v1970
        %v1972 = vmul.f32 %v1971, 2.1237322e-06
        %v1973 = vadd.f32 %v1972, 0.00028619796
        %v1974 = vmul.f32 %v1971, %v1973
        %v1975 = vadd.f32 %v1974, 0.0036580483
        %v1976 = vmul.f32 %v1971, %v1975
        %v1977 = vadd.f32 %v1976, 0.05243302
        %v1978 = vmul.f32 %v1971, %v1977
        %v1979 = vadd.f32 %v1978, 0.18741608
        %v1980 = vmul.f32 %v1971, %v1979
        %v1981 = vadd.f32 %v1980, 1.1283791
        %v1982 = vmul.f32 %v1282, %v1981
        %v1983 = vmul.f32 %v1971, 3.8918573e-05
        %v1984 = vadd.f32 %v1983, 0.001143296
        %v1985 = vmul.f32 %v1971, %v1984
        %v1986 = vadd.f32 %v1985, 0.014752088
        %v1987 = vmul.f32 %v1971, %v1986
        %v1988 = vadd.f32 %v1987, 0.112945676
        %v1989 = vmul.f32 %v1971, %v1988
        %v1990 = vadd.f32 %v1989, 0.4994258
        %v1991 = vmul.f32 %v1971, %v1990
        %v1992 = vadd.f32 %v1991, 1.0
        %v1993 = vrcp.pop %v1992
        %v1994 = vmul.f32 %v1992, %v1993
        %v1995 = vsub.f32 1.0, %v1994
        %v1996 = vmul.f32 %v1993, %v1995
        %v1997 = vadd.f32 %v1993, %v1996
        %vm1998 = vweird.f32 %v1992
        %vm1999 = vweird.f32 %v1993
        %vm2000 = vmor %vm1998, %vm1999
        %v2001 = vsel %vm2000, %v1993, %v1997
        %v2002 = vand.u32 2147483647, %v1992
        %vm2003 = vcmp.eq.f32.partialorder %v2002, 8.507059e+37
        %v2004 = vand.u32 %v1992, 2147483648
        %v2005 = vor.u32 1.1754944e-38, %v2004
        %v2006 = vsel %vm2003, %v2005, %v2001
        %v2007 = vmul.f32 %v1982, %v2006
        %v2008 = vmin.f32 %v2007, 1.0
        %v2009 = vmax.f32 %v2008, -1.0
        %v2010 = vmul.f32 %v1283, %v1283
        %v2011 = vmin.f32 16.0, %v2010
        %v2012 = vmul.f32 %v2011, 2.1237322e-06
        %v2013 = vadd.f32 %v2012, 0.00028619796
        %v2014 = vmul.f32 %v2011, %v2013
        %v2015 = vadd.f32 %v2014, 0.0036580483
        %v2016 = vmul.f32 %v2011, %v2015
        %v2017 = vadd.f32 %v2016, 0.05243302
        %v2018 = vmul.f32 %v2011, %v2017
        %v2019 = vadd.f32 %v2018, 0.18741608
        %v2020 = vmul.f32 %v2011, %v2019
        %v2021 = vadd.f32 %v2020, 1.1283791
        %v2022 = vmul.f32 %v1283, %v2021
        %v2023 = vmul.f32 %v2011, 3.8918573e-05
        %v2024 = vadd.f32 %v2023, 0.001143296
        %v2025 = vmul.f32 %v2011, %v2024
        %v2026 = vadd.f32 %v2025, 0.014752088
        %v2027 = vmul.f32 %v2011, %v2026
        %v2028 = vadd.f32 %v2027, 0.112945676
        %v2029 = vmul.f32 %v2011, %v2028
        %v2030 = vadd.f32 %v2029, 0.4994258
        %v2031 = vmul.f32 %v2011, %v2030
        %v2032 = vadd.f32 %v2031, 1.0
        %v2033 = vrcp.pop %v2032
        %v2034 = vmul.f32 %v2032, %v2033
        %v2035 = vsub.f32 1.0, %v2034
        %v2036 = vmul.f32 %v2033, %v2035
        %v2037 = vadd.f32 %v2033, %v2036
        %vm2038 = vweird.f32 %v2032
        %vm2039 = vweird.f32 %v2033
        %vm2040 = vmor %vm2038, %vm2039
        %v2041 = vsel %vm2040, %v2033, %v2037
        %v2042 = vand.u32 2147483647, %v2032
        %vm2043 = vcmp.eq.f32.partialorder %v2042, 8.507059e+37
        %v2044 = vand.u32 %v2032, 2147483648
        %v2045 = vor.u32 1.1754944e-38, %v2044
        %v2046 = vsel %vm2043, %v2045, %v2041
        %v2047 = vmul.f32 %v2022, %v2046
        %v2048 = vmin.f32 %v2047, 1.0
        %v2049 = vmax.f32 %v2048, -1.0
        %v2050 = vmul.f32 %v1284, %v1284
        %v2051 = vmin.f32 16.0, %v2050
        %v2052 = vmul.f32 %v2051, 2.1237322e-06
        %v2053 = vadd.f32 %v2052, 0.00028619796
        %v2054 = vmul.f32 %v2051, %v2053
        %v2055 = vadd.f32 %v2054, 0.0036580483
        %v2056 = vmul.f32 %v2051, %v2055
        %v2057 = vadd.f32 %v2056, 0.05243302
        %v2058 = vmul.f32 %v2051, %v2057
        %v2059 = vadd.f32 %v2058, 0.18741608
        %v2060 = vmul.f32 %v2051, %v2059
        %v2061 = vadd.f32 %v2060, 1.1283791
        %v2062 = vmul.f32 %v1284, %v2061
        %v2063 = vmul.f32 %v2051, 3.8918573e-05
        %v2064 = vadd.f32 %v2063, 0.001143296
        %v2065 = vmul.f32 %v2051, %v2064
        %v2066 = vadd.f32 %v2065, 0.014752088
        %v2067 = vmul.f32 %v2051, %v2066
        %v2068 = vadd.f32 %v2067, 0.112945676
        %v2069 = vmul.f32 %v2051, %v2068
        %v2070 = vadd.f32 %v2069, 0.4994258
        %v2071 = vmul.f32 %v2051, %v2070
        %v2072 = vadd.f32 %v2071, 1.0
        %v2073 = vrcp.pop %v2072
        %v2074 = vmul.f32 %v2072, %v2073
        %v2075 = vsub.f32 1.0, %v2074
        %v2076 = vmul.f32 %v2073, %v2075
        %v2077 = vadd.f32 %v2073, %v2076
        %vm2078 = vweird.f32 %v2072
        %vm2079 = vweird.f32 %v2073
        %vm2080 = vmor %vm2078, %vm2079
        %v2081 = vsel %vm2080, %v2073, %v2077
        %v2082 = vand.u32 2147483647, %v2072
        %vm2083 = vcmp.eq.f32.partialorder %v2082, 8.507059e+37
        %v2084 = vand.u32 %v2072, 2147483648
        %v2085 = vor.u32 1.1754944e-38, %v2084
        %v2086 = vsel %vm2083, %v2085, %v2081
        %v2087 = vmul.f32 %v2062, %v2086
        %v2088 = vmin.f32 %v2087, 1.0
        %v2089 = vmax.f32 %v2088, -1.0
        %v2090 = vmul.f32 %v1285, %v1285
        %v2091 = vmin.f32 16.0, %v2090
        %v2092 = vmul.f32 %v2091, 2.1237322e-06
        %v2093 = vadd.f32 %v2092, 0.00028619796
        %v2094 = vmul.f32 %v2091, %v2093
        %v2095 = vadd.f32 %v2094, 0.0036580483
        %v2096 = vmul.f32 %v2091, %v2095
        %v2097 = vadd.f32 %v2096, 0.05243302
        %v2098 = vmul.f32 %v2091, %v2097
        %v2099 = vadd.f32 %v2098, 0.18741608
        %v2100 = vmul.f32 %v2091, %v2099
        %v2101 = vadd.f32 %v2100, 1.1283791
        %v2102 = vmul.f32 %v1285, %v2101
        %v2103 = vmul.f32 %v2091, 3.8918573e-05
        %v2104 = vadd.f32 %v2103, 0.001143296
        %v2105 = vmul.f32 %v2091, %v2104
        %v2106 = vadd.f32 %v2105, 0.014752088
        %v2107 = vmul.f32 %v2091, %v2106
        %v2108 = vadd.f32 %v2107, 0.112945676
        %v2109 = vmul.f32 %v2091, %v2108
        %v2110 = vadd.f32 %v2109, 0.4994258
        %v2111 = vmul.f32 %v2091, %v2110
        %v2112 = vadd.f32 %v2111, 1.0
        %v2113 = vrcp.pop %v2112
        %v2114 = vmul.f32 %v2112, %v2113
        %v2115 = vsub.f32 1.0, %v2114
        %v2116 = vmul.f32 %v2113, %v2115
        %v2117 = vadd.f32 %v2113, %v2116
        %vm2118 = vweird.f32 %v2112
        %vm2119 = vweird.f32 %v2113
        %vm2120 = vmor %vm2118, %vm2119
        %v2121 = vsel %vm2120, %v2113, %v2117
        %v2122 = vand.u32 2147483647, %v2112
        %vm2123 = vcmp.eq.f32.partialorder %v2122, 8.507059e+37
        %v2124 = vand.u32 %v2112, 2147483648
        %v2125 = vor.u32 1.1754944e-38, %v2124
        %v2126 = vsel %vm2123, %v2125, %v2121
        %v2127 = vmul.f32 %v2102, %v2126
        %v2128 = vmin.f32 %v2127, 1.0
        %v2129 = vmax.f32 %v2128, -1.0
        %v2130 = vmul.f32 %v1286, %v1286
        %v2131 = vmin.f32 16.0, %v2130
        %v2132 = vmul.f32 %v2131, 2.1237322e-06
        %v2133 = vadd.f32 %v2132, 0.00028619796
        %v2134 = vmul.f32 %v2131, %v2133
        %v2135 = vadd.f32 %v2134, 0.0036580483
        %v2136 = vmul.f32 %v2131, %v2135
        %v2137 = vadd.f32 %v2136, 0.05243302
        %v2138 = vmul.f32 %v2131, %v2137
        %v2139 = vadd.f32 %v2138, 0.18741608
        %v2140 = vmul.f32 %v2131, %v2139
        %v2141 = vadd.f32 %v2140, 1.1283791
        %v2142 = vmul.f32 %v1286, %v2141
        %v2143 = vmul.f32 %v2131, 3.8918573e-05
        %v2144 = vadd.f32 %v2143, 0.001143296
        %v2145 = vmul.f32 %v2131, %v2144
        %v2146 = vadd.f32 %v2145, 0.014752088
        %v2147 = vmul.f32 %v2131, %v2146
        %v2148 = vadd.f32 %v2147, 0.112945676
        %v2149 = vmul.f32 %v2131, %v2148
        %v2150 = vadd.f32 %v2149, 0.4994258
        %v2151 = vmul.f32 %v2131, %v2150
        %v2152 = vadd.f32 %v2151, 1.0
        %v2153 = vrcp.pop %v2152
        %v2154 = vmul.f32 %v2152, %v2153
        %v2155 = vsub.f32 1.0, %v2154
        %v2156 = vmul.f32 %v2153, %v2155
        %v2157 = vadd.f32 %v2153, %v2156
        %vm2158 = vweird.f32 %v2152
        %vm2159 = vweird.f32 %v2153
        %vm2160 = vmor %vm2158, %vm2159
        %v2161 = vsel %vm2160, %v2153, %v2157
        %v2162 = vand.u32 2147483647, %v2152
        %vm2163 = vcmp.eq.f32.partialorder %v2162, 8.507059e+37
        %v2164 = vand.u32 %v2152, 2147483648
        %v2165 = vor.u32 1.1754944e-38, %v2164
        %v2166 = vsel %vm2163, %v2165, %v2161
        %v2167 = vmul.f32 %v2142, %v2166
        %v2168 = vmin.f32 %v2167, 1.0
        %v2169 = vmax.f32 %v2168, -1.0
        %v2170 = vmul.f32 %v1287, %v1287
        %v2171 = vmin.f32 16.0, %v2170
        %v2172 = vmul.f32 %v2171, 2.1237322e-06
        %v2173 = vadd.f32 %v2172, 0.00028619796
        %v2174 = vmul.f32 %v2171, %v2173
        %v2175 = vadd.f32 %v2174, 0.0036580483
        %v2176 = vmul.f32 %v2171, %v2175
        %v2177 = vadd.f32 %v2176, 0.05243302
        %v2178 = vmul.f32 %v2171, %v2177
        %v2179 = vadd.f32 %v2178, 0.18741608
        %v2180 = vmul.f32 %v2171, %v2179
        %v2181 = vadd.f32 %v2180, 1.1283791
        %v2182 = vmul.f32 %v1287, %v2181
        %v2183 = vmul.f32 %v2171, 3.8918573e-05
        %v2184 = vadd.f32 %v2183, 0.001143296
        %v2185 = vmul.f32 %v2171, %v2184
        %v2186 = vadd.f32 %v2185, 0.014752088
        %v2187 = vmul.f32 %v2171, %v2186
        %v2188 = vadd.f32 %v2187, 0.112945676
        %v2189 = vmul.f32 %v2171, %v2188
        %v2190 = vadd.f32 %v2189, 0.4994258
        %v2191 = vmul.f32 %v2171, %v2190
        %v2192 = vadd.f32 %v2191, 1.0
        %v2193 = vrcp.pop %v2192
        %v2194 = vmul.f32 %v2192, %v2193
        %v2195 = vsub.f32 1.0, %v2194
        %v2196 = vmul.f32 %v2193, %v2195
        %v2197 = vadd.f32 %v2193, %v2196
        %vm2198 = vweird.f32 %v2192
        %vm2199 = vweird.f32 %v2193
        %vm2200 = vmor %vm2198, %vm2199
        %v2201 = vsel %vm2200, %v2193, %v2197
        %v2202 = vand.u32 2147483647, %v2192
        %vm2203 = vcmp.eq.f32.partialorder %v2202, 8.507059e+37
        %v2204 = vand.u32 %v2192, 2147483648
        %v2205 = vor.u32 1.1754944e-38, %v2204
        %v2206 = vsel %vm2203, %v2205, %v2201
        %v2207 = vmul.f32 %v2182, %v2206
        %v2208 = vmin.f32 %v2207, 1.0
        %v2209 = vmax.f32 %v2208, -1.0
        %v2210 = vmul.f32 %v1288, %v1288
        %v2211 = vmin.f32 16.0, %v2210
        %v2212 = vmul.f32 %v2211, 2.1237322e-06
        %v2213 = vadd.f32 %v2212, 0.00028619796
        %v2214 = vmul.f32 %v2211, %v2213
        %v2215 = vadd.f32 %v2214, 0.0036580483
        %v2216 = vmul.f32 %v2211, %v2215
        %v2217 = vadd.f32 %v2216, 0.05243302
        %v2218 = vmul.f32 %v2211, %v2217
        %v2219 = vadd.f32 %v2218, 0.18741608
        %v2220 = vmul.f32 %v2211, %v2219
        %v2221 = vadd.f32 %v2220, 1.1283791
        %v2222 = vmul.f32 %v1288, %v2221
        %v2223 = vmul.f32 %v2211, 3.8918573e-05
        %v2224 = vadd.f32 %v2223, 0.001143296
        %v2225 = vmul.f32 %v2211, %v2224
        %v2226 = vadd.f32 %v2225, 0.014752088
        %v2227 = vmul.f32 %v2211, %v2226
        %v2228 = vadd.f32 %v2227, 0.112945676
        %v2229 = vmul.f32 %v2211, %v2228
        %v2230 = vadd.f32 %v2229, 0.4994258
        %v2231 = vmul.f32 %v2211, %v2230
        %v2232 = vadd.f32 %v2231, 1.0
        %v2233 = vrcp.pop %v2232
        %v2234 = vmul.f32 %v2232, %v2233
        %v2235 = vsub.f32 1.0, %v2234
        %v2236 = vmul.f32 %v2233, %v2235
        %v2237 = vadd.f32 %v2233, %v2236
        %vm2238 = vweird.f32 %v2232
        %vm2239 = vweird.f32 %v2233
        %vm2240 = vmor %vm2238, %vm2239
        %v2241 = vsel %vm2240, %v2233, %v2237
        %v2242 = vand.u32 2147483647, %v2232
        %vm2243 = vcmp.eq.f32.partialorder %v2242, 8.507059e+37
        %v2244 = vand.u32 %v2232, 2147483648
        %v2245 = vor.u32 1.1754944e-38, %v2244
        %v2246 = vsel %vm2243, %v2245, %v2241
        %v2247 = vmul.f32 %v2222, %v2246
        %v2248 = vmin.f32 %v2247, 1.0
        %v2249 = vmax.f32 %v2248, -1.0
        %v2250 = vmul.f32 %v1289, %v1289
        %v2251 = vmin.f32 16.0, %v2250
        %v2252 = vmul.f32 %v2251, 2.1237322e-06
        %v2253 = vadd.f32 %v2252, 0.00028619796
        %v2254 = vmul.f32 %v2251, %v2253
        %v2255 = vadd.f32 %v2254, 0.0036580483
        %v2256 = vmul.f32 %v2251, %v2255
        %v2257 = vadd.f32 %v2256, 0.05243302
        %v2258 = vmul.f32 %v2251, %v2257
        %v2259 = vadd.f32 %v2258, 0.18741608
        %v2260 = vmul.f32 %v2251, %v2259
        %v2261 = vadd.f32 %v2260, 1.1283791
        %v2262 = vmul.f32 %v1289, %v2261
        %v2263 = vmul.f32 %v2251, 3.8918573e-05
        %v2264 = vadd.f32 %v2263, 0.001143296
        %v2265 = vmul.f32 %v2251, %v2264
        %v2266 = vadd.f32 %v2265, 0.014752088
        %v2267 = vmul.f32 %v2251, %v2266
        %v2268 = vadd.f32 %v2267, 0.112945676
        %v2269 = vmul.f32 %v2251, %v2268
        %v2270 = vadd.f32 %v2269, 0.4994258
        %v2271 = vmul.f32 %v2251, %v2270
        %v2272 = vadd.f32 %v2271, 1.0
        %v2273 = vrcp.pop %v2272
        %v2274 = vmul.f32 %v2272, %v2273
        %v2275 = vsub.f32 1.0, %v2274
        %v2276 = vmul.f32 %v2273, %v2275
        %v2277 = vadd.f32 %v2273, %v2276
        %vm2278 = vweird.f32 %v2272
        %vm2279 = vweird.f32 %v2273
        %vm2280 = vmor %vm2278, %vm2279
        %v2281 = vsel %vm2280, %v2273, %v2277
        %v2282 = vand.u32 2147483647, %v2272
        %vm2283 = vcmp.eq.f32.partialorder %v2282, 8.507059e+37
        %v2284 = vand.u32 %v2272, 2147483648
        %v2285 = vor.u32 1.1754944e-38, %v2284
        %v2286 = vsel %vm2283, %v2285, %v2281
        %v2287 = vmul.f32 %v2262, %v2286
        %v2288 = vmin.f32 %v2287, 1.0
        %v2289 = vmax.f32 %v2288, -1.0
        %v2290 = vmul.f32 %v1290, %v1290
        %v2291 = vmin.f32 16.0, %v2290
        %v2292 = vmul.f32 %v2291, 2.1237322e-06
        %v2293 = vadd.f32 %v2292, 0.00028619796
        %v2294 = vmul.f32 %v2291, %v2293
        %v2295 = vadd.f32 %v2294, 0.0036580483
        %v2296 = vmul.f32 %v2291, %v2295
        %v2297 = vadd.f32 %v2296, 0.05243302
        %v2298 = vmul.f32 %v2291, %v2297
        %v2299 = vadd.f32 %v2298, 0.18741608
        %v2300 = vmul.f32 %v2291, %v2299
        %v2301 = vadd.f32 %v2300, 1.1283791
        %v2302 = vmul.f32 %v1290, %v2301
        %v2303 = vmul.f32 %v2291, 3.8918573e-05
        %v2304 = vadd.f32 %v2303, 0.001143296
        %v2305 = vmul.f32 %v2291, %v2304
        %v2306 = vadd.f32 %v2305, 0.014752088
        %v2307 = vmul.f32 %v2291, %v2306
        %v2308 = vadd.f32 %v2307, 0.112945676
        %v2309 = vmul.f32 %v2291, %v2308
        %v2310 = vadd.f32 %v2309, 0.4994258
        %v2311 = vmul.f32 %v2291, %v2310
        %v2312 = vadd.f32 %v2311, 1.0
        %v2313 = vrcp.pop %v2312
        %v2314 = vmul.f32 %v2312, %v2313
        %v2315 = vsub.f32 1.0, %v2314
        %v2316 = vmul.f32 %v2313, %v2315
        %v2317 = vadd.f32 %v2313, %v2316
        %vm2318 = vweird.f32 %v2312
        %vm2319 = vweird.f32 %v2313
        %vm2320 = vmor %vm2318, %vm2319
        %v2321 = vsel %vm2320, %v2313, %v2317
        %v2322 = vand.u32 2147483647, %v2312
        %vm2323 = vcmp.eq.f32.partialorder %v2322, 8.507059e+37
        %v2324 = vand.u32 %v2312, 2147483648
        %v2325 = vor.u32 1.1754944e-38, %v2324
        %v2326 = vsel %vm2323, %v2325, %v2321
        %v2327 = vmul.f32 %v2302, %v2326
        %v2328 = vmin.f32 %v2327, 1.0
        %v2329 = vmax.f32 %v2328, -1.0
        %v2330 = vmul.f32 %v1291, %v1291
        %v2331 = vmin.f32 16.0, %v2330
        %v2332 = vmul.f32 %v2331, 2.1237322e-06
        %v2333 = vadd.f32 %v2332, 0.00028619796
        %v2334 = vmul.f32 %v2331, %v2333
        %v2335 = vadd.f32 %v2334, 0.0036580483
        %v2336 = vmul.f32 %v2331, %v2335
        %v2337 = vadd.f32 %v2336, 0.05243302
        %v2338 = vmul.f32 %v2331, %v2337
        %v2339 = vadd.f32 %v2338, 0.18741608
        %v2340 = vmul.f32 %v2331, %v2339
        %v2341 = vadd.f32 %v2340, 1.1283791
        %v2342 = vmul.f32 %v1291, %v2341
        %v2343 = vmul.f32 %v2331, 3.8918573e-05
        %v2344 = vadd.f32 %v2343, 0.001143296
        %v2345 = vmul.f32 %v2331, %v2344
        %v2346 = vadd.f32 %v2345, 0.014752088
        %v2347 = vmul.f32 %v2331, %v2346
        %v2348 = vadd.f32 %v2347, 0.112945676
        %v2349 = vmul.f32 %v2331, %v2348
        %v2350 = vadd.f32 %v2349, 0.4994258
        %v2351 = vmul.f32 %v2331, %v2350
        %v2352 = vadd.f32 %v2351, 1.0
        %v2353 = vrcp.pop %v2352
        %v2354 = vmul.f32 %v2352, %v2353
        %v2355 = vsub.f32 1.0, %v2354
        %v2356 = vmul.f32 %v2353, %v2355
        %v2357 = vadd.f32 %v2353, %v2356
        %vm2358 = vweird.f32 %v2352
        %vm2359 = vweird.f32 %v2353
        %vm2360 = vmor %vm2358, %vm2359
        %v2361 = vsel %vm2360, %v2353, %v2357
        %v2362 = vand.u32 2147483647, %v2352
        %vm2363 = vcmp.eq.f32.partialorder %v2362, 8.507059e+37
        %v2364 = vand.u32 %v2352, 2147483648
        %v2365 = vor.u32 1.1754944e-38, %v2364
        %v2366 = vsel %vm2363, %v2365, %v2361
        %v2367 = vmul.f32 %v2342, %v2366
        %v2368 = vmin.f32 %v2367, 1.0
        %v2369 = vmax.f32 %v2368, -1.0
        %v2370 = vmul.f32 %v1292, %v1292
        %v2371 = vmin.f32 16.0, %v2370
        %v2372 = vmul.f32 %v2371, 2.1237322e-06
        %v2373 = vadd.f32 %v2372, 0.00028619796
        %v2374 = vmul.f32 %v2371, %v2373
        %v2375 = vadd.f32 %v2374, 0.0036580483
        %v2376 = vmul.f32 %v2371, %v2375
        %v2377 = vadd.f32 %v2376, 0.05243302
        %v2378 = vmul.f32 %v2371, %v2377
        %v2379 = vadd.f32 %v2378, 0.18741608
        %v2380 = vmul.f32 %v2371, %v2379
        %v2381 = vadd.f32 %v2380, 1.1283791
        %v2382 = vmul.f32 %v1292, %v2381
        %v2383 = vmul.f32 %v2371, 3.8918573e-05
        %v2384 = vadd.f32 %v2383, 0.001143296
        %v2385 = vmul.f32 %v2371, %v2384
        %v2386 = vadd.f32 %v2385, 0.014752088
        %v2387 = vmul.f32 %v2371, %v2386
        %v2388 = vadd.f32 %v2387, 0.112945676
        %v2389 = vmul.f32 %v2371, %v2388
        %v2390 = vadd.f32 %v2389, 0.4994258
        %v2391 = vmul.f32 %v2371, %v2390
        %v2392 = vadd.f32 %v2391, 1.0
        %v2393 = vrcp.pop %v2392
        %v2394 = vmul.f32 %v2392, %v2393
        %v2395 = vsub.f32 1.0, %v2394
        %v2396 = vmul.f32 %v2393, %v2395
        %v2397 = vadd.f32 %v2393, %v2396
        %vm2398 = vweird.f32 %v2392
        %vm2399 = vweird.f32 %v2393
        %vm2400 = vmor %vm2398, %vm2399
        %v2401 = vsel %vm2400, %v2393, %v2397
        %v2402 = vand.u32 2147483647, %v2392
        %vm2403 = vcmp.eq.f32.partialorder %v2402, 8.507059e+37
        %v2404 = vand.u32 %v2392, 2147483648
        %v2405 = vor.u32 1.1754944e-38, %v2404
        %v2406 = vsel %vm2403, %v2405, %v2401
        %v2407 = vmul.f32 %v2382, %v2406
        %v2408 = vmin.f32 %v2407, 1.0
        %v2409 = vmax.f32 %v2408, -1.0
        %v2410 = vmul.f32 %v1293, %v1293
        %v2411 = vmin.f32 16.0, %v2410
        %v2412 = vmul.f32 %v2411, 2.1237322e-06
        %v2413 = vadd.f32 %v2412, 0.00028619796
        %v2414 = vmul.f32 %v2411, %v2413
        %v2415 = vadd.f32 %v2414, 0.0036580483
        %v2416 = vmul.f32 %v2411, %v2415
        %v2417 = vadd.f32 %v2416, 0.05243302
        %v2418 = vmul.f32 %v2411, %v2417
        %v2419 = vadd.f32 %v2418, 0.18741608
        %v2420 = vmul.f32 %v2411, %v2419
        %v2421 = vadd.f32 %v2420, 1.1283791
        %v2422 = vmul.f32 %v1293, %v2421
        %v2423 = vmul.f32 %v2411, 3.8918573e-05
        %v2424 = vadd.f32 %v2423, 0.001143296
        %v2425 = vmul.f32 %v2411, %v2424
        %v2426 = vadd.f32 %v2425, 0.014752088
        %v2427 = vmul.f32 %v2411, %v2426
        %v2428 = vadd.f32 %v2427, 0.112945676
        %v2429 = vmul.f32 %v2411, %v2428
        %v2430 = vadd.f32 %v2429, 0.4994258
        %v2431 = vmul.f32 %v2411, %v2430
        %v2432 = vadd.f32 %v2431, 1.0
        %v2433 = vrcp.pop %v2432
        %v2434 = vmul.f32 %v2432, %v2433
        %v2435 = vsub.f32 1.0, %v2434
        %v2436 = vmul.f32 %v2433, %v2435
        %v2437 = vadd.f32 %v2433, %v2436
        %vm2438 = vweird.f32 %v2432
        %vm2439 = vweird.f32 %v2433
        %vm2440 = vmor %vm2438, %vm2439
        %v2441 = vsel %vm2440, %v2433, %v2437
        %v2442 = vand.u32 2147483647, %v2432
        %vm2443 = vcmp.eq.f32.partialorder %v2442, 8.507059e+37
        %v2444 = vand.u32 %v2432, 2147483648
        %v2445 = vor.u32 1.1754944e-38, %v2444
        %v2446 = vsel %vm2443, %v2445, %v2441
        %v2447 = vmul.f32 %v2422, %v2446
        %v2448 = vmin.f32 %v2447, 1.0
        %v2449 = vmax.f32 %v2448, -1.0
        %v2450 = vmul.f32 %v1294, %v1294
        %v2451 = vmin.f32 16.0, %v2450
        %v2452 = vmul.f32 %v2451, 2.1237322e-06
        %v2453 = vadd.f32 %v2452, 0.00028619796
        %v2454 = vmul.f32 %v2451, %v2453
        %v2455 = vadd.f32 %v2454, 0.0036580483
        %v2456 = vmul.f32 %v2451, %v2455
        %v2457 = vadd.f32 %v2456, 0.05243302
        %v2458 = vmul.f32 %v2451, %v2457
        %v2459 = vadd.f32 %v2458, 0.18741608
        %v2460 = vmul.f32 %v2451, %v2459
        %v2461 = vadd.f32 %v2460, 1.1283791
        %v2462 = vmul.f32 %v1294, %v2461
        %v2463 = vmul.f32 %v2451, 3.8918573e-05
        %v2464 = vadd.f32 %v2463, 0.001143296
        %v2465 = vmul.f32 %v2451, %v2464
        %v2466 = vadd.f32 %v2465, 0.014752088
        %v2467 = vmul.f32 %v2451, %v2466
        %v2468 = vadd.f32 %v2467, 0.112945676
        %v2469 = vmul.f32 %v2451, %v2468
        %v2470 = vadd.f32 %v2469, 0.4994258
        %v2471 = vmul.f32 %v2451, %v2470
        %v2472 = vadd.f32 %v2471, 1.0
        %v2473 = vrcp.pop %v2472
        %v2474 = vmul.f32 %v2472, %v2473
        %v2475 = vsub.f32 1.0, %v2474
        %v2476 = vmul.f32 %v2473, %v2475
        %v2477 = vadd.f32 %v2473, %v2476
        %vm2478 = vweird.f32 %v2472
        %vm2479 = vweird.f32 %v2473
        %vm2480 = vmor %vm2478, %vm2479
        %v2481 = vsel %vm2480, %v2473, %v2477
        %v2482 = vand.u32 2147483647, %v2472
        %vm2483 = vcmp.eq.f32.partialorder %v2482, 8.507059e+37
        %v2484 = vand.u32 %v2472, 2147483648
        %v2485 = vor.u32 1.1754944e-38, %v2484
        %v2486 = vsel %vm2483, %v2485, %v2481
        %v2487 = vmul.f32 %v2462, %v2486
        %v2488 = vmin.f32 %v2487, 1.0
        %v2489 = vmax.f32 %v2488, -1.0
        %v2490 = vmul.f32 %v1295, %v1295
        %v2491 = vmin.f32 16.0, %v2490
        %v2492 = vmul.f32 %v2491, 2.1237322e-06
        %v2493 = vadd.f32 %v2492, 0.00028619796
        %v2494 = vmul.f32 %v2491, %v2493
        %v2495 = vadd.f32 %v2494, 0.0036580483
        %v2496 = vmul.f32 %v2491, %v2495
        %v2497 = vadd.f32 %v2496, 0.05243302
        %v2498 = vmul.f32 %v2491, %v2497
        %v2499 = vadd.f32 %v2498, 0.18741608
        %v2500 = vmul.f32 %v2491, %v2499
        %v2501 = vadd.f32 %v2500, 1.1283791
        %v2502 = vmul.f32 %v1295, %v2501
        %v2503 = vmul.f32 %v2491, 3.8918573e-05
        %v2504 = vadd.f32 %v2503, 0.001143296
        %v2505 = vmul.f32 %v2491, %v2504
        %v2506 = vadd.f32 %v2505, 0.014752088
        %v2507 = vmul.f32 %v2491, %v2506
        %v2508 = vadd.f32 %v2507, 0.112945676
        %v2509 = vmul.f32 %v2491, %v2508
        %v2510 = vadd.f32 %v2509, 0.4994258
        %v2511 = vmul.f32 %v2491, %v2510
        %v2512 = vadd.f32 %v2511, 1.0
        %v2513 = vrcp.pop %v2512
        %v2514 = vmul.f32 %v2512, %v2513
        %v2515 = vsub.f32 1.0, %v2514
        %v2516 = vmul.f32 %v2513, %v2515
        %v2517 = vadd.f32 %v2513, %v2516
        %vm2518 = vweird.f32 %v2512
        %vm2519 = vweird.f32 %v2513
        %vm2520 = vmor %vm2518, %vm2519
        %v2521 = vsel %vm2520, %v2513, %v2517
        %v2522 = vand.u32 2147483647, %v2512
        %vm2523 = vcmp.eq.f32.partialorder %v2522, 8.507059e+37
        %v2524 = vand.u32 %v2512, 2147483648
        %v2525 = vor.u32 1.1754944e-38, %v2524
        %v2526 = vsel %vm2523, %v2525, %v2521
        %v2527 = vmul.f32 %v2502, %v2526
        %v2528 = vmin.f32 %v2527, 1.0
        %v2529 = vmax.f32 %v2528, -1.0
        %v2530 = vmul.f32 %v1296, %v1296
        %v2531 = vmin.f32 16.0, %v2530
        %v2532 = vmul.f32 %v2531, 2.1237322e-06
        %v2533 = vadd.f32 %v2532, 0.00028619796
        %v2534 = vmul.f32 %v2531, %v2533
        %v2535 = vadd.f32 %v2534, 0.0036580483
        %v2536 = vmul.f32 %v2531, %v2535
        %v2537 = vadd.f32 %v2536, 0.05243302
        %v2538 = vmul.f32 %v2531, %v2537
        %v2539 = vadd.f32 %v2538, 0.18741608
        %v2540 = vmul.f32 %v2531, %v2539
        %v2541 = vadd.f32 %v2540, 1.1283791
        %v2542 = vmul.f32 %v1296, %v2541
        %v2543 = vmul.f32 %v2531, 3.8918573e-05
        %v2544 = vadd.f32 %v2543, 0.001143296
        %v2545 = vmul.f32 %v2531, %v2544
        %v2546 = vadd.f32 %v2545, 0.014752088
        %v2547 = vmul.f32 %v2531, %v2546
        %v2548 = vadd.f32 %v2547, 0.112945676
        %v2549 = vmul.f32 %v2531, %v2548
        %v2550 = vadd.f32 %v2549, 0.4994258
        %v2551 = vmul.f32 %v2531, %v2550
        %v2552 = vadd.f32 %v2551, 1.0
        %v2553 = vrcp.pop %v2552
        %v2554 = vmul.f32 %v2552, %v2553
        %v2555 = vsub.f32 1.0, %v2554
        %v2556 = vmul.f32 %v2553, %v2555
        %v2557 = vadd.f32 %v2553, %v2556
        %vm2558 = vweird.f32 %v2552
        %vm2559 = vweird.f32 %v2553
        %vm2560 = vmor %vm2558, %vm2559
        %v2561 = vsel %vm2560, %v2553, %v2557
        %v2562 = vand.u32 2147483647, %v2552
        %vm2563 = vcmp.eq.f32.partialorder %v2562, 8.507059e+37
        %v2564 = vand.u32 %v2552, 2147483648
        %v2565 = vor.u32 1.1754944e-38, %v2564
        %v2566 = vsel %vm2563, %v2565, %v2561
        %v2567 = vmul.f32 %v2542, %v2566
        %v2568 = vmin.f32 %v2567, 1.0
        %v2569 = vmax.f32 %v2568, -1.0
        %v2570 = vmul.f32 %v1297, %v1297
        %v2571 = vmin.f32 16.0, %v2570
        %v2572 = vmul.f32 %v2571, 2.1237322e-06
        %v2573 = vadd.f32 %v2572, 0.00028619796
        %v2574 = vmul.f32 %v2571, %v2573
        %v2575 = vadd.f32 %v2574, 0.0036580483
        %v2576 = vmul.f32 %v2571, %v2575
        %v2577 = vadd.f32 %v2576, 0.05243302
        %v2578 = vmul.f32 %v2571, %v2577
        %v2579 = vadd.f32 %v2578, 0.18741608
        %v2580 = vmul.f32 %v2571, %v2579
        %v2581 = vadd.f32 %v2580, 1.1283791
        %v2582 = vmul.f32 %v1297, %v2581
        %v2583 = vmul.f32 %v2571, 3.8918573e-05
        %v2584 = vadd.f32 %v2583, 0.001143296
        %v2585 = vmul.f32 %v2571, %v2584
        %v2586 = vadd.f32 %v2585, 0.014752088
        %v2587 = vmul.f32 %v2571, %v2586
        %v2588 = vadd.f32 %v2587, 0.112945676
        %v2589 = vmul.f32 %v2571, %v2588
        %v2590 = vadd.f32 %v2589, 0.4994258
        %v2591 = vmul.f32 %v2571, %v2590
        %v2592 = vadd.f32 %v2591, 1.0
        %v2593 = vrcp.pop %v2592
        %v2594 = vmul.f32 %v2592, %v2593
        %v2595 = vsub.f32 1.0, %v2594
        %v2596 = vmul.f32 %v2593, %v2595
        %v2597 = vadd.f32 %v2593, %v2596
        %vm2598 = vweird.f32 %v2592
        %vm2599 = vweird.f32 %v2593
        %vm2600 = vmor %vm2598, %vm2599
        %v2601 = vsel %vm2600, %v2593, %v2597
        %v2602 = vand.u32 2147483647, %v2592
        %vm2603 = vcmp.eq.f32.partialorder %v2602, 8.507059e+37
        %v2604 = vand.u32 %v2592, 2147483648
        %v2605 = vor.u32 1.1754944e-38, %v2604
        %v2606 = vsel %vm2603, %v2605, %v2601
        %v2607 = vmul.f32 %v2582, %v2606
        %v2608 = vmin.f32 %v2607, 1.0
        %v2609 = vmax.f32 %v2608, -1.0
        %v2610 = vmul.f32 %v1298, %v1298
        %v2611 = vmin.f32 16.0, %v2610
        %v2612 = vmul.f32 %v2611, 2.1237322e-06
        %v2613 = vadd.f32 %v2612, 0.00028619796
        %v2614 = vmul.f32 %v2611, %v2613
        %v2615 = vadd.f32 %v2614, 0.0036580483
        %v2616 = vmul.f32 %v2611, %v2615
        %v2617 = vadd.f32 %v2616, 0.05243302
        %v2618 = vmul.f32 %v2611, %v2617
        %v2619 = vadd.f32 %v2618, 0.18741608
        %v2620 = vmul.f32 %v2611, %v2619
        %v2621 = vadd.f32 %v2620, 1.1283791
        %v2622 = vmul.f32 %v1298, %v2621
        %v2623 = vmul.f32 %v2611, 3.8918573e-05
        %v2624 = vadd.f32 %v2623, 0.001143296
        %v2625 = vmul.f32 %v2611, %v2624
        %v2626 = vadd.f32 %v2625, 0.014752088
        %v2627 = vmul.f32 %v2611, %v2626
        %v2628 = vadd.f32 %v2627, 0.112945676
        %v2629 = vmul.f32 %v2611, %v2628
        %v2630 = vadd.f32 %v2629, 0.4994258
        %v2631 = vmul.f32 %v2611, %v2630
        %v2632 = vadd.f32 %v2631, 1.0
        %v2633 = vrcp.pop %v2632
        %v2634 = vmul.f32 %v2632, %v2633
        %v2635 = vsub.f32 1.0, %v2634
        %v2636 = vmul.f32 %v2633, %v2635
        %v2637 = vadd.f32 %v2633, %v2636
        %vm2638 = vweird.f32 %v2632
        %vm2639 = vweird.f32 %v2633
        %vm2640 = vmor %vm2638, %vm2639
        %v2641 = vsel %vm2640, %v2633, %v2637
        %v2642 = vand.u32 2147483647, %v2632
        %vm2643 = vcmp.eq.f32.partialorder %v2642, 8.507059e+37
        %v2644 = vand.u32 %v2632, 2147483648
        %v2645 = vor.u32 1.1754944e-38, %v2644
        %v2646 = vsel %vm2643, %v2645, %v2641
        %v2647 = vmul.f32 %v2622, %v2646
        %v2648 = vmin.f32 %v2647, 1.0
        %v2649 = vmax.f32 %v2648, -1.0
        %v2650 = vmul.f32 %v1299, %v1299
        %v2651 = vmin.f32 16.0, %v2650
        %v2652 = vmul.f32 %v2651, 2.1237322e-06
        %v2653 = vadd.f32 %v2652, 0.00028619796
        %v2654 = vmul.f32 %v2651, %v2653
        %v2655 = vadd.f32 %v2654, 0.0036580483
        %v2656 = vmul.f32 %v2651, %v2655
        %v2657 = vadd.f32 %v2656, 0.05243302
        %v2658 = vmul.f32 %v2651, %v2657
        %v2659 = vadd.f32 %v2658, 0.18741608
        %v2660 = vmul.f32 %v2651, %v2659
        %v2661 = vadd.f32 %v2660, 1.1283791
        %v2662 = vmul.f32 %v1299, %v2661
        %v2663 = vmul.f32 %v2651, 3.8918573e-05
        %v2664 = vadd.f32 %v2663, 0.001143296
        %v2665 = vmul.f32 %v2651, %v2664
        %v2666 = vadd.f32 %v2665, 0.014752088
        %v2667 = vmul.f32 %v2651, %v2666
        %v2668 = vadd.f32 %v2667, 0.112945676
        %v2669 = vmul.f32 %v2651, %v2668
        %v2670 = vadd.f32 %v2669, 0.4994258
        %v2671 = vmul.f32 %v2651, %v2670
        %v2672 = vadd.f32 %v2671, 1.0
        %v2673 = vrcp.pop %v2672
        %v2674 = vmul.f32 %v2672, %v2673
        %v2675 = vsub.f32 1.0, %v2674
        %v2676 = vmul.f32 %v2673, %v2675
        %v2677 = vadd.f32 %v2673, %v2676
        %vm2678 = vweird.f32 %v2672
        %vm2679 = vweird.f32 %v2673
        %vm2680 = vmor %vm2678, %vm2679
        %v2681 = vsel %vm2680, %v2673, %v2677
        %v2682 = vand.u32 2147483647, %v2672
        %vm2683 = vcmp.eq.f32.partialorder %v2682, 8.507059e+37
        %v2684 = vand.u32 %v2672, 2147483648
        %v2685 = vor.u32 1.1754944e-38, %v2684
        %v2686 = vsel %vm2683, %v2685, %v2681
        %v2687 = vmul.f32 %v2662, %v2686
        %v2688 = vmin.f32 %v2687, 1.0
        %v2689 = vmax.f32 %v2688, -1.0
        %v2690 = vmul.f32 %v1300, %v1300
        %v2691 = vmin.f32 16.0, %v2690
        %v2692 = vmul.f32 %v2691, 2.1237322e-06
        %v2693 = vadd.f32 %v2692, 0.00028619796
        %v2694 = vmul.f32 %v2691, %v2693
        %v2695 = vadd.f32 %v2694, 0.0036580483
        %v2696 = vmul.f32 %v2691, %v2695
        %v2697 = vadd.f32 %v2696, 0.05243302
        %v2698 = vmul.f32 %v2691, %v2697
        %v2699 = vadd.f32 %v2698, 0.18741608
        %v2700 = vmul.f32 %v2691, %v2699
        %v2701 = vadd.f32 %v2700, 1.1283791
        %v2702 = vmul.f32 %v1300, %v2701
        %v2703 = vmul.f32 %v2691, 3.8918573e-05
        %v2704 = vadd.f32 %v2703, 0.001143296
        %v2705 = vmul.f32 %v2691, %v2704
        %v2706 = vadd.f32 %v2705, 0.014752088
        %v2707 = vmul.f32 %v2691, %v2706
        %v2708 = vadd.f32 %v2707, 0.112945676
        %v2709 = vmul.f32 %v2691, %v2708
        %v2710 = vadd.f32 %v2709, 0.4994258
        %v2711 = vmul.f32 %v2691, %v2710
        %v2712 = vadd.f32 %v2711, 1.0
        %v2713 = vrcp.pop %v2712
        %v2714 = vmul.f32 %v2712, %v2713
        %v2715 = vsub.f32 1.0, %v2714
        %v2716 = vmul.f32 %v2713, %v2715
        %v2717 = vadd.f32 %v2713, %v2716
        %vm2718 = vweird.f32 %v2712
        %vm2719 = vweird.f32 %v2713
        %vm2720 = vmor %vm2718, %vm2719
        %v2721 = vsel %vm2720, %v2713, %v2717
        %v2722 = vand.u32 2147483647, %v2712
        %vm2723 = vcmp.eq.f32.partialorder %v2722, 8.507059e+37
        %v2724 = vand.u32 %v2712, 2147483648
        %v2725 = vor.u32 1.1754944e-38, %v2724
        %v2726 = vsel %vm2723, %v2725, %v2721
        %v2727 = vmul.f32 %v2702, %v2726
        %v2728 = vmin.f32 %v2727, 1.0
        %v2729 = vmax.f32 %v2728, -1.0
        %v2730 = vmul.f32 %v1301, %v1301
        %v2731 = vmin.f32 16.0, %v2730
        %v2732 = vmul.f32 %v2731, 2.1237322e-06
        %v2733 = vadd.f32 %v2732, 0.00028619796
        %v2734 = vmul.f32 %v2731, %v2733
        %v2735 = vadd.f32 %v2734, 0.0036580483
        %v2736 = vmul.f32 %v2731, %v2735
        %v2737 = vadd.f32 %v2736, 0.05243302
        %v2738 = vmul.f32 %v2731, %v2737
        %v2739 = vadd.f32 %v2738, 0.18741608
        %v2740 = vmul.f32 %v2731, %v2739
        %v2741 = vadd.f32 %v2740, 1.1283791
        %v2742 = vmul.f32 %v1301, %v2741
        %v2743 = vmul.f32 %v2731, 3.8918573e-05
        %v2744 = vadd.f32 %v2743, 0.001143296
        %v2745 = vmul.f32 %v2731, %v2744
        %v2746 = vadd.f32 %v2745, 0.014752088
        %v2747 = vmul.f32 %v2731, %v2746
        %v2748 = vadd.f32 %v2747, 0.112945676
        %v2749 = vmul.f32 %v2731, %v2748
        %v2750 = vadd.f32 %v2749, 0.4994258
        %v2751 = vmul.f32 %v2731, %v2750
        %v2752 = vadd.f32 %v2751, 1.0
        %v2753 = vrcp.pop %v2752
        %v2754 = vmul.f32 %v2752, %v2753
        %v2755 = vsub.f32 1.0, %v2754
        %v2756 = vmul.f32 %v2753, %v2755
        %v2757 = vadd.f32 %v2753, %v2756
        %vm2758 = vweird.f32 %v2752
        %vm2759 = vweird.f32 %v2753
        %vm2760 = vmor %vm2758, %vm2759
        %v2761 = vsel %vm2760, %v2753, %v2757
        %v2762 = vand.u32 2147483647, %v2752
        %vm2763 = vcmp.eq.f32.partialorder %v2762, 8.507059e+37
        %v2764 = vand.u32 %v2752, 2147483648
        %v2765 = vor.u32 1.1754944e-38, %v2764
        %v2766 = vsel %vm2763, %v2765, %v2761
        %v2767 = vmul.f32 %v2742, %v2766
        %v2768 = vmin.f32 %v2767, 1.0
        %v2769 = vmax.f32 %v2768, -1.0
        %v2770 = vmul.f32 %v1302, %v1302
        %v2771 = vmin.f32 16.0, %v2770
        %v2772 = vmul.f32 %v2771, 2.1237322e-06
        %v2773 = vadd.f32 %v2772, 0.00028619796
        %v2774 = vmul.f32 %v2771, %v2773
        %v2775 = vadd.f32 %v2774, 0.0036580483
        %v2776 = vmul.f32 %v2771, %v2775
        %v2777 = vadd.f32 %v2776, 0.05243302
        %v2778 = vmul.f32 %v2771, %v2777
        %v2779 = vadd.f32 %v2778, 0.18741608
        %v2780 = vmul.f32 %v2771, %v2779
        %v2781 = vadd.f32 %v2780, 1.1283791
        %v2782 = vmul.f32 %v1302, %v2781
        %v2783 = vmul.f32 %v2771, 3.8918573e-05
        %v2784 = vadd.f32 %v2783, 0.001143296
        %v2785 = vmul.f32 %v2771, %v2784
        %v2786 = vadd.f32 %v2785, 0.014752088
        %v2787 = vmul.f32 %v2771, %v2786
        %v2788 = vadd.f32 %v2787, 0.112945676
        %v2789 = vmul.f32 %v2771, %v2788
        %v2790 = vadd.f32 %v2789, 0.4994258
        %v2791 = vmul.f32 %v2771, %v2790
        %v2792 = vadd.f32 %v2791, 1.0
        %v2793 = vrcp.pop %v2792
        %v2794 = vmul.f32 %v2792, %v2793
        %v2795 = vsub.f32 1.0, %v2794
        %v2796 = vmul.f32 %v2793, %v2795
        %v2797 = vadd.f32 %v2793, %v2796
        %vm2798 = vweird.f32 %v2792
        %vm2799 = vweird.f32 %v2793
        %vm2800 = vmor %vm2798, %vm2799
        %v2801 = vsel %vm2800, %v2793, %v2797
        %v2802 = vand.u32 2147483647, %v2792
        %vm2803 = vcmp.eq.f32.partialorder %v2802, 8.507059e+37
        %v2804 = vand.u32 %v2792, 2147483648
        %v2805 = vor.u32 1.1754944e-38, %v2804
        %v2806 = vsel %vm2803, %v2805, %v2801
        %v2807 = vmul.f32 %v2782, %v2806
        %v2808 = vmin.f32 %v2807, 1.0
        %v2809 = vmax.f32 %v2808, -1.0
        %v2810 = vmul.f32 %v1303, %v1303
        %v2811 = vmin.f32 16.0, %v2810
        %v2812 = vmul.f32 %v2811, 2.1237322e-06
        %v2813 = vadd.f32 %v2812, 0.00028619796
        %v2814 = vmul.f32 %v2811, %v2813
        %v2815 = vadd.f32 %v2814, 0.0036580483
        %v2816 = vmul.f32 %v2811, %v2815
        %v2817 = vadd.f32 %v2816, 0.05243302
        %v2818 = vmul.f32 %v2811, %v2817
        %v2819 = vadd.f32 %v2818, 0.18741608
        %v2820 = vmul.f32 %v2811, %v2819
        %v2821 = vadd.f32 %v2820, 1.1283791
        %v2822 = vmul.f32 %v1303, %v2821
        %v2823 = vmul.f32 %v2811, 3.8918573e-05
        %v2824 = vadd.f32 %v2823, 0.001143296
        %v2825 = vmul.f32 %v2811, %v2824
        %v2826 = vadd.f32 %v2825, 0.014752088
        %v2827 = vmul.f32 %v2811, %v2826
        %v2828 = vadd.f32 %v2827, 0.112945676
        %v2829 = vmul.f32 %v2811, %v2828
        %v2830 = vadd.f32 %v2829, 0.4994258
        %v2831 = vmul.f32 %v2811, %v2830
        %v2832 = vadd.f32 %v2831, 1.0
        %v2833 = vrcp.pop %v2832
        %v2834 = vmul.f32 %v2832, %v2833
        %v2835 = vsub.f32 1.0, %v2834
        %v2836 = vmul.f32 %v2833, %v2835
        %v2837 = vadd.f32 %v2833, %v2836
        %vm2838 = vweird.f32 %v2832
        %vm2839 = vweird.f32 %v2833
        %vm2840 = vmor %vm2838, %vm2839
        %v2841 = vsel %vm2840, %v2833, %v2837
        %v2842 = vand.u32 2147483647, %v2832
        %vm2843 = vcmp.eq.f32.partialorder %v2842, 8.507059e+37
        %v2844 = vand.u32 %v2832, 2147483648
        %v2845 = vor.u32 1.1754944e-38, %v2844
        %v2846 = vsel %vm2843, %v2845, %v2841
        %v2847 = vmul.f32 %v2822, %v2846
        %v2848 = vmin.f32 %v2847, 1.0
        %v2849 = vmax.f32 %v2848, -1.0
        %v2850 = vmul.f32 %v1304, %v1304
        %v2851 = vmin.f32 16.0, %v2850
        %v2852 = vmul.f32 %v2851, 2.1237322e-06
        %v2853 = vadd.f32 %v2852, 0.00028619796
        %v2854 = vmul.f32 %v2851, %v2853
        %v2855 = vadd.f32 %v2854, 0.0036580483
        %v2856 = vmul.f32 %v2851, %v2855
        %v2857 = vadd.f32 %v2856, 0.05243302
        %v2858 = vmul.f32 %v2851, %v2857
        %v2859 = vadd.f32 %v2858, 0.18741608
        %v2860 = vmul.f32 %v2851, %v2859
        %v2861 = vadd.f32 %v2860, 1.1283791
        %v2862 = vmul.f32 %v1304, %v2861
        %v2863 = vmul.f32 %v2851, 3.8918573e-05
        %v2864 = vadd.f32 %v2863, 0.001143296
        %v2865 = vmul.f32 %v2851, %v2864
        %v2866 = vadd.f32 %v2865, 0.014752088
        %v2867 = vmul.f32 %v2851, %v2866
        %v2868 = vadd.f32 %v2867, 0.112945676
        %v2869 = vmul.f32 %v2851, %v2868
        %v2870 = vadd.f32 %v2869, 0.4994258
        %v2871 = vmul.f32 %v2851, %v2870
        %v2872 = vadd.f32 %v2871, 1.0
        %v2873 = vrcp.pop %v2872
        %v2874 = vmul.f32 %v2872, %v2873
        %v2875 = vsub.f32 1.0, %v2874
        %v2876 = vmul.f32 %v2873, %v2875
        %v2877 = vadd.f32 %v2873, %v2876
        %vm2878 = vweird.f32 %v2872
        %vm2879 = vweird.f32 %v2873
        %vm2880 = vmor %vm2878, %vm2879
        %v2881 = vsel %vm2880, %v2873, %v2877
        %v2882 = vand.u32 2147483647, %v2872
        %vm2883 = vcmp.eq.f32.partialorder %v2882, 8.507059e+37
        %v2884 = vand.u32 %v2872, 2147483648
        %v2885 = vor.u32 1.1754944e-38, %v2884
        %v2886 = vsel %vm2883, %v2885, %v2881
        %v2887 = vmul.f32 %v2862, %v2886
        %v2888 = vmin.f32 %v2887, 1.0
        %v2889 = vmax.f32 %v2888, -1.0
        %v2890 = vmul.f32 %v1305, %v1305
        %v2891 = vmin.f32 16.0, %v2890
        %v2892 = vmul.f32 %v2891, 2.1237322e-06
        %v2893 = vadd.f32 %v2892, 0.00028619796
        %v2894 = vmul.f32 %v2891, %v2893
        %v2895 = vadd.f32 %v2894, 0.0036580483
        %v2896 = vmul.f32 %v2891, %v2895
        %v2897 = vadd.f32 %v2896, 0.05243302
        %v2898 = vmul.f32 %v2891, %v2897
        %v2899 = vadd.f32 %v2898, 0.18741608
        %v2900 = vmul.f32 %v2891, %v2899
        %v2901 = vadd.f32 %v2900, 1.1283791
        %v2902 = vmul.f32 %v1305, %v2901
        %v2903 = vmul.f32 %v2891, 3.8918573e-05
        %v2904 = vadd.f32 %v2903, 0.001143296
        %v2905 = vmul.f32 %v2891, %v2904
        %v2906 = vadd.f32 %v2905, 0.014752088
        %v2907 = vmul.f32 %v2891, %v2906
        %v2908 = vadd.f32 %v2907, 0.112945676
        %v2909 = vmul.f32 %v2891, %v2908
        %v2910 = vadd.f32 %v2909, 0.4994258
        %v2911 = vmul.f32 %v2891, %v2910
        %v2912 = vadd.f32 %v2911, 1.0
        %v2913 = vrcp.pop %v2912
        %v2914 = vmul.f32 %v2912, %v2913
        %v2915 = vsub.f32 1.0, %v2914
        %v2916 = vmul.f32 %v2913, %v2915
        %v2917 = vadd.f32 %v2913, %v2916
        %vm2918 = vweird.f32 %v2912
        %vm2919 = vweird.f32 %v2913
        %vm2920 = vmor %vm2918, %vm2919
        %v2921 = vsel %vm2920, %v2913, %v2917
        %v2922 = vand.u32 2147483647, %v2912
        %vm2923 = vcmp.eq.f32.partialorder %v2922, 8.507059e+37
        %v2924 = vand.u32 %v2912, 2147483648
        %v2925 = vor.u32 1.1754944e-38, %v2924
        %v2926 = vsel %vm2923, %v2925, %v2921
        %v2927 = vmul.f32 %v2902, %v2926
        %v2928 = vmin.f32 %v2927, 1.0
        %v2929 = vmax.f32 %v2928, -1.0
        %v2930 = vmul.f32 %v1306, %v1306
        %v2931 = vmin.f32 16.0, %v2930
        %v2932 = vmul.f32 %v2931, 2.1237322e-06
        %v2933 = vadd.f32 %v2932, 0.00028619796
        %v2934 = vmul.f32 %v2931, %v2933
        %v2935 = vadd.f32 %v2934, 0.0036580483
        %v2936 = vmul.f32 %v2931, %v2935
        %v2937 = vadd.f32 %v2936, 0.05243302
        %v2938 = vmul.f32 %v2931, %v2937
        %v2939 = vadd.f32 %v2938, 0.18741608
        %v2940 = vmul.f32 %v2931, %v2939
        %v2941 = vadd.f32 %v2940, 1.1283791
        %v2942 = vmul.f32 %v1306, %v2941
        %v2943 = vmul.f32 %v2931, 3.8918573e-05
        %v2944 = vadd.f32 %v2943, 0.001143296
        %v2945 = vmul.f32 %v2931, %v2944
        %v2946 = vadd.f32 %v2945, 0.014752088
        %v2947 = vmul.f32 %v2931, %v2946
        %v2948 = vadd.f32 %v2947, 0.112945676
        %v2949 = vmul.f32 %v2931, %v2948
        %v2950 = vadd.f32 %v2949, 0.4994258
        %v2951 = vmul.f32 %v2931, %v2950
        %v2952 = vadd.f32 %v2951, 1.0
        %v2953 = vrcp.pop %v2952
        %v2954 = vmul.f32 %v2952, %v2953
        %v2955 = vsub.f32 1.0, %v2954
        %v2956 = vmul.f32 %v2953, %v2955
        %v2957 = vadd.f32 %v2953, %v2956
        %vm2958 = vweird.f32 %v2952
        %vm2959 = vweird.f32 %v2953
        %vm2960 = vmor %vm2958, %vm2959
        %v2961 = vsel %vm2960, %v2953, %v2957
        %v2962 = vand.u32 2147483647, %v2952
        %vm2963 = vcmp.eq.f32.partialorder %v2962, 8.507059e+37
        %v2964 = vand.u32 %v2952, 2147483648
        %v2965 = vor.u32 1.1754944e-38, %v2964
        %v2966 = vsel %vm2963, %v2965, %v2961
        %v2967 = vmul.f32 %v2942, %v2966
        %v2968 = vmin.f32 %v2967, 1.0
        %v2969 = vmax.f32 %v2968, -1.0
        %v2970 = vmul.f32 %v1307, %v1307
        %v2971 = vmin.f32 16.0, %v2970
        %v2972 = vmul.f32 %v2971, 2.1237322e-06
        %v2973 = vadd.f32 %v2972, 0.00028619796
        %v2974 = vmul.f32 %v2971, %v2973
        %v2975 = vadd.f32 %v2974, 0.0036580483
        %v2976 = vmul.f32 %v2971, %v2975
        %v2977 = vadd.f32 %v2976, 0.05243302
        %v2978 = vmul.f32 %v2971, %v2977
        %v2979 = vadd.f32 %v2978, 0.18741608
        %v2980 = vmul.f32 %v2971, %v2979
        %v2981 = vadd.f32 %v2980, 1.1283791
        %v2982 = vmul.f32 %v1307, %v2981
        %v2983 = vmul.f32 %v2971, 3.8918573e-05
        %v2984 = vadd.f32 %v2983, 0.001143296
        %v2985 = vmul.f32 %v2971, %v2984
        %v2986 = vadd.f32 %v2985, 0.014752088
        %v2987 = vmul.f32 %v2971, %v2986
        %v2988 = vadd.f32 %v2987, 0.112945676
        %v2989 = vmul.f32 %v2971, %v2988
        %v2990 = vadd.f32 %v2989, 0.4994258
        %v2991 = vmul.f32 %v2971, %v2990
        %v2992 = vadd.f32 %v2991, 1.0
        %v2993 = vrcp.pop %v2992
        %v2994 = vmul.f32 %v2992, %v2993
        %v2995 = vsub.f32 1.0, %v2994
        %v2996 = vmul.f32 %v2993, %v2995
        %v2997 = vadd.f32 %v2993, %v2996
        %vm2998 = vweird.f32 %v2992
        %vm2999 = vweird.f32 %v2993
        %vm3000 = vmor %vm2998, %vm2999
        %v3001 = vsel %vm3000, %v2993, %v2997
        %v3002 = vand.u32 2147483647, %v2992
        %vm3003 = vcmp.eq.f32.partialorder %v3002, 8.507059e+37
        %v3004 = vand.u32 %v2992, 2147483648
        %v3005 = vor.u32 1.1754944e-38, %v3004
        %v3006 = vsel %vm3003, %v3005, %v3001
        %v3007 = vmul.f32 %v2982, %v3006
        %v3008 = vmin.f32 %v3007, 1.0
        %v3009 = vmax.f32 %v3008, -1.0
        %v3010 = vmul.f32 %v1308, %v1308
        %v3011 = vmin.f32 16.0, %v3010
        %v3012 = vmul.f32 %v3011, 2.1237322e-06
        %v3013 = vadd.f32 %v3012, 0.00028619796
        %v3014 = vmul.f32 %v3011, %v3013
        %v3015 = vadd.f32 %v3014, 0.0036580483
        %v3016 = vmul.f32 %v3011, %v3015
        %v3017 = vadd.f32 %v3016, 0.05243302
        %v3018 = vmul.f32 %v3011, %v3017
        %v3019 = vadd.f32 %v3018, 0.18741608
        %v3020 = vmul.f32 %v3011, %v3019
        %v3021 = vadd.f32 %v3020, 1.1283791
        %v3022 = vmul.f32 %v1308, %v3021
        %v3023 = vmul.f32 %v3011, 3.8918573e-05
        %v3024 = vadd.f32 %v3023, 0.001143296
        %v3025 = vmul.f32 %v3011, %v3024
        %v3026 = vadd.f32 %v3025, 0.014752088
        %v3027 = vmul.f32 %v3011, %v3026
        %v3028 = vadd.f32 %v3027, 0.112945676
        %v3029 = vmul.f32 %v3011, %v3028
        %v3030 = vadd.f32 %v3029, 0.4994258
        %v3031 = vmul.f32 %v3011, %v3030
        %v3032 = vadd.f32 %v3031, 1.0
        %v3033 = vrcp.pop %v3032
        %v3034 = vmul.f32 %v3032, %v3033
        %v3035 = vsub.f32 1.0, %v3034
        %v3036 = vmul.f32 %v3033, %v3035
        %v3037 = vadd.f32 %v3033, %v3036
        %vm3038 = vweird.f32 %v3032
        %vm3039 = vweird.f32 %v3033
        %vm3040 = vmor %vm3038, %vm3039
        %v3041 = vsel %vm3040, %v3033, %v3037
        %v3042 = vand.u32 2147483647, %v3032
        %vm3043 = vcmp.eq.f32.partialorder %v3042, 8.507059e+37
        %v3044 = vand.u32 %v3032, 2147483648
        %v3045 = vor.u32 1.1754944e-38, %v3044
        %v3046 = vsel %vm3043, %v3045, %v3041
        %v3047 = vmul.f32 %v3022, %v3046
        %v3048 = vmin.f32 %v3047, 1.0
        %v3049 = vmax.f32 %v3048, -1.0
        %v3050 = vmul.f32 %v1309, %v1309
        %v3051 = vmin.f32 16.0, %v3050
        %v3052 = vmul.f32 %v3051, 2.1237322e-06
        %v3053 = vadd.f32 %v3052, 0.00028619796
        %v3054 = vmul.f32 %v3051, %v3053
        %v3055 = vadd.f32 %v3054, 0.0036580483
        %v3056 = vmul.f32 %v3051, %v3055
        %v3057 = vadd.f32 %v3056, 0.05243302
        %v3058 = vmul.f32 %v3051, %v3057
        %v3059 = vadd.f32 %v3058, 0.18741608
        %v3060 = vmul.f32 %v3051, %v3059
        %v3061 = vadd.f32 %v3060, 1.1283791
        %v3062 = vmul.f32 %v1309, %v3061
        %v3063 = vmul.f32 %v3051, 3.8918573e-05
        %v3064 = vadd.f32 %v3063, 0.001143296
        %v3065 = vmul.f32 %v3051, %v3064
        %v3066 = vadd.f32 %v3065, 0.014752088
        %v3067 = vmul.f32 %v3051, %v3066
        %v3068 = vadd.f32 %v3067, 0.112945676
        %v3069 = vmul.f32 %v3051, %v3068
        %v3070 = vadd.f32 %v3069, 0.4994258
        %v3071 = vmul.f32 %v3051, %v3070
        %v3072 = vadd.f32 %v3071, 1.0
        %v3073 = vrcp.pop %v3072
        %v3074 = vmul.f32 %v3072, %v3073
        %v3075 = vsub.f32 1.0, %v3074
        %v3076 = vmul.f32 %v3073, %v3075
        %v3077 = vadd.f32 %v3073, %v3076
        %vm3078 = vweird.f32 %v3072
        %vm3079 = vweird.f32 %v3073
        %vm3080 = vmor %vm3078, %vm3079
        %v3081 = vsel %vm3080, %v3073, %v3077
        %v3082 = vand.u32 2147483647, %v3072
        %vm3083 = vcmp.eq.f32.partialorder %v3082, 8.507059e+37
        %v3084 = vand.u32 %v3072, 2147483648
        %v3085 = vor.u32 1.1754944e-38, %v3084
        %v3086 = vsel %vm3083, %v3085, %v3081
        %v3087 = vmul.f32 %v3062, %v3086
        %v3088 = vmin.f32 %v3087, 1.0
        %v3089 = vmax.f32 %v3088, -1.0
        %v3090 = vmul.f32 %v1310, %v1310
        %v3091 = vmin.f32 16.0, %v3090
        %v3092 = vmul.f32 %v3091, 2.1237322e-06
        %v3093 = vadd.f32 %v3092, 0.00028619796
        %v3094 = vmul.f32 %v3091, %v3093
        %v3095 = vadd.f32 %v3094, 0.0036580483
        %v3096 = vmul.f32 %v3091, %v3095
        %v3097 = vadd.f32 %v3096, 0.05243302
        %v3098 = vmul.f32 %v3091, %v3097
        %v3099 = vadd.f32 %v3098, 0.18741608
        %v3100 = vmul.f32 %v3091, %v3099
        %v3101 = vadd.f32 %v3100, 1.1283791
        %v3102 = vmul.f32 %v1310, %v3101
        %v3103 = vmul.f32 %v3091, 3.8918573e-05
        %v3104 = vadd.f32 %v3103, 0.001143296
        %v3105 = vmul.f32 %v3091, %v3104
        %v3106 = vadd.f32 %v3105, 0.014752088
        %v3107 = vmul.f32 %v3091, %v3106
        %v3108 = vadd.f32 %v3107, 0.112945676
        %v3109 = vmul.f32 %v3091, %v3108
        %v3110 = vadd.f32 %v3109, 0.4994258
        %v3111 = vmul.f32 %v3091, %v3110
        %v3112 = vadd.f32 %v3111, 1.0
        %v3113 = vrcp.pop %v3112
        %v3114 = vmul.f32 %v3112, %v3113
        %v3115 = vsub.f32 1.0, %v3114
        %v3116 = vmul.f32 %v3113, %v3115
        %v3117 = vadd.f32 %v3113, %v3116
        %vm3118 = vweird.f32 %v3112
        %vm3119 = vweird.f32 %v3113
        %vm3120 = vmor %vm3118, %vm3119
        %v3121 = vsel %vm3120, %v3113, %v3117
        %v3122 = vand.u32 2147483647, %v3112
        %vm3123 = vcmp.eq.f32.partialorder %v3122, 8.507059e+37
        %v3124 = vand.u32 %v3112, 2147483648
        %v3125 = vor.u32 1.1754944e-38, %v3124
        %v3126 = vsel %vm3123, %v3125, %v3121
        %v3127 = vmul.f32 %v3102, %v3126
        %v3128 = vmin.f32 %v3127, 1.0
        %v3129 = vmax.f32 %v3128, -1.0
        %v3130 = vmul.f32 %v1311, %v1311
        %v3131 = vmin.f32 16.0, %v3130
        %v3132 = vmul.f32 %v3131, 2.1237322e-06
        %v3133 = vadd.f32 %v3132, 0.00028619796
        %v3134 = vmul.f32 %v3131, %v3133
        %v3135 = vadd.f32 %v3134, 0.0036580483
        %v3136 = vmul.f32 %v3131, %v3135
        %v3137 = vadd.f32 %v3136, 0.05243302
        %v3138 = vmul.f32 %v3131, %v3137
        %v3139 = vadd.f32 %v3138, 0.18741608
        %v3140 = vmul.f32 %v3131, %v3139
        %v3141 = vadd.f32 %v3140, 1.1283791
        %v3142 = vmul.f32 %v1311, %v3141
        %v3143 = vmul.f32 %v3131, 3.8918573e-05
        %v3144 = vadd.f32 %v3143, 0.001143296
        %v3145 = vmul.f32 %v3131, %v3144
        %v3146 = vadd.f32 %v3145, 0.014752088
        %v3147 = vmul.f32 %v3131, %v3146
        %v3148 = vadd.f32 %v3147, 0.112945676
        %v3149 = vmul.f32 %v3131, %v3148
        %v3150 = vadd.f32 %v3149, 0.4994258
        %v3151 = vmul.f32 %v3131, %v3150
        %v3152 = vadd.f32 %v3151, 1.0
        %v3153 = vrcp.pop %v3152
        %v3154 = vmul.f32 %v3152, %v3153
        %v3155 = vsub.f32 1.0, %v3154
        %v3156 = vmul.f32 %v3153, %v3155
        %v3157 = vadd.f32 %v3153, %v3156
        %vm3158 = vweird.f32 %v3152
        %vm3159 = vweird.f32 %v3153
        %vm3160 = vmor %vm3158, %vm3159
        %v3161 = vsel %vm3160, %v3153, %v3157
        %v3162 = vand.u32 2147483647, %v3152
        %vm3163 = vcmp.eq.f32.partialorder %v3162, 8.507059e+37
        %v3164 = vand.u32 %v3152, 2147483648
        %v3165 = vor.u32 1.1754944e-38, %v3164
        %v3166 = vsel %vm3163, %v3165, %v3161
        %v3167 = vmul.f32 %v3142, %v3166
        %v3168 = vmin.f32 %v3167, 1.0
        %v3169 = vmax.f32 %v3168, -1.0
        %v3170 = vmul.f32 %v1312, %v1312
        %v3171 = vmin.f32 16.0, %v3170
        %v3172 = vmul.f32 %v3171, 2.1237322e-06
        %v3173 = vadd.f32 %v3172, 0.00028619796
        %v3174 = vmul.f32 %v3171, %v3173
        %v3175 = vadd.f32 %v3174, 0.0036580483
        %v3176 = vmul.f32 %v3171, %v3175
        %v3177 = vadd.f32 %v3176, 0.05243302
        %v3178 = vmul.f32 %v3171, %v3177
        %v3179 = vadd.f32 %v3178, 0.18741608
        %v3180 = vmul.f32 %v3171, %v3179
        %v3181 = vadd.f32 %v3180, 1.1283791
        %v3182 = vmul.f32 %v1312, %v3181
        %v3183 = vmul.f32 %v3171, 3.8918573e-05
        %v3184 = vadd.f32 %v3183, 0.001143296
        %v3185 = vmul.f32 %v3171, %v3184
        %v3186 = vadd.f32 %v3185, 0.014752088
        %v3187 = vmul.f32 %v3171, %v3186
        %v3188 = vadd.f32 %v3187, 0.112945676
        %v3189 = vmul.f32 %v3171, %v3188
        %v3190 = vadd.f32 %v3189, 0.4994258
        %v3191 = vmul.f32 %v3171, %v3190
        %v3192 = vadd.f32 %v3191, 1.0
        %v3193 = vrcp.pop %v3192
        %v3194 = vmul.f32 %v3192, %v3193
        %v3195 = vsub.f32 1.0, %v3194
        %v3196 = vmul.f32 %v3193, %v3195
        %v3197 = vadd.f32 %v3193, %v3196
        %vm3198 = vweird.f32 %v3192
        %vm3199 = vweird.f32 %v3193
        %vm3200 = vmor %vm3198, %vm3199
        %v3201 = vsel %vm3200, %v3193, %v3197
        %v3202 = vand.u32 2147483647, %v3192
        %vm3203 = vcmp.eq.f32.partialorder %v3202, 8.507059e+37
        %v3204 = vand.u32 %v3192, 2147483648
        %v3205 = vor.u32 1.1754944e-38, %v3204
        %v3206 = vsel %vm3203, %v3205, %v3201
        %v3207 = vmul.f32 %v3182, %v3206
        %v3208 = vmin.f32 %v3207, 1.0
        %v3209 = vmax.f32 %v3208, -1.0
        %v3210 = vmul.f32 %v1313, %v1313
        %v3211 = vmin.f32 16.0, %v3210
        %v3212 = vmul.f32 %v3211, 2.1237322e-06
        %v3213 = vadd.f32 %v3212, 0.00028619796
        %v3214 = vmul.f32 %v3211, %v3213
        %v3215 = vadd.f32 %v3214, 0.0036580483
        %v3216 = vmul.f32 %v3211, %v3215
        %v3217 = vadd.f32 %v3216, 0.05243302
        %v3218 = vmul.f32 %v3211, %v3217
        %v3219 = vadd.f32 %v3218, 0.18741608
        %v3220 = vmul.f32 %v3211, %v3219
        %v3221 = vadd.f32 %v3220, 1.1283791
        %v3222 = vmul.f32 %v1313, %v3221
        %v3223 = vmul.f32 %v3211, 3.8918573e-05
        %v3224 = vadd.f32 %v3223, 0.001143296
        %v3225 = vmul.f32 %v3211, %v3224
        %v3226 = vadd.f32 %v3225, 0.014752088
        %v3227 = vmul.f32 %v3211, %v3226
        %v3228 = vadd.f32 %v3227, 0.112945676
        %v3229 = vmul.f32 %v3211, %v3228
        %v3230 = vadd.f32 %v3229, 0.4994258
        %v3231 = vmul.f32 %v3211, %v3230
        %v3232 = vadd.f32 %v3231, 1.0
        %v3233 = vrcp.pop %v3232
        %v3234 = vmul.f32 %v3232, %v3233
        %v3235 = vsub.f32 1.0, %v3234
        %v3236 = vmul.f32 %v3233, %v3235
        %v3237 = vadd.f32 %v3233, %v3236
        %vm3238 = vweird.f32 %v3232
        %vm3239 = vweird.f32 %v3233
        %vm3240 = vmor %vm3238, %vm3239
        %v3241 = vsel %vm3240, %v3233, %v3237
        %v3242 = vand.u32 2147483647, %v3232
        %vm3243 = vcmp.eq.f32.partialorder %v3242, 8.507059e+37
        %v3244 = vand.u32 %v3232, 2147483648
        %v3245 = vor.u32 1.1754944e-38, %v3244
        %v3246 = vsel %vm3243, %v3245, %v3241
        %v3247 = vmul.f32 %v3222, %v3246
        %v3248 = vmin.f32 %v3247, 1.0
        %v3249 = vmax.f32 %v3248, -1.0
        %v3250 = vmul.f32 %v1314, %v1314
        %v3251 = vmin.f32 16.0, %v3250
        %v3252 = vmul.f32 %v3251, 2.1237322e-06
        %v3253 = vadd.f32 %v3252, 0.00028619796
        %v3254 = vmul.f32 %v3251, %v3253
        %v3255 = vadd.f32 %v3254, 0.0036580483
        %v3256 = vmul.f32 %v3251, %v3255
        %v3257 = vadd.f32 %v3256, 0.05243302
        %v3258 = vmul.f32 %v3251, %v3257
        %v3259 = vadd.f32 %v3258, 0.18741608
        %v3260 = vmul.f32 %v3251, %v3259
        %v3261 = vadd.f32 %v3260, 1.1283791
        %v3262 = vmul.f32 %v1314, %v3261
        %v3263 = vmul.f32 %v3251, 3.8918573e-05
        %v3264 = vadd.f32 %v3263, 0.001143296
        %v3265 = vmul.f32 %v3251, %v3264
        %v3266 = vadd.f32 %v3265, 0.014752088
        %v3267 = vmul.f32 %v3251, %v3266
        %v3268 = vadd.f32 %v3267, 0.112945676
        %v3269 = vmul.f32 %v3251, %v3268
        %v3270 = vadd.f32 %v3269, 0.4994258
        %v3271 = vmul.f32 %v3251, %v3270
        %v3272 = vadd.f32 %v3271, 1.0
        %v3273 = vrcp.pop %v3272
        %v3274 = vmul.f32 %v3272, %v3273
        %v3275 = vsub.f32 1.0, %v3274
        %v3276 = vmul.f32 %v3273, %v3275
        %v3277 = vadd.f32 %v3273, %v3276
        %vm3278 = vweird.f32 %v3272
        %vm3279 = vweird.f32 %v3273
        %vm3280 = vmor %vm3278, %vm3279
        %v3281 = vsel %vm3280, %v3273, %v3277
        %v3282 = vand.u32 2147483647, %v3272
        %vm3283 = vcmp.eq.f32.partialorder %v3282, 8.507059e+37
        %v3284 = vand.u32 %v3272, 2147483648
        %v3285 = vor.u32 1.1754944e-38, %v3284
        %v3286 = vsel %vm3283, %v3285, %v3281
        %v3287 = vmul.f32 %v3262, %v3286
        %v3288 = vmin.f32 %v3287, 1.0
        %v3289 = vmax.f32 %v3288, -1.0
        %v3290 = vmul.f32 %v1315, %v1315
        %v3291 = vmin.f32 16.0, %v3290
        %v3292 = vmul.f32 %v3291, 2.1237322e-06
        %v3293 = vadd.f32 %v3292, 0.00028619796
        %v3294 = vmul.f32 %v3291, %v3293
        %v3295 = vadd.f32 %v3294, 0.0036580483
        %v3296 = vmul.f32 %v3291, %v3295
        %v3297 = vadd.f32 %v3296, 0.05243302
        %v3298 = vmul.f32 %v3291, %v3297
        %v3299 = vadd.f32 %v3298, 0.18741608
        %v3300 = vmul.f32 %v3291, %v3299
        %v3301 = vadd.f32 %v3300, 1.1283791
        %v3302 = vmul.f32 %v1315, %v3301
        %v3303 = vmul.f32 %v3291, 3.8918573e-05
        %v3304 = vadd.f32 %v3303, 0.001143296
        %v3305 = vmul.f32 %v3291, %v3304
        %v3306 = vadd.f32 %v3305, 0.014752088
        %v3307 = vmul.f32 %v3291, %v3306
        %v3308 = vadd.f32 %v3307, 0.112945676
        %v3309 = vmul.f32 %v3291, %v3308
        %v3310 = vadd.f32 %v3309, 0.4994258
        %v3311 = vmul.f32 %v3291, %v3310
        %v3312 = vadd.f32 %v3311, 1.0
        %v3313 = vrcp.pop %v3312
        %v3314 = vmul.f32 %v3312, %v3313
        %v3315 = vsub.f32 1.0, %v3314
        %v3316 = vmul.f32 %v3313, %v3315
        %v3317 = vadd.f32 %v3313, %v3316
        %vm3318 = vweird.f32 %v3312
        %vm3319 = vweird.f32 %v3313
        %vm3320 = vmor %vm3318, %vm3319
        %v3321 = vsel %vm3320, %v3313, %v3317
        %v3322 = vand.u32 2147483647, %v3312
        %vm3323 = vcmp.eq.f32.partialorder %v3322, 8.507059e+37
        %v3324 = vand.u32 %v3312, 2147483648
        %v3325 = vor.u32 1.1754944e-38, %v3324
        %v3326 = vsel %vm3323, %v3325, %v3321
        %v3327 = vmul.f32 %v3302, %v3326
        %v3328 = vmin.f32 %v3327, 1.0
        %v3329 = vmax.f32 %v3328, -1.0
        %v3330 = vmul.f32 %v1316, %v1316
        %v3331 = vmin.f32 16.0, %v3330
        %v3332 = vmul.f32 %v3331, 2.1237322e-06
        %v3333 = vadd.f32 %v3332, 0.00028619796
        %v3334 = vmul.f32 %v3331, %v3333
        %v3335 = vadd.f32 %v3334, 0.0036580483
        %v3336 = vmul.f32 %v3331, %v3335
        %v3337 = vadd.f32 %v3336, 0.05243302
        %v3338 = vmul.f32 %v3331, %v3337
        %v3339 = vadd.f32 %v3338, 0.18741608
        %v3340 = vmul.f32 %v3331, %v3339
        %v3341 = vadd.f32 %v3340, 1.1283791
        %v3342 = vmul.f32 %v1316, %v3341
        %v3343 = vmul.f32 %v3331, 3.8918573e-05
        %v3344 = vadd.f32 %v3343, 0.001143296
        %v3345 = vmul.f32 %v3331, %v3344
        %v3346 = vadd.f32 %v3345, 0.014752088
        %v3347 = vmul.f32 %v3331, %v3346
        %v3348 = vadd.f32 %v3347, 0.112945676
        %v3349 = vmul.f32 %v3331, %v3348
        %v3350 = vadd.f32 %v3349, 0.4994258
        %v3351 = vmul.f32 %v3331, %v3350
        %v3352 = vadd.f32 %v3351, 1.0
        %v3353 = vrcp.pop %v3352
        %v3354 = vmul.f32 %v3352, %v3353
        %v3355 = vsub.f32 1.0, %v3354
        %v3356 = vmul.f32 %v3353, %v3355
        %v3357 = vadd.f32 %v3353, %v3356
        %vm3358 = vweird.f32 %v3352
        %vm3359 = vweird.f32 %v3353
        %vm3360 = vmor %vm3358, %vm3359
        %v3361 = vsel %vm3360, %v3353, %v3357
        %v3362 = vand.u32 2147483647, %v3352
        %vm3363 = vcmp.eq.f32.partialorder %v3362, 8.507059e+37
        %v3364 = vand.u32 %v3352, 2147483648
        %v3365 = vor.u32 1.1754944e-38, %v3364
        %v3366 = vsel %vm3363, %v3365, %v3361
        %v3367 = vmul.f32 %v3342, %v3366
        %v3368 = vmin.f32 %v3367, 1.0
        %v3369 = vmax.f32 %v3368, -1.0
        %v3370 = vmul.f32 %v1317, %v1317
        %v3371 = vmin.f32 16.0, %v3370
        %v3372 = vmul.f32 %v3371, 2.1237322e-06
        %v3373 = vadd.f32 %v3372, 0.00028619796
        %v3374 = vmul.f32 %v3371, %v3373
        %v3375 = vadd.f32 %v3374, 0.0036580483
        %v3376 = vmul.f32 %v3371, %v3375
        %v3377 = vadd.f32 %v3376, 0.05243302
        %v3378 = vmul.f32 %v3371, %v3377
        %v3379 = vadd.f32 %v3378, 0.18741608
        %v3380 = vmul.f32 %v3371, %v3379
        %v3381 = vadd.f32 %v3380, 1.1283791
        %v3382 = vmul.f32 %v1317, %v3381
        %v3383 = vmul.f32 %v3371, 3.8918573e-05
        %v3384 = vadd.f32 %v3383, 0.001143296
        %v3385 = vmul.f32 %v3371, %v3384
        %v3386 = vadd.f32 %v3385, 0.014752088
        %v3387 = vmul.f32 %v3371, %v3386
        %v3388 = vadd.f32 %v3387, 0.112945676
        %v3389 = vmul.f32 %v3371, %v3388
        %v3390 = vadd.f32 %v3389, 0.4994258
        %v3391 = vmul.f32 %v3371, %v3390
        %v3392 = vadd.f32 %v3391, 1.0
        %v3393 = vrcp.pop %v3392
        %v3394 = vmul.f32 %v3392, %v3393
        %v3395 = vsub.f32 1.0, %v3394
        %v3396 = vmul.f32 %v3393, %v3395
        %v3397 = vadd.f32 %v3393, %v3396
        %vm3398 = vweird.f32 %v3392
        %vm3399 = vweird.f32 %v3393
        %vm3400 = vmor %vm3398, %vm3399
        %v3401 = vsel %vm3400, %v3393, %v3397
        %v3402 = vand.u32 2147483647, %v3392
        %vm3403 = vcmp.eq.f32.partialorder %v3402, 8.507059e+37
        %v3404 = vand.u32 %v3392, 2147483648
        %v3405 = vor.u32 1.1754944e-38, %v3404
        %v3406 = vsel %vm3403, %v3405, %v3401
        %v3407 = vmul.f32 %v3382, %v3406
        %v3408 = vmin.f32 %v3407, 1.0
        %v3409 = vmax.f32 %v3408, -1.0
        %v3410 = vmul.f32 %v1318, %v1318
        %v3411 = vmin.f32 16.0, %v3410
        %v3412 = vmul.f32 %v3411, 2.1237322e-06
        %v3413 = vadd.f32 %v3412, 0.00028619796
        %v3414 = vmul.f32 %v3411, %v3413
        %v3415 = vadd.f32 %v3414, 0.0036580483
        %v3416 = vmul.f32 %v3411, %v3415
        %v3417 = vadd.f32 %v3416, 0.05243302
        %v3418 = vmul.f32 %v3411, %v3417
        %v3419 = vadd.f32 %v3418, 0.18741608
        %v3420 = vmul.f32 %v3411, %v3419
        %v3421 = vadd.f32 %v3420, 1.1283791
        %v3422 = vmul.f32 %v1318, %v3421
        %v3423 = vmul.f32 %v3411, 3.8918573e-05
        %v3424 = vadd.f32 %v3423, 0.001143296
        %v3425 = vmul.f32 %v3411, %v3424
        %v3426 = vadd.f32 %v3425, 0.014752088
        %v3427 = vmul.f32 %v3411, %v3426
        %v3428 = vadd.f32 %v3427, 0.112945676
        %v3429 = vmul.f32 %v3411, %v3428
        %v3430 = vadd.f32 %v3429, 0.4994258
        %v3431 = vmul.f32 %v3411, %v3430
        %v3432 = vadd.f32 %v3431, 1.0
        %v3433 = vrcp.pop %v3432
        %v3434 = vmul.f32 %v3432, %v3433
        %v3435 = vsub.f32 1.0, %v3434
        %v3436 = vmul.f32 %v3433, %v3435
        %v3437 = vadd.f32 %v3433, %v3436
        %vm3438 = vweird.f32 %v3432
        %vm3439 = vweird.f32 %v3433
        %vm3440 = vmor %vm3438, %vm3439
        %v3441 = vsel %vm3440, %v3433, %v3437
        %v3442 = vand.u32 2147483647, %v3432
        %vm3443 = vcmp.eq.f32.partialorder %v3442, 8.507059e+37
        %v3444 = vand.u32 %v3432, 2147483648
        %v3445 = vor.u32 1.1754944e-38, %v3444
        %v3446 = vsel %vm3443, %v3445, %v3441
        %v3447 = vmul.f32 %v3422, %v3446
        %v3448 = vmin.f32 %v3447, 1.0
        %v3449 = vmax.f32 %v3448, -1.0
        %v3450 = vmul.f32 %v1319, %v1319
        %v3451 = vmin.f32 16.0, %v3450
        %v3452 = vmul.f32 %v3451, 2.1237322e-06
        %v3453 = vadd.f32 %v3452, 0.00028619796
        %v3454 = vmul.f32 %v3451, %v3453
        %v3455 = vadd.f32 %v3454, 0.0036580483
        %v3456 = vmul.f32 %v3451, %v3455
        %v3457 = vadd.f32 %v3456, 0.05243302
        %v3458 = vmul.f32 %v3451, %v3457
        %v3459 = vadd.f32 %v3458, 0.18741608
        %v3460 = vmul.f32 %v3451, %v3459
        %v3461 = vadd.f32 %v3460, 1.1283791
        %v3462 = vmul.f32 %v1319, %v3461
        %v3463 = vmul.f32 %v3451, 3.8918573e-05
        %v3464 = vadd.f32 %v3463, 0.001143296
        %v3465 = vmul.f32 %v3451, %v3464
        %v3466 = vadd.f32 %v3465, 0.014752088
        %v3467 = vmul.f32 %v3451, %v3466
        %v3468 = vadd.f32 %v3467, 0.112945676
        %v3469 = vmul.f32 %v3451, %v3468
        %v3470 = vadd.f32 %v3469, 0.4994258
        %v3471 = vmul.f32 %v3451, %v3470
        %v3472 = vadd.f32 %v3471, 1.0
        %v3473 = vrcp.pop %v3472
        %v3474 = vmul.f32 %v3472, %v3473
        %v3475 = vsub.f32 1.0, %v3474
        %v3476 = vmul.f32 %v3473, %v3475
        %v3477 = vadd.f32 %v3473, %v3476
        %vm3478 = vweird.f32 %v3472
        %vm3479 = vweird.f32 %v3473
        %vm3480 = vmor %vm3478, %vm3479
        %v3481 = vsel %vm3480, %v3473, %v3477
        %v3482 = vand.u32 2147483647, %v3472
        %vm3483 = vcmp.eq.f32.partialorder %v3482, 8.507059e+37
        %v3484 = vand.u32 %v3472, 2147483648
        %v3485 = vor.u32 1.1754944e-38, %v3484
        %v3486 = vsel %vm3483, %v3485, %v3481
        %v3487 = vmul.f32 %v3462, %v3486
        %v3488 = vmin.f32 %v3487, 1.0
        %v3489 = vmax.f32 %v3488, -1.0
        %v3490 = vmul.f32 %v1320, %v1320
        %v3491 = vmin.f32 16.0, %v3490
        %v3492 = vmul.f32 %v3491, 2.1237322e-06
        %v3493 = vadd.f32 %v3492, 0.00028619796
        %v3494 = vmul.f32 %v3491, %v3493
        %v3495 = vadd.f32 %v3494, 0.0036580483
        %v3496 = vmul.f32 %v3491, %v3495
        %v3497 = vadd.f32 %v3496, 0.05243302
        %v3498 = vmul.f32 %v3491, %v3497
        %v3499 = vadd.f32 %v3498, 0.18741608
        %v3500 = vmul.f32 %v3491, %v3499
        %v3501 = vadd.f32 %v3500, 1.1283791
        %v3502 = vmul.f32 %v1320, %v3501
        %v3503 = vmul.f32 %v3491, 3.8918573e-05
        %v3504 = vadd.f32 %v3503, 0.001143296
        %v3505 = vmul.f32 %v3491, %v3504
        %v3506 = vadd.f32 %v3505, 0.014752088
        %v3507 = vmul.f32 %v3491, %v3506
        %v3508 = vadd.f32 %v3507, 0.112945676
        %v3509 = vmul.f32 %v3491, %v3508
        %v3510 = vadd.f32 %v3509, 0.4994258
        %v3511 = vmul.f32 %v3491, %v3510
        %v3512 = vadd.f32 %v3511, 1.0
        %v3513 = vrcp.pop %v3512
        %v3514 = vmul.f32 %v3512, %v3513
        %v3515 = vsub.f32 1.0, %v3514
        %v3516 = vmul.f32 %v3513, %v3515
        %v3517 = vadd.f32 %v3513, %v3516
        %vm3518 = vweird.f32 %v3512
        %vm3519 = vweird.f32 %v3513
        %vm3520 = vmor %vm3518, %vm3519
        %v3521 = vsel %vm3520, %v3513, %v3517
        %v3522 = vand.u32 2147483647, %v3512
        %vm3523 = vcmp.eq.f32.partialorder %v3522, 8.507059e+37
        %v3524 = vand.u32 %v3512, 2147483648
        %v3525 = vor.u32 1.1754944e-38, %v3524
        %v3526 = vsel %vm3523, %v3525, %v3521
        %v3527 = vmul.f32 %v3502, %v3526
        %v3528 = vmin.f32 %v3527, 1.0
        %v3529 = vmax.f32 %v3528, -1.0
        %v3530 = vmul.f32 %v1321, %v1321
        %v3531 = vmin.f32 16.0, %v3530
        %v3532 = vmul.f32 %v3531, 2.1237322e-06
        %v3533 = vadd.f32 %v3532, 0.00028619796
        %v3534 = vmul.f32 %v3531, %v3533
        %v3535 = vadd.f32 %v3534, 0.0036580483
        %v3536 = vmul.f32 %v3531, %v3535
        %v3537 = vadd.f32 %v3536, 0.05243302
        %v3538 = vmul.f32 %v3531, %v3537
        %v3539 = vadd.f32 %v3538, 0.18741608
        %v3540 = vmul.f32 %v3531, %v3539
        %v3541 = vadd.f32 %v3540, 1.1283791
        %v3542 = vmul.f32 %v1321, %v3541
        %v3543 = vmul.f32 %v3531, 3.8918573e-05
        %v3544 = vadd.f32 %v3543, 0.001143296
        %v3545 = vmul.f32 %v3531, %v3544
        %v3546 = vadd.f32 %v3545, 0.014752088
        %v3547 = vmul.f32 %v3531, %v3546
        %v3548 = vadd.f32 %v3547, 0.112945676
        %v3549 = vmul.f32 %v3531, %v3548
        %v3550 = vadd.f32 %v3549, 0.4994258
        %v3551 = vmul.f32 %v3531, %v3550
        %v3552 = vadd.f32 %v3551, 1.0
        %v3553 = vrcp.pop %v3552
        %v3554 = vmul.f32 %v3552, %v3553
        %v3555 = vsub.f32 1.0, %v3554
        %v3556 = vmul.f32 %v3553, %v3555
        %v3557 = vadd.f32 %v3553, %v3556
        %vm3558 = vweird.f32 %v3552
        %vm3559 = vweird.f32 %v3553
        %vm3560 = vmor %vm3558, %vm3559
        %v3561 = vsel %vm3560, %v3553, %v3557
        %v3562 = vand.u32 2147483647, %v3552
        %vm3563 = vcmp.eq.f32.partialorder %v3562, 8.507059e+37
        %v3564 = vand.u32 %v3552, 2147483648
        %v3565 = vor.u32 1.1754944e-38, %v3564
        %v3566 = vsel %vm3563, %v3565, %v3561
        %v3567 = vmul.f32 %v3542, %v3566
        %v3568 = vmin.f32 %v3567, 1.0
        %v3569 = vmax.f32 %v3568, -1.0
        %v3570 = vmul.f32 %v1322, %v1322
        %v3571 = vmin.f32 16.0, %v3570
        %v3572 = vmul.f32 %v3571, 2.1237322e-06
        %v3573 = vadd.f32 %v3572, 0.00028619796
        %v3574 = vmul.f32 %v3571, %v3573
        %v3575 = vadd.f32 %v3574, 0.0036580483
        %v3576 = vmul.f32 %v3571, %v3575
        %v3577 = vadd.f32 %v3576, 0.05243302
        %v3578 = vmul.f32 %v3571, %v3577
        %v3579 = vadd.f32 %v3578, 0.18741608
        %v3580 = vmul.f32 %v3571, %v3579
        %v3581 = vadd.f32 %v3580, 1.1283791
        %v3582 = vmul.f32 %v1322, %v3581
        %v3583 = vmul.f32 %v3571, 3.8918573e-05
        %v3584 = vadd.f32 %v3583, 0.001143296
        %v3585 = vmul.f32 %v3571, %v3584
        %v3586 = vadd.f32 %v3585, 0.014752088
        %v3587 = vmul.f32 %v3571, %v3586
        %v3588 = vadd.f32 %v3587, 0.112945676
        %v3589 = vmul.f32 %v3571, %v3588
        %v3590 = vadd.f32 %v3589, 0.4994258
        %v3591 = vmul.f32 %v3571, %v3590
        %v3592 = vadd.f32 %v3591, 1.0
        %v3593 = vrcp.pop %v3592
        %v3594 = vmul.f32 %v3592, %v3593
        %v3595 = vsub.f32 1.0, %v3594
        %v3596 = vmul.f32 %v3593, %v3595
        %v3597 = vadd.f32 %v3593, %v3596
        %vm3598 = vweird.f32 %v3592
        %vm3599 = vweird.f32 %v3593
        %vm3600 = vmor %vm3598, %vm3599
        %v3601 = vsel %vm3600, %v3593, %v3597
        %v3602 = vand.u32 2147483647, %v3592
        %vm3603 = vcmp.eq.f32.partialorder %v3602, 8.507059e+37
        %v3604 = vand.u32 %v3592, 2147483648
        %v3605 = vor.u32 1.1754944e-38, %v3604
        %v3606 = vsel %vm3603, %v3605, %v3601
        %v3607 = vmul.f32 %v3582, %v3606
        %v3608 = vmin.f32 %v3607, 1.0
        %v3609 = vmax.f32 %v3608, -1.0
        %v3610 = vmul.f32 %v1323, %v1323
        %v3611 = vmin.f32 16.0, %v3610
        %v3612 = vmul.f32 %v3611, 2.1237322e-06
        %v3613 = vadd.f32 %v3612, 0.00028619796
        %v3614 = vmul.f32 %v3611, %v3613
        %v3615 = vadd.f32 %v3614, 0.0036580483
        %v3616 = vmul.f32 %v3611, %v3615
        %v3617 = vadd.f32 %v3616, 0.05243302
        %v3618 = vmul.f32 %v3611, %v3617
        %v3619 = vadd.f32 %v3618, 0.18741608
        %v3620 = vmul.f32 %v3611, %v3619
        %v3621 = vadd.f32 %v3620, 1.1283791
        %v3622 = vmul.f32 %v1323, %v3621
        %v3623 = vmul.f32 %v3611, 3.8918573e-05
        %v3624 = vadd.f32 %v3623, 0.001143296
        %v3625 = vmul.f32 %v3611, %v3624
        %v3626 = vadd.f32 %v3625, 0.014752088
        %v3627 = vmul.f32 %v3611, %v3626
        %v3628 = vadd.f32 %v3627, 0.112945676
        %v3629 = vmul.f32 %v3611, %v3628
        %v3630 = vadd.f32 %v3629, 0.4994258
        %v3631 = vmul.f32 %v3611, %v3630
        %v3632 = vadd.f32 %v3631, 1.0
        %v3633 = vrcp.pop %v3632
        %v3634 = vmul.f32 %v3632, %v3633
        %v3635 = vsub.f32 1.0, %v3634
        %v3636 = vmul.f32 %v3633, %v3635
        %v3637 = vadd.f32 %v3633, %v3636
        %vm3638 = vweird.f32 %v3632
        %vm3639 = vweird.f32 %v3633
        %vm3640 = vmor %vm3638, %vm3639
        %v3641 = vsel %vm3640, %v3633, %v3637
        %v3642 = vand.u32 2147483647, %v3632
        %vm3643 = vcmp.eq.f32.partialorder %v3642, 8.507059e+37
        %v3644 = vand.u32 %v3632, 2147483648
        %v3645 = vor.u32 1.1754944e-38, %v3644
        %v3646 = vsel %vm3643, %v3645, %v3641
        %v3647 = vmul.f32 %v3622, %v3646
        %v3648 = vmin.f32 %v3647, 1.0
        %v3649 = vmax.f32 %v3648, -1.0
        %v3650 = vmul.f32 %v1324, %v1324
        %v3651 = vmin.f32 16.0, %v3650
        %v3652 = vmul.f32 %v3651, 2.1237322e-06
        %v3653 = vadd.f32 %v3652, 0.00028619796
        %v3654 = vmul.f32 %v3651, %v3653
        %v3655 = vadd.f32 %v3654, 0.0036580483
        %v3656 = vmul.f32 %v3651, %v3655
        %v3657 = vadd.f32 %v3656, 0.05243302
        %v3658 = vmul.f32 %v3651, %v3657
        %v3659 = vadd.f32 %v3658, 0.18741608
        %v3660 = vmul.f32 %v3651, %v3659
        %v3661 = vadd.f32 %v3660, 1.1283791
        %v3662 = vmul.f32 %v1324, %v3661
        %v3663 = vmul.f32 %v3651, 3.8918573e-05
        %v3664 = vadd.f32 %v3663, 0.001143296
        %v3665 = vmul.f32 %v3651, %v3664
        %v3666 = vadd.f32 %v3665, 0.014752088
        %v3667 = vmul.f32 %v3651, %v3666
        %v3668 = vadd.f32 %v3667, 0.112945676
        %v3669 = vmul.f32 %v3651, %v3668
        %v3670 = vadd.f32 %v3669, 0.4994258
        %v3671 = vmul.f32 %v3651, %v3670
        %v3672 = vadd.f32 %v3671, 1.0
        %v3673 = vrcp.pop %v3672
        %v3674 = vmul.f32 %v3672, %v3673
        %v3675 = vsub.f32 1.0, %v3674
        %v3676 = vmul.f32 %v3673, %v3675
        %v3677 = vadd.f32 %v3673, %v3676
        %vm3678 = vweird.f32 %v3672
        %vm3679 = vweird.f32 %v3673
        %vm3680 = vmor %vm3678, %vm3679
        %v3681 = vsel %vm3680, %v3673, %v3677
        %v3682 = vand.u32 2147483647, %v3672
        %vm3683 = vcmp.eq.f32.partialorder %v3682, 8.507059e+37
        %v3684 = vand.u32 %v3672, 2147483648
        %v3685 = vor.u32 1.1754944e-38, %v3684
        %v3686 = vsel %vm3683, %v3685, %v3681
        %v3687 = vmul.f32 %v3662, %v3686
        %v3688 = vmin.f32 %v3687, 1.0
        %v3689 = vmax.f32 %v3688, -1.0
        %v3690 = vmul.f32 %v1325, %v1325
        %v3691 = vmin.f32 16.0, %v3690
        %v3692 = vmul.f32 %v3691, 2.1237322e-06
        %v3693 = vadd.f32 %v3692, 0.00028619796
        %v3694 = vmul.f32 %v3691, %v3693
        %v3695 = vadd.f32 %v3694, 0.0036580483
        %v3696 = vmul.f32 %v3691, %v3695
        %v3697 = vadd.f32 %v3696, 0.05243302
        %v3698 = vmul.f32 %v3691, %v3697
        %v3699 = vadd.f32 %v3698, 0.18741608
        %v3700 = vmul.f32 %v3691, %v3699
        %v3701 = vadd.f32 %v3700, 1.1283791
        %v3702 = vmul.f32 %v1325, %v3701
        %v3703 = vmul.f32 %v3691, 3.8918573e-05
        %v3704 = vadd.f32 %v3703, 0.001143296
        %v3705 = vmul.f32 %v3691, %v3704
        %v3706 = vadd.f32 %v3705, 0.014752088
        %v3707 = vmul.f32 %v3691, %v3706
        %v3708 = vadd.f32 %v3707, 0.112945676
        %v3709 = vmul.f32 %v3691, %v3708
        %v3710 = vadd.f32 %v3709, 0.4994258
        %v3711 = vmul.f32 %v3691, %v3710
        %v3712 = vadd.f32 %v3711, 1.0
        %v3713 = vrcp.pop %v3712
        %v3714 = vmul.f32 %v3712, %v3713
        %v3715 = vsub.f32 1.0, %v3714
        %v3716 = vmul.f32 %v3713, %v3715
        %v3717 = vadd.f32 %v3713, %v3716
        %vm3718 = vweird.f32 %v3712
        %vm3719 = vweird.f32 %v3713
        %vm3720 = vmor %vm3718, %vm3719
        %v3721 = vsel %vm3720, %v3713, %v3717
        %v3722 = vand.u32 2147483647, %v3712
        %vm3723 = vcmp.eq.f32.partialorder %v3722, 8.507059e+37
        %v3724 = vand.u32 %v3712, 2147483648
        %v3725 = vor.u32 1.1754944e-38, %v3724
        %v3726 = vsel %vm3723, %v3725, %v3721
        %v3727 = vmul.f32 %v3702, %v3726
        %v3728 = vmin.f32 %v3727, 1.0
        %v3729 = vmax.f32 %v3728, -1.0
        %v3730 = vmul.f32 %v1326, %v1326
        %v3731 = vmin.f32 16.0, %v3730
        %v3732 = vmul.f32 %v3731, 2.1237322e-06
        %v3733 = vadd.f32 %v3732, 0.00028619796
        %v3734 = vmul.f32 %v3731, %v3733
        %v3735 = vadd.f32 %v3734, 0.0036580483
        %v3736 = vmul.f32 %v3731, %v3735
        %v3737 = vadd.f32 %v3736, 0.05243302
        %v3738 = vmul.f32 %v3731, %v3737
        %v3739 = vadd.f32 %v3738, 0.18741608
        %v3740 = vmul.f32 %v3731, %v3739
        %v3741 = vadd.f32 %v3740, 1.1283791
        %v3742 = vmul.f32 %v1326, %v3741
        %v3743 = vmul.f32 %v3731, 3.8918573e-05
        %v3744 = vadd.f32 %v3743, 0.001143296
        %v3745 = vmul.f32 %v3731, %v3744
        %v3746 = vadd.f32 %v3745, 0.014752088
        %v3747 = vmul.f32 %v3731, %v3746
        %v3748 = vadd.f32 %v3747, 0.112945676
        %v3749 = vmul.f32 %v3731, %v3748
        %v3750 = vadd.f32 %v3749, 0.4994258
        %v3751 = vmul.f32 %v3731, %v3750
        %v3752 = vadd.f32 %v3751, 1.0
        %v3753 = vrcp.pop %v3752
        %v3754 = vmul.f32 %v3752, %v3753
        %v3755 = vsub.f32 1.0, %v3754
        %v3756 = vmul.f32 %v3753, %v3755
        %v3757 = vadd.f32 %v3753, %v3756
        %vm3758 = vweird.f32 %v3752
        %vm3759 = vweird.f32 %v3753
        %vm3760 = vmor %vm3758, %vm3759
        %v3761 = vsel %vm3760, %v3753, %v3757
        %v3762 = vand.u32 2147483647, %v3752
        %vm3763 = vcmp.eq.f32.partialorder %v3762, 8.507059e+37
        %v3764 = vand.u32 %v3752, 2147483648
        %v3765 = vor.u32 1.1754944e-38, %v3764
        %v3766 = vsel %vm3763, %v3765, %v3761
        %v3767 = vmul.f32 %v3742, %v3766
        %v3768 = vmin.f32 %v3767, 1.0
        %v3769 = vmax.f32 %v3768, -1.0
        %v3770 = vmul.f32 %v1327, %v1327
        %v3771 = vmin.f32 16.0, %v3770
        %v3772 = vmul.f32 %v3771, 2.1237322e-06
        %v3773 = vadd.f32 %v3772, 0.00028619796
        %v3774 = vmul.f32 %v3771, %v3773
        %v3775 = vadd.f32 %v3774, 0.0036580483
        %v3776 = vmul.f32 %v3771, %v3775
        %v3777 = vadd.f32 %v3776, 0.05243302
        %v3778 = vmul.f32 %v3771, %v3777
        %v3779 = vadd.f32 %v3778, 0.18741608
        %v3780 = vmul.f32 %v3771, %v3779
        %v3781 = vadd.f32 %v3780, 1.1283791
        %v3782 = vmul.f32 %v1327, %v3781
        %v3783 = vmul.f32 %v3771, 3.8918573e-05
        %v3784 = vadd.f32 %v3783, 0.001143296
        %v3785 = vmul.f32 %v3771, %v3784
        %v3786 = vadd.f32 %v3785, 0.014752088
        %v3787 = vmul.f32 %v3771, %v3786
        %v3788 = vadd.f32 %v3787, 0.112945676
        %v3789 = vmul.f32 %v3771, %v3788
        %v3790 = vadd.f32 %v3789, 0.4994258
        %v3791 = vmul.f32 %v3771, %v3790
        %v3792 = vadd.f32 %v3791, 1.0
        %v3793 = vrcp.pop %v3792
        %v3794 = vmul.f32 %v3792, %v3793
        %v3795 = vsub.f32 1.0, %v3794
        %v3796 = vmul.f32 %v3793, %v3795
        %v3797 = vadd.f32 %v3793, %v3796
        %vm3798 = vweird.f32 %v3792
        %vm3799 = vweird.f32 %v3793
        %vm3800 = vmor %vm3798, %vm3799
        %v3801 = vsel %vm3800, %v3793, %v3797
        %v3802 = vand.u32 2147483647, %v3792
        %vm3803 = vcmp.eq.f32.partialorder %v3802, 8.507059e+37
        %v3804 = vand.u32 %v3792, 2147483648
        %v3805 = vor.u32 1.1754944e-38, %v3804
        %v3806 = vsel %vm3803, %v3805, %v3801
        %v3807 = vmul.f32 %v3782, %v3806
        %v3808 = vmin.f32 %v3807, 1.0
        %v3809 = vmax.f32 %v3808, -1.0
        %v3810 = vmul.f32 %v1328, %v1328
        %v3811 = vmin.f32 16.0, %v3810
        %v3812 = vmul.f32 %v3811, 2.1237322e-06
        %v3813 = vadd.f32 %v3812, 0.00028619796
        %v3814 = vmul.f32 %v3811, %v3813
        %v3815 = vadd.f32 %v3814, 0.0036580483
        %v3816 = vmul.f32 %v3811, %v3815
        %v3817 = vadd.f32 %v3816, 0.05243302
        %v3818 = vmul.f32 %v3811, %v3817
        %v3819 = vadd.f32 %v3818, 0.18741608
        %v3820 = vmul.f32 %v3811, %v3819
        %v3821 = vadd.f32 %v3820, 1.1283791
        %v3822 = vmul.f32 %v1328, %v3821
        %v3823 = vmul.f32 %v3811, 3.8918573e-05
        %v3824 = vadd.f32 %v3823, 0.001143296
        %v3825 = vmul.f32 %v3811, %v3824
        %v3826 = vadd.f32 %v3825, 0.014752088
        %v3827 = vmul.f32 %v3811, %v3826
        %v3828 = vadd.f32 %v3827, 0.112945676
        %v3829 = vmul.f32 %v3811, %v3828
        %v3830 = vadd.f32 %v3829, 0.4994258
        %v3831 = vmul.f32 %v3811, %v3830
        %v3832 = vadd.f32 %v3831, 1.0
        %v3833 = vrcp.pop %v3832
        %v3834 = vmul.f32 %v3832, %v3833
        %v3835 = vsub.f32 1.0, %v3834
        %v3836 = vmul.f32 %v3833, %v3835
        %v3837 = vadd.f32 %v3833, %v3836
        %vm3838 = vweird.f32 %v3832
        %vm3839 = vweird.f32 %v3833
        %vm3840 = vmor %vm3838, %vm3839
        %v3841 = vsel %vm3840, %v3833, %v3837
        %v3842 = vand.u32 2147483647, %v3832
        %vm3843 = vcmp.eq.f32.partialorder %v3842, 8.507059e+37
        %v3844 = vand.u32 %v3832, 2147483648
        %v3845 = vor.u32 1.1754944e-38, %v3844
        %v3846 = vsel %vm3843, %v3845, %v3841
        %v3847 = vmul.f32 %v3822, %v3846
        %v3848 = vmin.f32 %v3847, 1.0
        %v3849 = vmax.f32 %v3848, -1.0
        %v3850 = vmul.f32 %v1329, %v1329
        %v3851 = vmin.f32 16.0, %v3850
        %v3852 = vmul.f32 %v3851, 2.1237322e-06
        %v3853 = vadd.f32 %v3852, 0.00028619796
        %v3854 = vmul.f32 %v3851, %v3853
        %v3855 = vadd.f32 %v3854, 0.0036580483
        %v3856 = vmul.f32 %v3851, %v3855
        %v3857 = vadd.f32 %v3856, 0.05243302
        %v3858 = vmul.f32 %v3851, %v3857
        %v3859 = vadd.f32 %v3858, 0.18741608
        %v3860 = vmul.f32 %v3851, %v3859
        %v3861 = vadd.f32 %v3860, 1.1283791
        %v3862 = vmul.f32 %v1329, %v3861
        %v3863 = vmul.f32 %v3851, 3.8918573e-05
        %v3864 = vadd.f32 %v3863, 0.001143296
        %v3865 = vmul.f32 %v3851, %v3864
        %v3866 = vadd.f32 %v3865, 0.014752088
        %v3867 = vmul.f32 %v3851, %v3866
        %v3868 = vadd.f32 %v3867, 0.112945676
        %v3869 = vmul.f32 %v3851, %v3868
        %v3870 = vadd.f32 %v3869, 0.4994258
        %v3871 = vmul.f32 %v3851, %v3870
        %v3872 = vadd.f32 %v3871, 1.0
        %v3873 = vrcp.pop %v3872
        %v3874 = vmul.f32 %v3872, %v3873
        %v3875 = vsub.f32 1.0, %v3874
        %v3876 = vmul.f32 %v3873, %v3875
        %v3877 = vadd.f32 %v3873, %v3876
        %vm3878 = vweird.f32 %v3872
        %vm3879 = vweird.f32 %v3873
        %vm3880 = vmor %vm3878, %vm3879
        %v3881 = vsel %vm3880, %v3873, %v3877
        %v3882 = vand.u32 2147483647, %v3872
        %vm3883 = vcmp.eq.f32.partialorder %v3882, 8.507059e+37
        %v3884 = vand.u32 %v3872, 2147483648
        %v3885 = vor.u32 1.1754944e-38, %v3884
        %v3886 = vsel %vm3883, %v3885, %v3881
        %v3887 = vmul.f32 %v3862, %v3886
        %v3888 = vmin.f32 %v3887, 1.0
        %v3889 = vmax.f32 %v3888, -1.0
        %v3890 = vadd.f32 %v1369, 1.0
        %v3891 = vadd.f32 %v1409, 1.0
        %v3892 = vadd.f32 %v1449, 1.0
        %v3893 = vadd.f32 %v1489, 1.0
        %v3894 = vadd.f32 %v1529, 1.0
        %v3895 = vadd.f32 %v1569, 1.0
        %v3896 = vadd.f32 %v1609, 1.0
        %v3897 = vadd.f32 %v1649, 1.0
        %v3898 = vadd.f32 %v1689, 1.0
        %v3899 = vadd.f32 %v1729, 1.0
        %v3900 = vadd.f32 %v1769, 1.0
        %v3901 = vadd.f32 %v1809, 1.0
        %v3902 = vadd.f32 %v1849, 1.0
        %v3903 = vadd.f32 %v1889, 1.0
        %v3904 = vadd.f32 %v1929, 1.0
        %v3905 = vadd.f32 %v1969, 1.0
        %v3906 = vadd.f32 %v2009, 1.0
        %v3907 = vadd.f32 %v2049, 1.0
        %v3908 = vadd.f32 %v2089, 1.0
        %v3909 = vadd.f32 %v2129, 1.0
        %v3910 = vadd.f32 %v2169, 1.0
        %v3911 = vadd.f32 %v2209, 1.0
        %v3912 = vadd.f32 %v2249, 1.0
        %v3913 = vadd.f32 %v2289, 1.0
        %v3914 = vadd.f32 %v2329, 1.0
        %v3915 = vadd.f32 %v2369, 1.0
        %v3916 = vadd.f32 %v2409, 1.0
        %v3917 = vadd.f32 %v2449, 1.0
        %v3918 = vadd.f32 %v2489, 1.0
        %v3919 = vadd.f32 %v2529, 1.0
        %v3920 = vadd.f32 %v2569, 1.0
        %v3921 = vadd.f32 %v2609, 1.0
        %v3922 = vadd.f32 %v2649, 1.0
        %v3923 = vadd.f32 %v2689, 1.0
        %v3924 = vadd.f32 %v2729, 1.0
        %v3925 = vadd.f32 %v2769, 1.0
        %v3926 = vadd.f32 %v2809, 1.0
        %v3927 = vadd.f32 %v2849, 1.0
        %v3928 = vadd.f32 %v2889, 1.0
        %v3929 = vadd.f32 %v2929, 1.0
        %v3930 = vadd.f32 %v2969, 1.0
        %v3931 = vadd.f32 %v3009, 1.0
        %v3932 = vadd.f32 %v3049, 1.0
        %v3933 = vadd.f32 %v3089, 1.0
        %v3934 = vadd.f32 %v3129, 1.0
        %v3935 = vadd.f32 %v3169, 1.0
        %v3936 = vadd.f32 %v3209, 1.0
        %v3937 = vadd.f32 %v3249, 1.0
        %v3938 = vadd.f32 %v3289, 1.0
        %v3939 = vadd.f32 %v3329, 1.0
        %v3940 = vadd.f32 %v3369, 1.0
        %v3941 = vadd.f32 %v3409, 1.0
        %v3942 = vadd.f32 %v3449, 1.0
        %v3943 = vadd.f32 %v3489, 1.0
        %v3944 = vadd.f32 %v3529, 1.0
        %v3945 = vadd.f32 %v3569, 1.0
        %v3946 = vadd.f32 %v3609, 1.0
        %v3947 = vadd.f32 %v3649, 1.0
        %v3948 = vadd.f32 %v3689, 1.0
        %v3949 = vadd.f32 %v3729, 1.0
        %v3950 = vadd.f32 %v3769, 1.0
        %v3951 = vadd.f32 %v3809, 1.0
        %v3952 = vadd.f32 %v3849, 1.0
        %v3953 = vadd.f32 %v3889, 1.0
        %v3954 = vmul.f32 %v1202, %v3890
        %v3955 = vmul.f32 %v1203, %v3891
        %v3956 = vmul.f32 %v1204, %v3892
        %v3957 = vmul.f32 %v1205, %v3893
        %v3958 = vmul.f32 %v1206, %v3894
        %v3959 = vmul.f32 %v1207, %v3895
        %v3960 = vmul.f32 %v1208, %v3896
        %v3961 = vmul.f32 %v1209, %v3897
        %v3962 = vmul.f32 %v1210, %v3898
        %v3963 = vmul.f32 %v1211, %v3899
        %v3964 = vmul.f32 %v1212, %v3900
        %v3965 = vmul.f32 %v1213, %v3901
        %v3966 = vmul.f32 %v1214, %v3902
        %v3967 = vmul.f32 %v1215, %v3903
        %v3968 = vmul.f32 %v1216, %v3904
        %v3969 = vmul.f32 %v1217, %v3905
        %v3970 = vmul.f32 %v1218, %v3906
        %v3971 = vmul.f32 %v1219, %v3907
        %v3972 = vmul.f32 %v1220, %v3908
        %v3973 = vmul.f32 %v1221, %v3909
        %v3974 = vmul.f32 %v1222, %v3910
        %v3975 = vmul.f32 %v1223, %v3911
        %v3976 = vmul.f32 %v1224, %v3912
        %v3977 = vmul.f32 %v1225, %v3913
        %v3978 = vmul.f32 %v1226, %v3914
        %v3979 = vmul.f32 %v1227, %v3915
        %v3980 = vmul.f32 %v1228, %v3916
        %v3981 = vmul.f32 %v1229, %v3917
        %v3982 = vmul.f32 %v1230, %v3918
        %v3983 = vmul.f32 %v1231, %v3919
        %v3984 = vmul.f32 %v1232, %v3920
        %v3985 = vmul.f32 %v1233, %v3921
        %v3986 = vmul.f32 %v1234, %v3922
        %v3987 = vmul.f32 %v1235, %v3923
        %v3988 = vmul.f32 %v1236, %v3924
        %v3989 = vmul.f32 %v1237, %v3925
        %v3990 = vmul.f32 %v1238, %v3926
        %v3991 = vmul.f32 %v1239, %v3927
        %v3992 = vmul.f32 %v1240, %v3928
        %v3993 = vmul.f32 %v1241, %v3929
        %v3994 = vmul.f32 %v1242, %v3930
        %v3995 = vmul.f32 %v1243, %v3931
        %v3996 = vmul.f32 %v1244, %v3932
        %v3997 = vmul.f32 %v1245, %v3933
        %v3998 = vmul.f32 %v1246, %v3934
        %v3999 = vmul.f32 %v1247, %v3935
        %v4000 = vmul.f32 %v1248, %v3936
        %v4001 = vmul.f32 %v1249, %v3937
        %v4002 = vmul.f32 %v1250, %v3938
        %v4003 = vmul.f32 %v1251, %v3939
        %v4004 = vmul.f32 %v1252, %v3940
        %v4005 = vmul.f32 %v1253, %v3941
        %v4006 = vmul.f32 %v1254, %v3942
        %v4007 = vmul.f32 %v1255, %v3943
        %v4008 = vmul.f32 %v1256, %v3944
        %v4009 = vmul.f32 %v1257, %v3945
        %v4010 = vmul.f32 %v1258, %v3946
        %v4011 = vmul.f32 %v1259, %v3947
        %v4012 = vmul.f32 %v1260, %v3948
        %v4013 = vmul.f32 %v1261, %v3949
        %v4014 = vmul.f32 %v1262, %v3950
        %v4015 = vmul.f32 %v1263, %v3951
        %v4016 = vmul.f32 %v1264, %v3952
        %v4017 = vmul.f32 %v1265, %v3953
        %v4018 = vmul.f32 %v618, %v3954
        %v4019 = vmul.f32 %v667, %v3955
        %v4020 = vmul.f32 %v716, %v3956
        %v4021 = vmul.f32 %v765, %v3957
        %v4022 = vmul.f32 %v620, %v3958
        %v4023 = vmul.f32 %v669, %v3959
        %v4024 = vmul.f32 %v718, %v3960
        %v4025 = vmul.f32 %v767, %v3961
        %v4026 = vmul.f32 %v623, %v3962
        %v4027 = vmul.f32 %v672, %v3963
        %v4028 = vmul.f32 %v721, %v3964
        %v4029 = vmul.f32 %v770, %v3965
        %v4030 = vmul.f32 %v625, %v3966
        %v4031 = vmul.f32 %v674, %v3967
        %v4032 = vmul.f32 %v723, %v3968
        %v4033 = vmul.f32 %v772, %v3969
        %v4034 = vmul.f32 %v628, %v3970
        %v4035 = vmul.f32 %v677, %v3971
        %v4036 = vmul.f32 %v726, %v3972
        %v4037 = vmul.f32 %v775, %v3973
        %v4038 = vmul.f32 %v630, %v3974
        %v4039 = vmul.f32 %v679, %v3975
        %v4040 = vmul.f32 %v728, %v3976
        %v4041 = vmul.f32 %v777, %v3977
        %v4042 = vmul.f32 %v633, %v3978
        %v4043 = vmul.f32 %v682, %v3979
        %v4044 = vmul.f32 %v731, %v3980
        %v4045 = vmul.f32 %v780, %v3981
        %v4046 = vmul.f32 %v635, %v3982
        %v4047 = vmul.f32 %v684, %v3983
        %v4048 = vmul.f32 %v733, %v3984
        %v4049 = vmul.f32 %v782, %v3985
        %v4050 = vmul.f32 %v638, %v3986
        %v4051 = vmul.f32 %v687, %v3987
        %v4052 = vmul.f32 %v736, %v3988
        %v4053 = vmul.f32 %v785, %v3989
        %v4054 = vmul.f32 %v640, %v3990
        %v4055 = vmul.f32 %v689, %v3991
        %v4056 = vmul.f32 %v738, %v3992
        %v4057 = vmul.f32 %v787, %v3993
        %v4058 = vmul.f32 %v643, %v3994
        %v4059 = vmul.f32 %v692, %v3995
        %v4060 = vmul.f32 %v741, %v3996
        %v4061 = vmul.f32 %v790, %v3997
        %v4062 = vmul.f32 %v645, %v3998
        %v4063 = vmul.f32 %v694, %v3999
        %v4064 = vmul.f32 %v743, %v4000
        %v4065 = vmul.f32 %v792, %v4001
        %v4066 = vmul.f32 %v648, %v4002
        %v4067 = vmul.f32 %v697, %v4003
        %v4068 = vmul.f32 %v746, %v4004
        %v4069 = vmul.f32 %v795, %v4005
        %v4070 = vmul.f32 %v650, %v4006
        %v4071 = vmul.f32 %v699, %v4007
        %v4072 = vmul.f32 %v748, %v4008
        %v4073 = vmul.f32 %v797, %v4009
        %v4074 = vmul.f32 %v653, %v4010
        %v4075 = vmul.f32 %v702, %v4011
        %v4076 = vmul.f32 %v751, %v4012
        %v4077 = vmul.f32 %v800, %v4013
        %v4078 = vmul.f32 %v655, %v4014
        %v4079 = vmul.f32 %v704, %v4015
        %v4080 = vmul.f32 %v753, %v4016
        %v4081 = vmul.f32 %v802, %v4017
        %v4082 = vpack.c.bf16 %v4022, %v4018
        %v4083 = vpack.c.bf16 %v4023, %v4019
        %v4084 = vpack.c.bf16 %v4024, %v4020
        %v4085 = vpack.c.bf16 %v4025, %v4021
        %v4086 = vpack.c.bf16 %v4030, %v4026
        %v4087 = vpack.c.bf16 %v4031, %v4027
        %v4088 = vpack.c.bf16 %v4032, %v4028
        %v4089 = vpack.c.bf16 %v4033, %v4029
        %v4090 = vpack.c.bf16 %v4038, %v4034
        %v4091 = vpack.c.bf16 %v4039, %v4035
        %v4092 = vpack.c.bf16 %v4040, %v4036
        %v4093 = vpack.c.bf16 %v4041, %v4037
        %v4094 = vpack.c.bf16 %v4046, %v4042
        %v4095 = vpack.c.bf16 %v4047, %v4043
        %v4096 = vpack.c.bf16 %v4048, %v4044
        %v4097 = vpack.c.bf16 %v4049, %v4045
        %v4098 = vpack.c.bf16 %v4054, %v4050
        %v4099 = vpack.c.bf16 %v4055, %v4051
        %v4100 = vpack.c.bf16 %v4056, %v4052
        %v4101 = vpack.c.bf16 %v4057, %v4053
        %v4102 = vpack.c.bf16 %v4062, %v4058
        %v4103 = vpack.c.bf16 %v4063, %v4059
        %v4104 = vpack.c.bf16 %v4064, %v4060
        %v4105 = vpack.c.bf16 %v4065, %v4061
        %v4106 = vpack.c.bf16 %v4070, %v4066
        %v4107 = vpack.c.bf16 %v4071, %v4067
        %v4108 = vpack.c.bf16 %v4072, %v4068
        %v4109 = vpack.c.bf16 %v4073, %v4069
        %v4110 = vpack.c.bf16 %v4078, %v4074
        %v4111 = vpack.c.bf16 %v4079, %v4075
        %v4112 = vpack.c.bf16 %v4080, %v4076
        %v4113 = vpack.c.bf16 %v4081, %v4077
        %v4114 = vld [vmem:[#allocation11] sm:$0xf]
        %v4115 = vld [vmem:[#allocation11 + $0x4] sm:$0xf]
        %v4116 = vld [vmem:[#allocation11 + $0x8] sm:$0xf]
        %v4117 = vld [vmem:[#allocation11 + $0xc] sm:$0xf]
        %v4118 = vld [vmem:[#allocation11 + $0x10] sm:$0xf]
        %v4119 = vld [vmem:[#allocation11 + $0x14] sm:$0xf]
        %v4120 = vld [vmem:[#allocation11 + $0x18] sm:$0xf]
        %v4121 = vld [vmem:[#allocation11 + $0x1c] sm:$0xf]
        %v4122 = vld [vmem:[#allocation11 + $0x20] sm:$0xf]
        %v4123 = vld [vmem:[#allocation11 + $0x24] sm:$0xf]
        %v4124 = vld [vmem:[#allocation11 + $0x28] sm:$0xf]
        %v4125 = vld [vmem:[#allocation11 + $0x2c] sm:$0xf]
        %v4126 = vld [vmem:[#allocation11 + $0x30] sm:$0xf]
        %v4127 = vld [vmem:[#allocation11 + $0x34] sm:$0xf]
        %v4128 = vld [vmem:[#allocation11 + $0x38] sm:$0xf]
        %v4129 = vld [vmem:[#allocation11 + $0x3c] sm:$0xf]
        %v4130 = vld [vmem:[#allocation11 + $0x40] sm:$0xf]
        %v4131 = vld [vmem:[#allocation11 + $0x44] sm:$0xf]
        %v4132 = vld [vmem:[#allocation11 + $0x48] sm:$0xf]
        %v4133 = vld [vmem:[#allocation11 + $0x4c] sm:$0xf]
        %v4134 = vld [vmem:[#allocation11 + $0x50] sm:$0xf]
        %v4135 = vld [vmem:[#allocation11 + $0x54] sm:$0xf]
        %v4136 = vld [vmem:[#allocation11 + $0x58] sm:$0xf]
        %v4137 = vld [vmem:[#allocation11 + $0x5c] sm:$0xf]
        %v4138 = vld [vmem:[#allocation11 + $0x60] sm:$0xf]
        %v4139 = vld [vmem:[#allocation11 + $0x64] sm:$0xf]
        %v4140 = vld [vmem:[#allocation11 + $0x68] sm:$0xf]
        %v4141 = vld [vmem:[#allocation11 + $0x6c] sm:$0xf]
        %v4142 = vld [vmem:[#allocation11 + $0x70] sm:$0xf]
        %v4143 = vld [vmem:[#allocation11 + $0x74] sm:$0xf]
        %v4144 = vld [vmem:[#allocation11 + $0x78] sm:$0xf]
        %v4145 = vld [vmem:[#allocation11 + $0x7c] sm:$0xf]
        %v4146 = vld [vmem:[#allocation11 + $0x80] sm:$0xf]
        %v4147 = vld [vmem:[#allocation11 + $0x84] sm:$0xf]
        %v4148 = vld [vmem:[#allocation11 + $0x88] sm:$0xf]
        %v4149 = vld [vmem:[#allocation11 + $0x8c] sm:$0xf]
        %v4150 = vld [vmem:[#allocation11 + $0x90] sm:$0xf]
        %v4151 = vld [vmem:[#allocation11 + $0x94] sm:$0xf]
        %v4152 = vld [vmem:[#allocation11 + $0x98] sm:$0xf]
        %v4153 = vld [vmem:[#allocation11 + $0x9c] sm:$0xf]
        %v4154 = vld [vmem:[#allocation11 + $0xa0] sm:$0xf]
        %v4155 = vld [vmem:[#allocation11 + $0xa4] sm:$0xf]
        %v4156 = vld [vmem:[#allocation11 + $0xa8] sm:$0xf]
        %v4157 = vld [vmem:[#allocation11 + $0xac] sm:$0xf]
        %v4158 = vld [vmem:[#allocation11 + $0xb0] sm:$0xf]
        %v4159 = vld [vmem:[#allocation11 + $0xb4] sm:$0xf]
        %v4160 = vld [vmem:[#allocation11 + $0xb8] sm:$0xf]
        %v4161 = vld [vmem:[#allocation11 + $0xbc] sm:$0xf]
        %v4162 = vld [vmem:[#allocation11 + $0xc0] sm:$0xf]
        %v4163 = vld [vmem:[#allocation11 + $0xc4] sm:$0xf]
        %v4164 = vld [vmem:[#allocation11 + $0xc8] sm:$0xf]
        %v4165 = vld [vmem:[#allocation11 + $0xcc] sm:$0xf]
        %v4166 = vld [vmem:[#allocation11 + $0xd0] sm:$0xf]
        %v4167 = vld [vmem:[#allocation11 + $0xd4] sm:$0xf]
        %v4168 = vld [vmem:[#allocation11 + $0xd8] sm:$0xf]
        %v4169 = vld [vmem:[#allocation11 + $0xdc] sm:$0xf]
        %v4170 = vld [vmem:[#allocation11 + $0xe0] sm:$0xf]
        %v4171 = vld [vmem:[#allocation11 + $0xe4] sm:$0xf]
        %v4172 = vld [vmem:[#allocation11 + $0xe8] sm:$0xf]
        %v4173 = vld [vmem:[#allocation11 + $0xec] sm:$0xf]
        %v4174 = vld [vmem:[#allocation11 + $0xf0] sm:$0xf]
        %v4175 = vld [vmem:[#allocation11 + $0xf4] sm:$0xf]
        %v4176 = vld [vmem:[#allocation11 + $0xf8] sm:$0xf]
        %v4177 = vld [vmem:[#allocation11 + $0xfc] sm:$0xf]
        %v4178 = vld [vmem:[%s6] sm:$0x1]
        %v4180 = vperm.slane %v4178, 0
        %v4246 = vunpack.c.l.b16 %v4114
        %v4247 = vunpack.c.l.b16 %v4115
        %v4248 = vunpack.c.l.b16 %v4116
        %v4249 = vunpack.c.l.b16 %v4117
        %v4250 = vunpack.c.l.b16 %v4118
        %v4251 = vunpack.c.l.b16 %v4119
        %v4252 = vunpack.c.l.b16 %v4120
        %v4253 = vunpack.c.l.b16 %v4121
        %v4254 = vunpack.c.l.b16 %v4122
        %v4255 = vunpack.c.l.b16 %v4123
        %v4256 = vunpack.c.l.b16 %v4124
        %v4257 = vunpack.c.l.b16 %v4125
        %v4258 = vunpack.c.l.b16 %v4126
        %v4259 = vunpack.c.l.b16 %v4127
        %v4260 = vunpack.c.l.b16 %v4128
        %v4261 = vunpack.c.l.b16 %v4129
        %v4262 = vunpack.c.l.b16 %v4130
        %v4263 = vunpack.c.l.b16 %v4131
        %v4264 = vunpack.c.l.b16 %v4132
        %v4265 = vunpack.c.l.b16 %v4133
        %v4266 = vunpack.c.l.b16 %v4134
        %v4267 = vunpack.c.l.b16 %v4135
        %v4268 = vunpack.c.l.b16 %v4136
        %v4269 = vunpack.c.l.b16 %v4137
        %v4270 = vunpack.c.l.b16 %v4138
        %v4271 = vunpack.c.l.b16 %v4139
        %v4272 = vunpack.c.l.b16 %v4140
        %v4273 = vunpack.c.l.b16 %v4141
        %v4274 = vunpack.c.l.b16 %v4142
        %v4275 = vunpack.c.l.b16 %v4143
        %v4276 = vunpack.c.l.b16 %v4144
        %v4277 = vunpack.c.l.b16 %v4145
        %v4278 = vunpack.c.l.b16 %v4146
        %v4279 = vunpack.c.l.b16 %v4147
        %v4280 = vunpack.c.l.b16 %v4148
        %v4281 = vunpack.c.l.b16 %v4149
        %v4282 = vunpack.c.l.b16 %v4150
        %v4283 = vunpack.c.l.b16 %v4151
        %v4284 = vunpack.c.l.b16 %v4152
        %v4285 = vunpack.c.l.b16 %v4153
        %v4286 = vunpack.c.l.b16 %v4154
        %v4287 = vunpack.c.l.b16 %v4155
        %v4288 = vunpack.c.l.b16 %v4156
        %v4289 = vunpack.c.l.b16 %v4157
        %v4290 = vunpack.c.l.b16 %v4158
        %v4291 = vunpack.c.l.b16 %v4159
        %v4292 = vunpack.c.l.b16 %v4160
        %v4293 = vunpack.c.l.b16 %v4161
        %v4294 = vunpack.c.l.b16 %v4162
        %v4295 = vunpack.c.l.b16 %v4163
        %v4296 = vunpack.c.l.b16 %v4164
        %v4297 = vunpack.c.l.b16 %v4165
        %v4298 = vunpack.c.l.b16 %v4166
        %v4299 = vunpack.c.l.b16 %v4167
        %v4300 = vunpack.c.l.b16 %v4168
        %v4301 = vunpack.c.l.b16 %v4169
        %v4302 = vunpack.c.l.b16 %v4170
        %v4303 = vunpack.c.l.b16 %v4171
        %v4304 = vunpack.c.l.b16 %v4172
        %v4305 = vunpack.c.l.b16 %v4173
        %v4306 = vunpack.c.l.b16 %v4174
        %v4307 = vunpack.c.l.b16 %v4175
        %v4308 = vunpack.c.l.b16 %v4176
        %v4309 = vunpack.c.l.b16 %v4177
        %v4310 = vpack.c.b16 %v4247, %v4246
        %v4311 = vpack.c.b16 %v4249, %v4248
        %v4312 = vpack.c.b16 %v4251, %v4250
        %v4313 = vpack.c.b16 %v4253, %v4252
        %v4314 = vpack.c.b16 %v4255, %v4254
        %v4315 = vpack.c.b16 %v4257, %v4256
        %v4316 = vpack.c.b16 %v4259, %v4258
        %v4317 = vpack.c.b16 %v4261, %v4260
        %v4318 = vpack.c.b16 %v4263, %v4262
        %v4319 = vpack.c.b16 %v4265, %v4264
        %v4320 = vpack.c.b16 %v4267, %v4266
        %v4321 = vpack.c.b16 %v4269, %v4268
        %v4322 = vpack.c.b16 %v4271, %v4270
        %v4323 = vpack.c.b16 %v4273, %v4272
        %v4324 = vpack.c.b16 %v4275, %v4274
        %v4325 = vpack.c.b16 %v4277, %v4276
        %v4326 = vpack.c.b16 %v4279, %v4278
        %v4327 = vpack.c.b16 %v4281, %v4280
        %v4328 = vpack.c.b16 %v4283, %v4282
        %v4329 = vpack.c.b16 %v4285, %v4284
        %v4330 = vpack.c.b16 %v4287, %v4286
        %v4331 = vpack.c.b16 %v4289, %v4288
        %v4332 = vpack.c.b16 %v4291, %v4290
        %v4333 = vpack.c.b16 %v4293, %v4292
        %v4334 = vpack.c.b16 %v4295, %v4294
        %v4335 = vpack.c.b16 %v4297, %v4296
        %v4336 = vpack.c.b16 %v4299, %v4298
        %v4337 = vpack.c.b16 %v4301, %v4300
        %v4338 = vpack.c.b16 %v4303, %v4302
        %v4339 = vpack.c.b16 %v4305, %v4304
        %v4340 = vpack.c.b16 %v4307, %v4306
        %v4341 = vpack.c.b16 %v4309, %v4308
        %4374 = vmatpush.bf16.msra.mxu0 %v4317
        %4375 = vmatpush.bf16.msra.mxu0 %v4316
        %4376 = vmatpush.bf16.msra.mxu0 %v4315
        %4377 = vmatpush.bf16.msra.mxu0 %v4314
        %4378 = vmatpush.bf16.msra.mxu0 %v4313
        %4379 = vmatpush.bf16.msra.mxu0 %v4312
        %4380 = vmatpush.bf16.msra.mxu0 %v4311
        %4381 = vmatpush.bf16.msra.mxu0 %v4310
        %4382 = vmatmul.bf16.gmra.mxu0 %v4082
        %v4383 = vpop.f32.mrf.mxu0
        %v4384 = vadd.f32 %v4180, %v4383
        %v4385 = vpop.f32.mrf.mxu0
        %v4386 = vadd.f32 %v4180, %v4385
        %4387 = vmatmul.bf16.gmra.mxu0 %v4086
        %v4388 = vpop.f32.mrf.mxu0
        %v4389 = vadd.f32 %v4180, %v4388
        %v4390 = vpop.f32.mrf.mxu0
        %v4391 = vadd.f32 %v4180, %v4390
        %4392 = vmatmul.bf16.gmra.mxu0 %v4090
        %v4393 = vpop.f32.mrf.mxu0
        %v4394 = vadd.f32 %v4180, %v4393
        %v4395 = vpop.f32.mrf.mxu0
        %v4396 = vadd.f32 %v4180, %v4395
        %4397 = vmatmul.bf16.gmra.mxu0 %v4094
        %v4398 = vpop.f32.mrf.mxu0
        %v4399 = vadd.f32 %v4180, %v4398
        %v4400 = vpop.f32.mrf.mxu0
        %v4401 = vadd.f32 %v4180, %v4400
        %4402 = vmatmul.bf16.gmra.mxu0 %v4098
        %v4403 = vpop.f32.mrf.mxu0
        %v4404 = vadd.f32 %v4180, %v4403
        %v4405 = vpop.f32.mrf.mxu0
        %v4406 = vadd.f32 %v4180, %v4405
        %4407 = vmatmul.bf16.gmra.mxu0 %v4102
        %v4408 = vpop.f32.mrf.mxu0
        %v4409 = vadd.f32 %v4180, %v4408
        %v4410 = vpop.f32.mrf.mxu0
        %v4411 = vadd.f32 %v4180, %v4410
        %4412 = vmatmul.bf16.gmra.mxu0 %v4106
        %v4413 = vpop.f32.mrf.mxu0
        %v4414 = vadd.f32 %v4180, %v4413
        %v4415 = vpop.f32.mrf.mxu0
        %v4416 = vadd.f32 %v4180, %v4415
        %4417 = vmatmul.bf16.gmra.mxu0 %v4110
        %v4418 = vpop.f32.mrf.mxu0
        %v4419 = vadd.f32 %v4180, %v4418
        %v4420 = vpop.f32.mrf.mxu0
        %v4421 = vadd.f32 %v4180, %v4420
        %4422 = vdwg.mxu0
        %4423 = vmatpush.bf16.msra.mxu0 %v4325
        %4424 = vmatpush.bf16.msra.mxu0 %v4324
        %4425 = vmatpush.bf16.msra.mxu0 %v4323
        %4426 = vmatpush.bf16.msra.mxu0 %v4322
        %4427 = vmatpush.bf16.msra.mxu0 %v4321
        %4428 = vmatpush.bf16.msra.mxu0 %v4320
        %4429 = vmatpush.bf16.msra.mxu0 %v4319
        %4430 = vmatpush.bf16.msra.mxu0 %v4318
        %4431 = vmatmul.bf16.gmra.mxu0 %v4083
        %v4432 = vpop.f32.mrf.mxu0
        %v4433 = vadd.f32 %v4384, %v4432
        %v4434 = vpop.f32.mrf.mxu0
        %v4435 = vadd.f32 %v4386, %v4434
        %4436 = vmatmul.bf16.gmra.mxu0 %v4087
        %v4437 = vpop.f32.mrf.mxu0
        %v4438 = vadd.f32 %v4389, %v4437
        %v4439 = vpop.f32.mrf.mxu0
        %v4440 = vadd.f32 %v4391, %v4439
        %4441 = vmatmul.bf16.gmra.mxu0 %v4091
        %v4442 = vpop.f32.mrf.mxu0
        %v4443 = vadd.f32 %v4394, %v4442
        %v4444 = vpop.f32.mrf.mxu0
        %v4445 = vadd.f32 %v4396, %v4444
        %4446 = vmatmul.bf16.gmra.mxu0 %v4095
        %v4447 = vpop.f32.mrf.mxu0
        %v4448 = vadd.f32 %v4399, %v4447
        %v4449 = vpop.f32.mrf.mxu0
        %v4450 = vadd.f32 %v4401, %v4449
        %4451 = vmatmul.bf16.gmra.mxu0 %v4099
        %v4452 = vpop.f32.mrf.mxu0
        %v4453 = vadd.f32 %v4404, %v4452
        %v4454 = vpop.f32.mrf.mxu0
        %v4455 = vadd.f32 %v4406, %v4454
        %4456 = vmatmul.bf16.gmra.mxu0 %v4103
        %v4457 = vpop.f32.mrf.mxu0
        %v4458 = vadd.f32 %v4409, %v4457
        %v4459 = vpop.f32.mrf.mxu0
        %v4460 = vadd.f32 %v4411, %v4459
        %4461 = vmatmul.bf16.gmra.mxu0 %v4107
        %v4462 = vpop.f32.mrf.mxu0
        %v4463 = vadd.f32 %v4414, %v4462
        %v4464 = vpop.f32.mrf.mxu0
        %v4465 = vadd.f32 %v4416, %v4464
        %4466 = vmatmul.bf16.gmra.mxu0 %v4111
        %v4467 = vpop.f32.mrf.mxu0
        %v4468 = vadd.f32 %v4419, %v4467
        %v4469 = vpop.f32.mrf.mxu0
        %v4470 = vadd.f32 %v4421, %v4469
        %4471 = vdwg.mxu0
        %4472 = vmatpush.bf16.msra.mxu0 %v4333
        %4473 = vmatpush.bf16.msra.mxu0 %v4332
        %4474 = vmatpush.bf16.msra.mxu0 %v4331
        %4475 = vmatpush.bf16.msra.mxu0 %v4330
        %4476 = vmatpush.bf16.msra.mxu0 %v4329
        %4477 = vmatpush.bf16.msra.mxu0 %v4328
        %4478 = vmatpush.bf16.msra.mxu0 %v4327
        %4479 = vmatpush.bf16.msra.mxu0 %v4326
        %4480 = vmatmul.bf16.gmra.mxu0 %v4084
        %v4481 = vpop.f32.mrf.mxu0
        %v4482 = vadd.f32 %v4433, %v4481
        %v4483 = vpop.f32.mrf.mxu0
        %v4484 = vadd.f32 %v4435, %v4483
        %4485 = vmatmul.bf16.gmra.mxu0 %v4088
        %v4486 = vpop.f32.mrf.mxu0
        %v4487 = vadd.f32 %v4438, %v4486
        %v4488 = vpop.f32.mrf.mxu0
        %v4489 = vadd.f32 %v4440, %v4488
        %4490 = vmatmul.bf16.gmra.mxu0 %v4092
        %v4491 = vpop.f32.mrf.mxu0
        %v4492 = vadd.f32 %v4443, %v4491
        %v4493 = vpop.f32.mrf.mxu0
        %v4494 = vadd.f32 %v4445, %v4493
        %4495 = vmatmul.bf16.gmra.mxu0 %v4096
        %v4496 = vpop.f32.mrf.mxu0
        %v4497 = vadd.f32 %v4448, %v4496
        %v4498 = vpop.f32.mrf.mxu0
        %v4499 = vadd.f32 %v4450, %v4498
        %4500 = vmatmul.bf16.gmra.mxu0 %v4100
        %v4501 = vpop.f32.mrf.mxu0
        %v4502 = vadd.f32 %v4453, %v4501
        %v4503 = vpop.f32.mrf.mxu0
        %v4504 = vadd.f32 %v4455, %v4503
        %4505 = vmatmul.bf16.gmra.mxu0 %v4104
        %v4506 = vpop.f32.mrf.mxu0
        %v4507 = vadd.f32 %v4458, %v4506
        %v4508 = vpop.f32.mrf.mxu0
        %v4509 = vadd.f32 %v4460, %v4508
        %4510 = vmatmul.bf16.gmra.mxu0 %v4108
        %v4511 = vpop.f32.mrf.mxu0
        %v4512 = vadd.f32 %v4463, %v4511
        %v4513 = vpop.f32.mrf.mxu0
        %v4514 = vadd.f32 %v4465, %v4513
        %4515 = vmatmul.bf16.gmra.mxu0 %v4112
        %v4516 = vpop.f32.mrf.mxu0
        %v4517 = vadd.f32 %v4468, %v4516
        %v4518 = vpop.f32.mrf.mxu0
        %v4519 = vadd.f32 %v4470, %v4518
        %4520 = vdwg.mxu0
        %4521 = vmatpush.bf16.msra.mxu0 %v4341
        %4522 = vmatpush.bf16.msra.mxu0 %v4340
        %4523 = vmatpush.bf16.msra.mxu0 %v4339
        %4524 = vmatpush.bf16.msra.mxu0 %v4338
        %4525 = vmatpush.bf16.msra.mxu0 %v4337
        %4526 = vmatpush.bf16.msra.mxu0 %v4336
        %4527 = vmatpush.bf16.msra.mxu0 %v4335
        %4528 = vmatpush.bf16.msra.mxu0 %v4334
        %4529 = vmatmul.bf16.gmra.mxu0 %v4085
        %v4530 = vpop.f32.mrf.mxu0
        %v4531 = vadd.f32 %v4482, %v4530
        %v4532 = vpop.f32.mrf.mxu0
        %v4533 = vadd.f32 %v4484, %v4532
        %4534 = vmatmul.bf16.gmra.mxu0 %v4089
        %v4535 = vpop.f32.mrf.mxu0
        %v4536 = vadd.f32 %v4487, %v4535
        %v4537 = vpop.f32.mrf.mxu0
        %v4538 = vadd.f32 %v4489, %v4537
        %4539 = vmatmul.bf16.gmra.mxu0 %v4093
        %v4540 = vpop.f32.mrf.mxu0
        %v4541 = vadd.f32 %v4492, %v4540
        %v4542 = vpop.f32.mrf.mxu0
        %v4543 = vadd.f32 %v4494, %v4542
        %4544 = vmatmul.bf16.gmra.mxu0 %v4097
        %v4545 = vpop.f32.mrf.mxu0
        %v4546 = vadd.f32 %v4497, %v4545
        %v4547 = vpop.f32.mrf.mxu0
        %v4548 = vadd.f32 %v4499, %v4547
        %4549 = vmatmul.bf16.gmra.mxu0 %v4101
        %v4550 = vpop.f32.mrf.mxu0
        %v4551 = vadd.f32 %v4502, %v4550
        %v4552 = vpop.f32.mrf.mxu0
        %v4553 = vadd.f32 %v4504, %v4552
        %4554 = vmatmul.bf16.gmra.mxu0 %v4105
        %v4555 = vpop.f32.mrf.mxu0
        %v4556 = vadd.f32 %v4507, %v4555
        %v4557 = vpop.f32.mrf.mxu0
        %v4558 = vadd.f32 %v4509, %v4557
        %4559 = vmatmul.bf16.gmra.mxu0 %v4109
        %v4560 = vpop.f32.mrf.mxu0
        %v4561 = vadd.f32 %v4512, %v4560
        %v4562 = vpop.f32.mrf.mxu0
        %v4563 = vadd.f32 %v4514, %v4562
        %4564 = vmatmul.bf16.gmra.mxu0 %v4113
        %v4565 = vpop.f32.mrf.mxu0
        %v4566 = vadd.f32 %v4517, %v4565
        %v4567 = vpop.f32.mrf.mxu0
        %v4568 = vadd.f32 %v4519, %v4567
        %4569 = vdwg.mxu0
        %4570 = vst [vmem:[%s379] sm:$0xff] %v4531
        %4571 = vst [vmem:[%s379 + $0x8] sm:$0xff] %v4533
        %4572 = vst [vmem:[%s379 + $0x10] sm:$0xff] %v4536
        %4573 = vst [vmem:[%s379 + $0x18] sm:$0xff] %v4538
        %4574 = vst [vmem:[%s379 + $0x20] sm:$0xff] %v4541
        %4575 = vst [vmem:[%s379 + $0x28] sm:$0xff] %v4543
        %4576 = vst [vmem:[%s379 + $0x30] sm:$0xff] %v4546
        %4577 = vst [vmem:[%s379 + $0x38] sm:$0xff] %v4548
        %4578 = vst [vmem:[%s379 + $0x40] sm:$0xff] %v4551
        %4579 = vst [vmem:[%s379 + $0x48] sm:$0xff] %v4553
        %4580 = vst [vmem:[%s379 + $0x50] sm:$0xff] %v4556
        %4581 = vst [vmem:[%s379 + $0x58] sm:$0xff] %v4558
        %4582 = vst [vmem:[%s379 + $0x60] sm:$0xff] %v4561
        %4583 = vst [vmem:[%s379 + $0x68] sm:$0xff] %v4563
        %4584 = vst [vmem:[%s379 + $0x70] sm:$0xff] %v4566
        %4585 = vst [vmem:[%s379 + $0x78] sm:$0xff] %v4568
        %s4586 = sand.u32 %s187, 1
        %s4587 = scalar_lea.sflag [#allocation4], %s4586
        %s4588 = sand.u32 %s187, 1
        %s4589 = smul.addr %s4588, 128
        %s4590 = scalar_lea.vmem [#allocation13], %s4589
        // Predicated region
        $region73: #{feed_forward_fwd.1} parent=47 // pred_check
          %p4591 = pneg %p197
        $region74: #{feed_forward_fwd.1} parent=47 // pred_check_branch
          %4593 = sbr.rel (%p4591) target = $region76
        $region75: #{feed_forward_fwd.1} parent=47 // pred_region
          %s4594 = smul.u32 16, %s27
          %4596 = vsyncadd %s4587, 0
          %s4597 = smul.addr %s4594, 8
          %s4598 = scalar_lea.hbm %s7, %s4597
          %s4599 = sshll.u32 %s4590, 4
          %s4600 = int_to_ptr.vmem [resolvable:$true] %s4599
          %s4601 = sshll.u32 %s4598, 4
          %s4602 = int_to_ptr.hbm [resolvable:$true] %s4601
          %4607 = dma.vmem_to_hbm [thread:$0]  %s4600, 2048, %s4602, %s4587, 128, 128, 8
        $region76: #{feed_forward_fwd.1} parent=47 // pred_fallthru
          _
      $region48: #{feed_forward_fwd.1} parent=5 // pred_fallthru
        _
      %p4608 = scmp.le.s32.totalorder 2, %s22
      // Predicated region
      $region77: #{feed_forward_fwd.1} parent=5 // pred_check
        %p4609 = pneg %p4608
      $region78: #{feed_forward_fwd.1} parent=5 // pred_check_branch
        %4611 = sbr.rel (%p4609) target = $region80
      $region79: #{feed_forward_fwd.1} parent=5 // pred_region
        %s4612 = ssub.s32 %s22, 2
        // Predicated region
        $region81: #{feed_forward_fwd.1} parent=79 // pred_check
          %p4613 = pneg %p203
        $region82: #{feed_forward_fwd.1} parent=79 // pred_check_branch
          %4615 = sbr.rel (%p4613) target = $region84
        $region83: #{feed_forward_fwd.1} parent=79 // pred_region
          %s4616 = sand.u32 %s188, 1
          %s4617 = scalar_lea.sflag [#allocation4], %s4616
          %s4618 = sand.u32 %s188, 1
          %s4619 = smul.addr %s4618, 128
          %s4620 = scalar_lea.vmem [#allocation13], %s4619
          %4622 = dma.done %s4617, 2048
        $region84: #{feed_forward_fwd.1} parent=79 // pred_fallthru
          _
      $region80: #{feed_forward_fwd.1} parent=5 // pred_fallthru
        _
    $region6: #{feed_forward_fwd.1} parent=1 // loop_footer
      %s26 = sadd.s32 1, %s22
    $region7: #{feed_forward_fwd.1} parent=1 // loop_footer_branch
      %21 = sbr.rel target = $region3
    $region8: #{feed_forward_fwd.1} parent=1 // loop_exit
      _
    %4623 = vsyncpa [#allocation3], 1
    %s4624 = scalar_lea.sflag [#allocation3], 1
    %4625 = vsyncpa %s4624, 1
    %4626 = vsyncpa [#allocation6], 1
    %4627 = vsyncpa [#allocation9], 1
    %4628 = vsyncpa [#allocation12], 1
    %4629 = vsyncpa [#allocation4], 1
    %s4630 = scalar_lea.sflag [#allocation4], 1
    %4631 = vsyncpa %s4630, 1

</llo_original>
